<compile_context>
chip_gen: v7x
topology: tpu7x:2x2x1
jax: 0.10.0
libtpu: 0.0.40
codegen_flags: <defaults>
</compile_context>

<pallas_src>
import jax
import jax.numpy as jnp
from jax import lax
from jax.experimental import pallas as pl
from jax.experimental.pallas import tpu as pltpu


C_IN = 3
C_OUT = 8


def _fused_kernel(x1_ref, x2_ref, wq_ref, bq_ref, wk_ref, bk_ref,
                  wv_ref, bv_ref, keep_ref, o_ref):
    # x1_ref / x2_ref : (3, Hp, Wp)  zero-padded inputs          (VMEM)
    # w*_ref          : (8, 3)       1x1-conv weights            (SMEM scalars)
    # b*_ref          : (8,)         1x1-conv biases             (SMEM scalars)
    # keep_ref        : (8, Hp, Hp)  dropout mask in {0.0, 2.0}  (VMEM)
    # o_ref           : (8, Hp, Wp)  output                      (VMEM)
    x1 = [x1_ref[ci] for ci in range(C_IN)]   # each (Hp, Wp)
    x2 = [x2_ref[ci] for ci in range(C_IN)]

    for c in range(C_OUT):
        # 1x1 conv == per-pixel channel mix: 3 broadcast FMAs on the VPU.
        # (the /10 attention scale is already folded into wq/bq)
        q = bq_ref[c] + wq_ref[c, 0] * x1[0] + wq_ref[c, 1] * x1[1] + wq_ref[c, 2] * x1[2]
        k = bk_ref[c] + wk_ref[c, 0] * x2[0] + wk_ref[c, 1] * x2[1] + wk_ref[c, 2] * x2[2]
        v = bv_ref[c] + wv_ref[c, 0] * x2[0] + wv_ref[c, 1] * x2[1] + wv_ref[c, 2] * x2[2]

        # scores = q @ k^T   (Hp, Hp)   -- MXU, contraction on the last dims
        s = lax.dot_general(q, k, (((1,), (1,)), ((), ())),
                            preferred_element_type=jnp.float32)

        # softmax along the last dim
        m = jnp.max(s, axis=-1, keepdims=True)
        e = jnp.exp(s - m)
        inv = 1.0 / jnp.sum(e, axis=-1, keepdims=True)

        # dropout (p=0.5, training): keep mask already scaled by 1/(1-p)=2
        p = e * inv * keep_ref[c]

        # output = p @ v   (Hp, Wp)
        o_ref[c] = jnp.dot(p, v, preferred_element_type=jnp.float32)


def model_forward(x1, x2, params, dropout_key):
    wq, bq, wk, bk, wv, bv = params

    # Fold the 1/10 attention scale into the q-projection parameters.
    wq_s = wq * jnp.float32(0.1)
    bq_s = bq * jnp.float32(0.1)

    n, cin, h, w = x1.shape
    hp, wp = h + 2, w + 2
    cout = wq.shape[0]

    # Conv2d(kernel=1, padding=1): zero-pad spatially, then per-pixel channel mix.
    pad = ((0, 0), (1, 1), (1, 1))
    x1p = jnp.pad(x1[0], pad)          # (3, Hp, Wp)
    x2p = jnp.pad(x2[0], pad)          # (3, Hp, Wp)

    # Dropout keep-mask for the (8, Hp, Hp) score tensor, scale 2.0 folded in.
    keep = (jax.random.bernoulli(dropout_key, 0.5, (cout, hp, hp))
            .astype(jnp.float32) * 2.0)

    out = pl.pallas_call(
        _fused_kernel,
        out_shape=jax.ShapeDtypeStruct((cout, hp, wp), jnp.float32),
        in_specs=[
            pl.BlockSpec(memory_space=pltpu.MemorySpace.VMEM),   # x1p
            pl.BlockSpec(memory_space=pltpu.MemorySpace.VMEM),   # x2p
            pl.BlockSpec(memory_space=pltpu.MemorySpace.SMEM),   # wq
            pl.BlockSpec(memory_space=pltpu.MemorySpace.SMEM),   # bq
            pl.BlockSpec(memory_space=pltpu.MemorySpace.SMEM),   # wk
            pl.BlockSpec(memory_space=pltpu.MemorySpace.SMEM),   # bk
            pl.BlockSpec(memory_space=pltpu.MemorySpace.SMEM),   # wv
            pl.BlockSpec(memory_space=pltpu.MemorySpace.SMEM),   # bv
            pl.BlockSpec(memory_space=pltpu.MemorySpace.VMEM),   # keep
        ],
        out_specs=pl.BlockSpec(memory_space=pltpu.MemorySpace.VMEM),
    )(x1p, x2p, wq_s, bq_s, wk, bk, wv, bv, keep)

    return out.reshape(n, cout, hp, wp)


if __name__ == "__main__":
    key = jax.random.PRNGKey(0)
    ks = jax.random.split(key, 9)

    B, Cin, H, W = 1, 3, 16, 16   # small spatial size (module used 64)
    Cout = 8

    x1 = jax.random.normal(ks[0], (B, Cin, H, W), jnp.float32)
    x2 = jax.random.normal(ks[1], (B, Cin, H, W), jnp.float32)

    # Deterministic "conv" parameters (weights are (C_out, C_in) for the 1x1 conv).
    wq = jax.random.normal(ks[2], (Cout, Cin), jnp.float32) * 0.2
    bq = jax.random.normal(ks[3], (Cout,), jnp.float32) * 0.1
    wk = jax.random.normal(ks[4], (Cout, Cin), jnp.float32) * 0.2
    bk = jax.random.normal(ks[5], (Cout,), jnp.float32) * 0.1
    wv = jax.random.normal(ks[6], (Cout, Cin), jnp.float32) * 0.2
    bv = jax.random.normal(ks[7], (Cout,), jnp.float32) * 0.1

    fwd = jax.jit(model_forward)
    out = fwd(x1, x2, (wq, bq, wk, bk, wv, bv), ks[8])
    jax.block_until_ready(out)
    assert out.shape == (B, Cout, H + 2, W + 2), out.shape
    assert bool(jnp.all(jnp.isfinite(out)))
    print("KERNEL_OK")
</pallas_src>

<mosaic_0001>
module attributes {stable_mosaic.version = 11 : i64} {
  func.func @_fused_kernel(%arg0: memref<3x18x18xf32, #tpu.memory_space<vmem>>, %arg1: memref<3x18x18xf32, #tpu.memory_space<vmem>>, %arg2: memref<8x3xf32, #tpu.memory_space<smem>>, %arg3: memref<8xf32, #tpu.memory_space<smem>>, %arg4: memref<8x3xf32, #tpu.memory_space<smem>>, %arg5: memref<8xf32, #tpu.memory_space<smem>>, %arg6: memref<8x3xf32, #tpu.memory_space<smem>>, %arg7: memref<8xf32, #tpu.memory_space<smem>>, %arg8: memref<8x18x18xf32, #tpu.memory_space<vmem>>, %arg9: memref<8x18x18xf32, #tpu.memory_space<vmem>>) attributes {dimension_semantics = [], scalar_prefetch = 0 : i64, scratch_operands = 0 : i64, tpu.core_type = #tpu.core_type<tc>} {
    %c0 = arith.constant 0 : index
    %c0_0 = arith.constant 0 : index
    %c0_1 = arith.constant 0 : index
    %0 = vector.load %arg0[%c0, %c0_0, %c0_1] : memref<3x18x18xf32, #tpu.memory_space<vmem>>, vector<1x18x18xf32>
    %1 = vector.shape_cast %0 : vector<1x18x18xf32> to vector<18x18xf32>
    %c1 = arith.constant 1 : index
    %c0_2 = arith.constant 0 : index
    %c0_3 = arith.constant 0 : index
    %2 = vector.load %arg0[%c1, %c0_2, %c0_3] : memref<3x18x18xf32, #tpu.memory_space<vmem>>, vector<1x18x18xf32>
    %3 = vector.shape_cast %2 : vector<1x18x18xf32> to vector<18x18xf32>
    %c2 = arith.constant 2 : index
    %c0_4 = arith.constant 0 : index
    %c0_5 = arith.constant 0 : index
    %4 = vector.load %arg0[%c2, %c0_4, %c0_5] : memref<3x18x18xf32, #tpu.memory_space<vmem>>, vector<1x18x18xf32>
    %5 = vector.shape_cast %4 : vector<1x18x18xf32> to vector<18x18xf32>
    %c0_6 = arith.constant 0 : index
    %c0_7 = arith.constant 0 : index
    %c0_8 = arith.constant 0 : index
    %6 = vector.load %arg1[%c0_6, %c0_7, %c0_8] : memref<3x18x18xf32, #tpu.memory_space<vmem>>, vector<1x18x18xf32>
    %7 = vector.shape_cast %6 : vector<1x18x18xf32> to vector<18x18xf32>
    %c1_9 = arith.constant 1 : index
    %c0_10 = arith.constant 0 : index
    %c0_11 = arith.constant 0 : index
    %8 = vector.load %arg1[%c1_9, %c0_10, %c0_11] : memref<3x18x18xf32, #tpu.memory_space<vmem>>, vector<1x18x18xf32>
    %9 = vector.shape_cast %8 : vector<1x18x18xf32> to vector<18x18xf32>
    %c2_12 = arith.constant 2 : index
    %c0_13 = arith.constant 0 : index
    %c0_14 = arith.constant 0 : index
    %10 = vector.load %arg1[%c2_12, %c0_13, %c0_14] : memref<3x18x18xf32, #tpu.memory_space<vmem>>, vector<1x18x18xf32>
    %11 = vector.shape_cast %10 : vector<1x18x18xf32> to vector<18x18xf32>
    %c0_15 = arith.constant 0 : index
    %12 = memref.load %arg3[%c0_15] : memref<8xf32, #tpu.memory_space<smem>>
    %c0_16 = arith.constant 0 : index
    %c0_17 = arith.constant 0 : index
    %13 = memref.load %arg2[%c0_16, %c0_17] : memref<8x3xf32, #tpu.memory_space<smem>>
    %14 = vector.broadcast %13 : f32 to vector<18x18xf32>
    %15 = arith.mulf %14, %1 : vector<18x18xf32>
    %16 = vector.broadcast %12 : f32 to vector<18x18xf32>
    %17 = arith.addf %16, %15 : vector<18x18xf32>
    %c0_18 = arith.constant 0 : index
    %c1_19 = arith.constant 1 : index
    %18 = memref.load %arg2[%c0_18, %c1_19] : memref<8x3xf32, #tpu.memory_space<smem>>
    %19 = vector.broadcast %18 : f32 to vector<18x18xf32>
    %20 = arith.mulf %19, %3 : vector<18x18xf32>
    %21 = arith.addf %17, %20 : vector<18x18xf32>
    %c0_20 = arith.constant 0 : index
    %c2_21 = arith.constant 2 : index
    %22 = memref.load %arg2[%c0_20, %c2_21] : memref<8x3xf32, #tpu.memory_space<smem>>
    %23 = vector.broadcast %22 : f32 to vector<18x18xf32>
    %24 = arith.mulf %23, %5 : vector<18x18xf32>
    %25 = arith.addf %21, %24 : vector<18x18xf32>
    %c0_22 = arith.constant 0 : index
    %26 = memref.load %arg5[%c0_22] : memref<8xf32, #tpu.memory_space<smem>>
    %c0_23 = arith.constant 0 : index
    %c0_24 = arith.constant 0 : index
    %27 = memref.load %arg4[%c0_23, %c0_24] : memref<8x3xf32, #tpu.memory_space<smem>>
    %28 = vector.broadcast %27 : f32 to vector<18x18xf32>
    %29 = arith.mulf %28, %7 : vector<18x18xf32>
    %30 = vector.broadcast %26 : f32 to vector<18x18xf32>
    %31 = arith.addf %30, %29 : vector<18x18xf32>
    %c0_25 = arith.constant 0 : index
    %c1_26 = arith.constant 1 : index
    %32 = memref.load %arg4[%c0_25, %c1_26] : memref<8x3xf32, #tpu.memory_space<smem>>
    %33 = vector.broadcast %32 : f32 to vector<18x18xf32>
    %34 = arith.mulf %33, %9 : vector<18x18xf32>
    %35 = arith.addf %31, %34 : vector<18x18xf32>
    %c0_27 = arith.constant 0 : index
    %c2_28 = arith.constant 2 : index
    %36 = memref.load %arg4[%c0_27, %c2_28] : memref<8x3xf32, #tpu.memory_space<smem>>
    %37 = vector.broadcast %36 : f32 to vector<18x18xf32>
    %38 = arith.mulf %37, %11 : vector<18x18xf32>
    %39 = arith.addf %35, %38 : vector<18x18xf32>
    %c0_29 = arith.constant 0 : index
    %40 = memref.load %arg7[%c0_29] : memref<8xf32, #tpu.memory_space<smem>>
    %c0_30 = arith.constant 0 : index
    %c0_31 = arith.constant 0 : index
    %41 = memref.load %arg6[%c0_30, %c0_31] : memref<8x3xf32, #tpu.memory_space<smem>>
    %42 = vector.broadcast %41 : f32 to vector<18x18xf32>
    %43 = arith.mulf %42, %7 : vector<18x18xf32>
    %44 = vector.broadcast %40 : f32 to vector<18x18xf32>
    %45 = arith.addf %44, %43 : vector<18x18xf32>
    %c0_32 = arith.constant 0 : index
    %c1_33 = arith.constant 1 : index
    %46 = memref.load %arg6[%c0_32, %c1_33] : memref<8x3xf32, #tpu.memory_space<smem>>
    %47 = vector.broadcast %46 : f32 to vector<18x18xf32>
    %48 = arith.mulf %47, %9 : vector<18x18xf32>
    %49 = arith.addf %45, %48 : vector<18x18xf32>
    %c0_34 = arith.constant 0 : index
    %c2_35 = arith.constant 2 : index
    %50 = memref.load %arg6[%c0_34, %c2_35] : memref<8x3xf32, #tpu.memory_space<smem>>
    %51 = vector.broadcast %50 : f32 to vector<18x18xf32>
    %52 = arith.mulf %51, %11 : vector<18x18xf32>
    %53 = arith.addf %49, %52 : vector<18x18xf32>
    %cst = arith.constant dense<0.000000e+00> : vector<18x18xf32>
    %54 = tpu.matmul %25, %39, %cst {dimension_numbers = #tpu.dot_dimension_numbers<[1], [1], [0], [0], [0, 0, 1, 0], [], []>} : vector<18x18xf32>, vector<18x18xf32>, vector<18x18xf32> -> vector<18x18xf32>
    %cst_36 = arith.constant dense<0xFF800000> : vector<18xf32>
    %55 = vector.multi_reduction <maximumf>, %54, %cst_36 [1] : vector<18x18xf32> to vector<18xf32>
    %56 = vector.shape_cast %55 : vector<18xf32> to vector<18x1xf32>
    %57 = vector.broadcast %56 : vector<18x1xf32> to vector<18x18xf32>
    %58 = arith.subf %54, %57 : vector<18x18xf32>
    %59 = math.exp %58 : vector<18x18xf32>
    %cst_37 = arith.constant dense<0.000000e+00> : vector<18xf32>
    %60 = vector.multi_reduction <add>, %59, %cst_37 [1] : vector<18x18xf32> to vector<18xf32>
    %61 = vector.shape_cast %60 : vector<18xf32> to vector<18x1xf32>
    %cst_38 = arith.constant 1.000000e+00 : f32
    %62 = vector.broadcast %cst_38 : f32 to vector<18x1xf32>
    %63 = arith.divf %62, %61 : vector<18x1xf32>
    %64 = vector.broadcast %63 : vector<18x1xf32> to vector<18x18xf32>
    %65 = arith.mulf %59, %64 : vector<18x18xf32>
    %c0_39 = arith.constant 0 : index
    %c0_40 = arith.constant 0 : index
    %c0_41 = arith.constant 0 : index
    %66 = vector.load %arg8[%c0_39, %c0_40, %c0_41] : memref<8x18x18xf32, #tpu.memory_space<vmem>>, vector<1x18x18xf32>
    %67 = vector.shape_cast %66 : vector<1x18x18xf32> to vector<18x18xf32>
    %68 = arith.mulf %65, %67 : vector<18x18xf32>
    %cst_42 = arith.constant dense<0.000000e+00> : vector<18x18xf32>
    %69 = tpu.matmul %68, %53, %cst_42 {dimension_numbers = #tpu.dot_dimension_numbers<[1], [0], [0], [1], [0, 0, 1, 1], [], []>} : vector<18x18xf32>, vector<18x18xf32>, vector<18x18xf32> -> vector<18x18xf32>
    %c0_43 = arith.constant 0 : index
    %c0_44 = arith.constant 0 : index
    %c0_45 = arith.constant 0 : index
    %70 = vector.load %arg9[%c0_43, %c0_44, %c0_45] : memref<8x18x18xf32, #tpu.memory_space<vmem>>, vector<1x18x18xf32>
    %71 = vector.shape_cast %70 : vector<1x18x18xf32> to vector<18x18xf32>
    %72 = vector.shape_cast %69 : vector<18x18xf32> to vector<1x18x18xf32>
    tpu.vector_store %arg9[%c0_43, %c0_44, %c0_45], %72 {strides = array<i32>} : memref<8x18x18xf32, #tpu.memory_space<vmem>>, vector<1x18x18xf32>,
    %c1_46 = arith.constant 1 : index
    %73 = memref.load %arg3[%c1_46] : memref<8xf32, #tpu.memory_space<smem>>
    %c1_47 = arith.constant 1 : index
    %c0_48 = arith.constant 0 : index
    %74 = memref.load %arg2[%c1_47, %c0_48] : memref<8x3xf32, #tpu.memory_space<smem>>
    %75 = vector.broadcast %74 : f32 to vector<18x18xf32>
    %76 = arith.mulf %75, %1 : vector<18x18xf32>
    %77 = vector.broadcast %73 : f32 to vector<18x18xf32>
    %78 = arith.addf %77, %76 : vector<18x18xf32>
    %c1_49 = arith.constant 1 : index
    %c1_50 = arith.constant 1 : index
    %79 = memref.load %arg2[%c1_49, %c1_50] : memref<8x3xf32, #tpu.memory_space<smem>>
    %80 = vector.broadcast %79 : f32 to vector<18x18xf32>
    %81 = arith.mulf %80, %3 : vector<18x18xf32>
    %82 = arith.addf %78, %81 : vector<18x18xf32>
    %c1_51 = arith.constant 1 : index
    %c2_52 = arith.constant 2 : index
    %83 = memref.load %arg2[%c1_51, %c2_52] : memref<8x3xf32, #tpu.memory_space<smem>>
    %84 = vector.broadcast %83 : f32 to vector<18x18xf32>
    %85 = arith.mulf %84, %5 : vector<18x18xf32>
    %86 = arith.addf %82, %85 : vector<18x18xf32>
    %c1_53 = arith.constant 1 : index
    %87 = memref.load %arg5[%c1_53] : memref<8xf32, #tpu.memory_space<smem>>
    %c1_54 = arith.constant 1 : index
    %c0_55 = arith.constant 0 : index
    %88 = memref.load %arg4[%c1_54, %c0_55] : memref<8x3xf32, #tpu.memory_space<smem>>
    %89 = vector.broadcast %88 : f32 to vector<18x18xf32>
    %90 = arith.mulf %89, %7 : vector<18x18xf32>
    %91 = vector.broadcast %87 : f32 to vector<18x18xf32>
    %92 = arith.addf %91, %90 : vector<18x18xf32>
    %c1_56 = arith.constant 1 : index
    %c1_57 = arith.constant 1 : index
    %93 = memref.load %arg4[%c1_56, %c1_57] : memref<8x3xf32, #tpu.memory_space<smem>>
    %94 = vector.broadcast %93 : f32 to vector<18x18xf32>
    %95 = arith.mulf %94, %9 : vector<18x18xf32>
    %96 = arith.addf %92, %95 : vector<18x18xf32>
    %c1_58 = arith.constant 1 : index
    %c2_59 = arith.constant 2 : index
    %97 = memref.load %arg4[%c1_58, %c2_59] : memref<8x3xf32, #tpu.memory_space<smem>>
    %98 = vector.broadcast %97 : f32 to vector<18x18xf32>
    %99 = arith.mulf %98, %11 : vector<18x18xf32>
    %100 = arith.addf %96, %99 : vector<18x18xf32>
    %c1_60 = arith.constant 1 : index
    %101 = memref.load %arg7[%c1_60] : memref<8xf32, #tpu.memory_space<smem>>
    %c1_61 = arith.constant 1 : index
    %c0_62 = arith.constant 0 : index
    %102 = memref.load %arg6[%c1_61, %c0_62] : memref<8x3xf32, #tpu.memory_space<smem>>
    %103 = vector.broadcast %102 : f32 to vector<18x18xf32>
    %104 = arith.mulf %103, %7 : vector<18x18xf32>
    %105 = vector.broadcast %101 : f32 to vector<18x18xf32>
    %106 = arith.addf %105, %104 : vector<18x18xf32>
    %c1_63 = arith.constant 1 : index
    %c1_64 = arith.constant 1 : index
    %107 = memref.load %arg6[%c1_63, %c1_64] : memref<8x3xf32, #tpu.memory_space<smem>>
    %108 = vector.broadcast %107 : f32 to vector<18x18xf32>
    %109 = arith.mulf %108, %9 : vector<18x18xf32>
    %110 = arith.addf %106, %109 : vector<18x18xf32>
    %c1_65 = arith.constant 1 : index
    %c2_66 = arith.constant 2 : index
    %111 = memref.load %arg6[%c1_65, %c2_66] : memref<8x3xf32, #tpu.memory_space<smem>>
    %112 = vector.broadcast %111 : f32 to vector<18x18xf32>
    %113 = arith.mulf %112, %11 : vector<18x18xf32>
    %114 = arith.addf %110, %113 : vector<18x18xf32>
    %cst_67 = arith.constant dense<0.000000e+00> : vector<18x18xf32>
    %115 = tpu.matmul %86, %100, %cst_67 {dimension_numbers = #tpu.dot_dimension_numbers<[1], [1], [0], [0], [0, 0, 1, 0], [], []>} : vector<18x18xf32>, vector<18x18xf32>, vector<18x18xf32> -> vector<18x18xf32>
    %cst_68 = arith.constant dense<0xFF800000> : vector<18xf32>
    %116 = vector.multi_reduction <maximumf>, %115, %cst_68 [1] : vector<18x18xf32> to vector<18xf32>
    %117 = vector.shape_cast %116 : vector<18xf32> to vector<18x1xf32>
    %118 = vector.broadcast %117 : vector<18x1xf32> to vector<18x18xf32>
    %119 = arith.subf %115, %118 : vector<18x18xf32>
    %120 = math.exp %119 : vector<18x18xf32>
    %cst_69 = arith.constant dense<0.000000e+00> : vector<18xf32>
    %121 = vector.multi_reduction <add>, %120, %cst_69 [1] : vector<18x18xf32> to vector<18xf32>
    %122 = vector.shape_cast %121 : vector<18xf32> to vector<18x1xf32>
    %cst_70 = arith.constant 1.000000e+00 : f32
    %123 = vector.broadcast %cst_70 : f32 to vector<18x1xf32>
    %124 = arith.divf %123, %122 : vector<18x1xf32>
    %125 = vector.broadcast %124 : vector<18x1xf32> to vector<18x18xf32>
    %126 = arith.mulf %120, %125 : vector<18x18xf32>
    %c1_71 = arith.constant 1 : index
    %c0_72 = arith.constant 0 : index
    %c0_73 = arith.constant 0 : index
    %127 = vector.load %arg8[%c1_71, %c0_72, %c0_73] : memref<8x18x18xf32, #tpu.memory_space<vmem>>, vector<1x18x18xf32>
    %128 = vector.shape_cast %127 : vector<1x18x18xf32> to vector<18x18xf32>
    %129 = arith.mulf %126, %128 : vector<18x18xf32>
    %cst_74 = arith.constant dense<0.000000e+00> : vector<18x18xf32>
    %130 = tpu.matmul %129, %114, %cst_74 {dimension_numbers = #tpu.dot_dimension_numbers<[1], [0], [0], [1], [0, 0, 1, 1], [], []>} : vector<18x18xf32>, vector<18x18xf32>, vector<18x18xf32> -> vector<18x18xf32>
    %c1_75 = arith.constant 1 : index
    %c0_76 = arith.constant 0 : index
    %c0_77 = arith.constant 0 : index
    %131 = vector.load %arg9[%c1_75, %c0_76, %c0_77] : memref<8x18x18xf32, #tpu.memory_space<vmem>>, vector<1x18x18xf32>
    %132 = vector.shape_cast %131 : vector<1x18x18xf32> to vector<18x18xf32>
    %133 = vector.shape_cast %130 : vector<18x18xf32> to vector<1x18x18xf32>
    tpu.vector_store %arg9[%c1_75, %c0_76, %c0_77], %133 {strides = array<i32>} : memref<8x18x18xf32, #tpu.memory_space<vmem>>, vector<1x18x18xf32>,
    %c2_78 = arith.constant 2 : index
    %134 = memref.load %arg3[%c2_78] : memref<8xf32, #tpu.memory_space<smem>>
    %c2_79 = arith.constant 2 : index
    %c0_80 = arith.constant 0 : index
    %135 = memref.load %arg2[%c2_79, %c0_80] : memref<8x3xf32, #tpu.memory_space<smem>>
    %136 = vector.broadcast %135 : f32 to vector<18x18xf32>
    %137 = arith.mulf %136, %1 : vector<18x18xf32>
    %138 = vector.broadcast %134 : f32 to vector<18x18xf32>
    %139 = arith.addf %138, %137 : vector<18x18xf32>
    %c2_81 = arith.constant 2 : index
    %c1_82 = arith.constant 1 : index
    %140 = memref.load %arg2[%c2_81, %c1_82] : memref<8x3xf32, #tpu.memory_space<smem>>
    %141 = vector.broadcast %140 : f32 to vector<18x18xf32>
    %142 = arith.mulf %141, %3 : vector<18x18xf32>
    %143 = arith.addf %139, %142 : vector<18x18xf32>
    %c2_83 = arith.constant 2 : index
    %c2_84 = arith.constant 2 : index
    %144 = memref.load %arg2[%c2_83, %c2_84] : memref<8x3xf32, #tpu.memory_space<smem>>
    %145 = vector.broadcast %144 : f32 to vector<18x18xf32>
    %146 = arith.mulf %145, %5 : vector<18x18xf32>
    %147 = arith.addf %143, %146 : vector<18x18xf32>
    %c2_85 = arith.constant 2 : index
    %148 = memref.load %arg5[%c2_85] : memref<8xf32, #tpu.memory_space<smem>>
    %c2_86 = arith.constant 2 : index
    %c0_87 = arith.constant 0 : index
    %149 = memref.load %arg4[%c2_86, %c0_87] : memref<8x3xf32, #tpu.memory_space<smem>>
    %150 = vector.broadcast %149 : f32 to vector<18x18xf32>
    %151 = arith.mulf %150, %7 : vector<18x18xf32>
    %152 = vector.broadcast %148 : f32 to vector<18x18xf32>
    %153 = arith.addf %152, %151 : vector<18x18xf32>
    %c2_88 = arith.constant 2 : index
    %c1_89 = arith.constant 1 : index
    %154 = memref.load %arg4[%c2_88, %c1_89] : memref<8x3xf32, #tpu.memory_space<smem>>
    %155 = vector.broadcast %154 : f32 to vector<18x18xf32>
    %156 = arith.mulf %155, %9 : vector<18x18xf32>
    %157 = arith.addf %153, %156 : vector<18x18xf32>
    %c2_90 = arith.constant 2 : index
    %c2_91 = arith.constant 2 : index
    %158 = memref.load %arg4[%c2_90, %c2_91] : memref<8x3xf32, #tpu.memory_space<smem>>
    %159 = vector.broadcast %158 : f32 to vector<18x18xf32>
    %160 = arith.mulf %159, %11 : vector<18x18xf32>
    %161 = arith.addf %157, %160 : vector<18x18xf32>
    %c2_92 = arith.constant 2 : index
    %162 = memref.load %arg7[%c2_92] : memref<8xf32, #tpu.memory_space<smem>>
    %c2_93 = arith.constant 2 : index
    %c0_94 = arith.constant 0 : index
    %163 = memref.load %arg6[%c2_93, %c0_94] : memref<8x3xf32, #tpu.memory_space<smem>>
    %164 = vector.broadcast %163 : f32 to vector<18x18xf32>
    %165 = arith.mulf %164, %7 : vector<18x18xf32>
    %166 = vector.broadcast %162 : f32 to vector<18x18xf32>
    %167 = arith.addf %166, %165 : vector<18x18xf32>
    %c2_95 = arith.constant 2 : index
    %c1_96 = arith.constant 1 : index
    %168 = memref.load %arg6[%c2_95, %c1_96] : memref<8x3xf32, #tpu.memory_space<smem>>
    %169 = vector.broadcast %168 : f32 to vector<18x18xf32>
    %170 = arith.mulf %169, %9 : vector<18x18xf32>
    %171 = arith.addf %167, %170 : vector<18x18xf32>
    %c2_97 = arith.constant 2 : index
    %c2_98 = arith.constant 2 : index
    %172 = memref.load %arg6[%c2_97, %c2_98] : memref<8x3xf32, #tpu.memory_space<smem>>
    %173 = vector.broadcast %172 : f32 to vector<18x18xf32>
    %174 = arith.mulf %173, %11 : vector<18x18xf32>
    %175 = arith.addf %171, %174 : vector<18x18xf32>
    %cst_99 = arith.constant dense<0.000000e+00> : vector<18x18xf32>
    %176 = tpu.matmul %147, %161, %cst_99 {dimension_numbers = #tpu.dot_dimension_numbers<[1], [1], [0], [0], [0, 0, 1, 0], [], []>} : vector<18x18xf32>, vector<18x18xf32>, vector<18x18xf32> -> vector<18x18xf32>
    %cst_100 = arith.constant dense<0xFF800000> : vector<18xf32>
    %177 = vector.multi_reduction <maximumf>, %176, %cst_100 [1] : vector<18x18xf32> to vector<18xf32>
    %178 = vector.shape_cast %177 : vector<18xf32> to vector<18x1xf32>
    %179 = vector.broadcast %178 : vector<18x1xf32> to vector<18x18xf32>
    %180 = arith.subf %176, %179 : vector<18x18xf32>
    %181 = math.exp %180 : vector<18x18xf32>
    %cst_101 = arith.constant dense<0.000000e+00> : vector<18xf32>
    %182 = vector.multi_reduction <add>, %181, %cst_101 [1] : vector<18x18xf32> to vector<18xf32>
    %183 = vector.shape_cast %182 : vector<18xf32> to vector<18x1xf32>
    %cst_102 = arith.constant 1.000000e+00 : f32
    %184 = vector.broadcast %cst_102 : f32 to vector<18x1xf32>
    %185 = arith.divf %184, %183 : vector<18x1xf32>
    %186 = vector.broadcast %185 : vector<18x1xf32> to vector<18x18xf32>
    %187 = arith.mulf %181, %186 : vector<18x18xf32>
    %c2_103 = arith.constant 2 : index
    %c0_104 = arith.constant 0 : index
    %c0_105 = arith.constant 0 : index
    %188 = vector.load %arg8[%c2_103, %c0_104, %c0_105] : memref<8x18x18xf32, #tpu.memory_space<vmem>>, vector<1x18x18xf32>
    %189 = vector.shape_cast %188 : vector<1x18x18xf32> to vector<18x18xf32>
    %190 = arith.mulf %187, %189 : vector<18x18xf32>
    %cst_106 = arith.constant dense<0.000000e+00> : vector<18x18xf32>
    %191 = tpu.matmul %190, %175, %cst_106 {dimension_numbers = #tpu.dot_dimension_numbers<[1], [0], [0], [1], [0, 0, 1, 1], [], []>} : vector<18x18xf32>, vector<18x18xf32>, vector<18x18xf32> -> vector<18x18xf32>
    %c2_107 = arith.constant 2 : index
    %c0_108 = arith.constant 0 : index
    %c0_109 = arith.constant 0 : index
    %192 = vector.load %arg9[%c2_107, %c0_108, %c0_109] : memref<8x18x18xf32, #tpu.memory_space<vmem>>, vector<1x18x18xf32>
    %193 = vector.shape_cast %192 : vector<1x18x18xf32> to vector<18x18xf32>
    %194 = vector.shape_cast %191 : vector<18x18xf32> to vector<1x18x18xf32>
    tpu.vector_store %arg9[%c2_107, %c0_108, %c0_109], %194 {strides = array<i32>} : memref<8x18x18xf32, #tpu.memory_space<vmem>>, vector<1x18x18xf32>,
    %c3 = arith.constant 3 : index
    %195 = memref.load %arg3[%c3] : memref<8xf32, #tpu.memory_space<smem>>
    %c3_110 = arith.constant 3 : index
    %c0_111 = arith.constant 0 : index
    %196 = memref.load %arg2[%c3_110, %c0_111] : memref<8x3xf32, #tpu.memory_space<smem>>
    %197 = vector.broadcast %196 : f32 to vector<18x18xf32>
    %198 = arith.mulf %197, %1 : vector<18x18xf32>
    %199 = vector.broadcast %195 : f32 to vector<18x18xf32>
    %200 = arith.addf %199, %198 : vector<18x18xf32>
    %c3_112 = arith.constant 3 : index
    %c1_113 = arith.constant 1 : index
    %201 = memref.load %arg2[%c3_112, %c1_113] : memref<8x3xf32, #tpu.memory_space<smem>>
    %202 = vector.broadcast %201 : f32 to vector<18x18xf32>
    %203 = arith.mulf %202, %3 : vector<18x18xf32>
    %204 = arith.addf %200, %203 : vector<18x18xf32>
    %c3_114 = arith.constant 3 : index
    %c2_115 = arith.constant 2 : index
    %205 = memref.load %arg2[%c3_114, %c2_115] : memref<8x3xf32, #tpu.memory_space<smem>>
    %206 = vector.broadcast %205 : f32 to vector<18x18xf32>
    %207 = arith.mulf %206, %5 : vector<18x18xf32>
    %208 = arith.addf %204, %207 : vector<18x18xf32>
    %c3_116 = arith.constant 3 : index
    %209 = memref.load %arg5[%c3_116] : memref<8xf32, #tpu.memory_space<smem>>
    %c3_117 = arith.constant 3 : index
    %c0_118 = arith.constant 0 : index
    %210 = memref.load %arg4[%c3_117, %c0_118] : memref<8x3xf32, #tpu.memory_space<smem>>
    %211 = vector.broadcast %210 : f32 to vector<18x18xf32>
    %212 = arith.mulf %211, %7 : vector<18x18xf32>
    %213 = vector.broadcast %209 : f32 to vector<18x18xf32>
    %214 = arith.addf %213, %212 : vector<18x18xf32>
    %c3_119 = arith.constant 3 : index
    %c1_120 = arith.constant 1 : index
    %215 = memref.load %arg4[%c3_119, %c1_120] : memref<8x3xf32, #tpu.memory_space<smem>>
    %216 = vector.broadcast %215 : f32 to vector<18x18xf32>
    %217 = arith.mulf %216, %9 : vector<18x18xf32>
    %218 = arith.addf %214, %217 : vector<18x18xf32>
    %c3_121 = arith.constant 3 : index
    %c2_122 = arith.constant 2 : index
    %219 = memref.load %arg4[%c3_121, %c2_122] : memref<8x3xf32, #tpu.memory_space<smem>>
    %220 = vector.broadcast %219 : f32 to vector<18x18xf32>
    %221 = arith.mulf %220, %11 : vector<18x18xf32>
    %222 = arith.addf %218, %221 : vector<18x18xf32>
    %c3_123 = arith.constant 3 : index
    %223 = memref.load %arg7[%c3_123] : memref<8xf32, #tpu.memory_space<smem>>
    %c3_124 = arith.constant 3 : index
    %c0_125 = arith.constant 0 : index
    %224 = memref.load %arg6[%c3_124, %c0_125] : memref<8x3xf32, #tpu.memory_space<smem>>
    %225 = vector.broadcast %224 : f32 to vector<18x18xf32>
    %226 = arith.mulf %225, %7 : vector<18x18xf32>
    %227 = vector.broadcast %223 : f32 to vector<18x18xf32>
    %228 = arith.addf %227, %226 : vector<18x18xf32>
    %c3_126 = arith.constant 3 : index
    %c1_127 = arith.constant 1 : index
    %229 = memref.load %arg6[%c3_126, %c1_127] : memref<8x3xf32, #tpu.memory_space<smem>>
    %230 = vector.broadcast %229 : f32 to vector<18x18xf32>
    %231 = arith.mulf %230, %9 : vector<18x18xf32>
    %232 = arith.addf %228, %231 : vector<18x18xf32>
    %c3_128 = arith.constant 3 : index
    %c2_129 = arith.constant 2 : index
    %233 = memref.load %arg6[%c3_128, %c2_129] : memref<8x3xf32, #tpu.memory_space<smem>>
    %234 = vector.broadcast %233 : f32 to vector<18x18xf32>
    %235 = arith.mulf %234, %11 : vector<18x18xf32>
    %236 = arith.addf %232, %235 : vector<18x18xf32>
    %cst_130 = arith.constant dense<0.000000e+00> : vector<18x18xf32>
    %237 = tpu.matmul %208, %222, %cst_130 {dimension_numbers = #tpu.dot_dimension_numbers<[1], [1], [0], [0], [0, 0, 1, 0], [], []>} : vector<18x18xf32>, vector<18x18xf32>, vector<18x18xf32> -> vector<18x18xf32>
    %cst_131 = arith.constant dense<0xFF800000> : vector<18xf32>
    %238 = vector.multi_reduction <maximumf>, %237, %cst_131 [1] : vector<18x18xf32> to vector<18xf32>
    %239 = vector.shape_cast %238 : vector<18xf32> to vector<18x1xf32>
    %240 = vector.broadcast %239 : vector<18x1xf32> to vector<18x18xf32>
    %241 = arith.subf %237, %240 : vector<18x18xf32>
    %242 = math.exp %241 : vector<18x18xf32>
    %cst_132 = arith.constant dense<0.000000e+00> : vector<18xf32>
    %243 = vector.multi_reduction <add>, %242, %cst_132 [1] : vector<18x18xf32> to vector<18xf32>
    %244 = vector.shape_cast %243 : vector<18xf32> to vector<18x1xf32>
    %cst_133 = arith.constant 1.000000e+00 : f32
    %245 = vector.broadcast %cst_133 : f32 to vector<18x1xf32>
    %246 = arith.divf %245, %244 : vector<18x1xf32>
    %247 = vector.broadcast %246 : vector<18x1xf32> to vector<18x18xf32>
    %248 = arith.mulf %242, %247 : vector<18x18xf32>
    %c3_134 = arith.constant 3 : index
    %c0_135 = arith.constant 0 : index
    %c0_136 = arith.constant 0 : index
    %249 = vector.load %arg8[%c3_134, %c0_135, %c0_136] : memref<8x18x18xf32, #tpu.memory_space<vmem>>, vector<1x18x18xf32>
    %250 = vector.shape_cast %249 : vector<1x18x18xf32> to vector<18x18xf32>
    %251 = arith.mulf %248, %250 : vector<18x18xf32>
    %cst_137 = arith.constant dense<0.000000e+00> : vector<18x18xf32>
    %252 = tpu.matmul %251, %236, %cst_137 {dimension_numbers = #tpu.dot_dimension_numbers<[1], [0], [0], [1], [0, 0, 1, 1], [], []>} : vector<18x18xf32>, vector<18x18xf32>, vector<18x18xf32> -> vector<18x18xf32>
    %c3_138 = arith.constant 3 : index
    %c0_139 = arith.constant 0 : index
    %c0_140 = arith.constant 0 : index
    %253 = vector.load %arg9[%c3_138, %c0_139, %c0_140] : memref<8x18x18xf32, #tpu.memory_space<vmem>>, vector<1x18x18xf32>
    %254 = vector.shape_cast %253 : vector<1x18x18xf32> to vector<18x18xf32>
    %255 = vector.shape_cast %252 : vector<18x18xf32> to vector<1x18x18xf32>
    tpu.vector_store %arg9[%c3_138, %c0_139, %c0_140], %255 {strides = array<i32>} : memref<8x18x18xf32, #tpu.memory_space<vmem>>, vector<1x18x18xf32>,
    %c4 = arith.constant 4 : index
    %256 = memref.load %arg3[%c4] : memref<8xf32, #tpu.memory_space<smem>>
    %c4_141 = arith.constant 4 : index
    %c0_142 = arith.constant 0 : index
    %257 = memref.load %arg2[%c4_141, %c0_142] : memref<8x3xf32, #tpu.memory_space<smem>>
    %258 = vector.broadcast %257 : f32 to vector<18x18xf32>
    %259 = arith.mulf %258, %1 : vector<18x18xf32>
    %260 = vector.broadcast %256 : f32 to vector<18x18xf32>
    %261 = arith.addf %260, %259 : vector<18x18xf32>
    %c4_143 = arith.constant 4 : index
    %c1_144 = arith.constant 1 : index
    %262 = memref.load %arg2[%c4_143, %c1_144] : memref<8x3xf32, #tpu.memory_space<smem>>
    %263 = vector.broadcast %262 : f32 to vector<18x18xf32>
    %264 = arith.mulf %263, %3 : vector<18x18xf32>
    %265 = arith.addf %261, %264 : vector<18x18xf32>
    %c4_145 = arith.constant 4 : index
    %c2_146 = arith.constant 2 : index
    %266 = memref.load %arg2[%c4_145, %c2_146] : memref<8x3xf32, #tpu.memory_space<smem>>
    %267 = vector.broadcast %266 : f32 to vector<18x18xf32>
    %268 = arith.mulf %267, %5 : vector<18x18xf32>
    %269 = arith.addf %265, %268 : vector<18x18xf32>
    %c4_147 = arith.constant 4 : index
    %270 = memref.load %arg5[%c4_147] : memref<8xf32, #tpu.memory_space<smem>>
    %c4_148 = arith.constant 4 : index
    %c0_149 = arith.constant 0 : index
    %271 = memref.load %arg4[%c4_148, %c0_149] : memref<8x3xf32, #tpu.memory_space<smem>>
    %272 = vector.broadcast %271 : f32 to vector<18x18xf32>
    %273 = arith.mulf %272, %7 : vector<18x18xf32>
    %274 = vector.broadcast %270 : f32 to vector<18x18xf32>
    %275 = arith.addf %274, %273 : vector<18x18xf32>
    %c4_150 = arith.constant 4 : index
    %c1_151 = arith.constant 1 : index
    %276 = memref.load %arg4[%c4_150, %c1_151] : memref<8x3xf32, #tpu.memory_space<smem>>
    %277 = vector.broadcast %276 : f32 to vector<18x18xf32>
    %278 = arith.mulf %277, %9 : vector<18x18xf32>
    %279 = arith.addf %275, %278 : vector<18x18xf32>
    %c4_152 = arith.constant 4 : index
    %c2_153 = arith.constant 2 : index
    %280 = memref.load %arg4[%c4_152, %c2_153] : memref<8x3xf32, #tpu.memory_space<smem>>
    %281 = vector.broadcast %280 : f32 to vector<18x18xf32>
    %282 = arith.mulf %281, %11 : vector<18x18xf32>
    %283 = arith.addf %279, %282 : vector<18x18xf32>
    %c4_154 = arith.constant 4 : index
    %284 = memref.load %arg7[%c4_154] : memref<8xf32, #tpu.memory_space<smem>>
    %c4_155 = arith.constant 4 : index
    %c0_156 = arith.constant 0 : index
    %285 = memref.load %arg6[%c4_155, %c0_156] : memref<8x3xf32, #tpu.memory_space<smem>>
    %286 = vector.broadcast %285 : f32 to vector<18x18xf32>
    %287 = arith.mulf %286, %7 : vector<18x18xf32>
    %288 = vector.broadcast %284 : f32 to vector<18x18xf32>
    %289 = arith.addf %288, %287 : vector<18x18xf32>
    %c4_157 = arith.constant 4 : index
    %c1_158 = arith.constant 1 : index
    %290 = memref.load %arg6[%c4_157, %c1_158] : memref<8x3xf32, #tpu.memory_space<smem>>
    %291 = vector.broadcast %290 : f32 to vector<18x18xf32>
    %292 = arith.mulf %291, %9 : vector<18x18xf32>
    %293 = arith.addf %289, %292 : vector<18x18xf32>
    %c4_159 = arith.constant 4 : index
    %c2_160 = arith.constant 2 : index
    %294 = memref.load %arg6[%c4_159, %c2_160] : memref<8x3xf32, #tpu.memory_space<smem>>
    %295 = vector.broadcast %294 : f32 to vector<18x18xf32>
    %296 = arith.mulf %295, %11 : vector<18x18xf32>
    %297 = arith.addf %293, %296 : vector<18x18xf32>
    %cst_161 = arith.constant dense<0.000000e+00> : vector<18x18xf32>
    %298 = tpu.matmul %269, %283, %cst_161 {dimension_numbers = #tpu.dot_dimension_numbers<[1], [1], [0], [0], [0, 0, 1, 0], [], []>} : vector<18x18xf32>, vector<18x18xf32>, vector<18x18xf32> -> vector<18x18xf32>
    %cst_162 = arith.constant dense<0xFF800000> : vector<18xf32>
    %299 = vector.multi_reduction <maximumf>, %298, %cst_162 [1] : vector<18x18xf32> to vector<18xf32>
    %300 = vector.shape_cast %299 : vector<18xf32> to vector<18x1xf32>
    %301 = vector.broadcast %300 : vector<18x1xf32> to vector<18x18xf32>
    %302 = arith.subf %298, %301 : vector<18x18xf32>
    %303 = math.exp %302 : vector<18x18xf32>
    %cst_163 = arith.constant dense<0.000000e+00> : vector<18xf32>
    %304 = vector.multi_reduction <add>, %303, %cst_163 [1] : vector<18x18xf32> to vector<18xf32>
    %305 = vector.shape_cast %304 : vector<18xf32> to vector<18x1xf32>
    %cst_164 = arith.constant 1.000000e+00 : f32
    %306 = vector.broadcast %cst_164 : f32 to vector<18x1xf32>
    %307 = arith.divf %306, %305 : vector<18x1xf32>
    %308 = vector.broadcast %307 : vector<18x1xf32> to vector<18x18xf32>
    %309 = arith.mulf %303, %308 : vector<18x18xf32>
    %c4_165 = arith.constant 4 : index
    %c0_166 = arith.constant 0 : index
    %c0_167 = arith.constant 0 : index
    %310 = vector.load %arg8[%c4_165, %c0_166, %c0_167] : memref<8x18x18xf32, #tpu.memory_space<vmem>>, vector<1x18x18xf32>
    %311 = vector.shape_cast %310 : vector<1x18x18xf32> to vector<18x18xf32>
    %312 = arith.mulf %309, %311 : vector<18x18xf32>
    %cst_168 = arith.constant dense<0.000000e+00> : vector<18x18xf32>
    %313 = tpu.matmul %312, %297, %cst_168 {dimension_numbers = #tpu.dot_dimension_numbers<[1], [0], [0], [1], [0, 0, 1, 1], [], []>} : vector<18x18xf32>, vector<18x18xf32>, vector<18x18xf32> -> vector<18x18xf32>
    %c4_169 = arith.constant 4 : index
    %c0_170 = arith.constant 0 : index
    %c0_171 = arith.constant 0 : index
    %314 = vector.load %arg9[%c4_169, %c0_170, %c0_171] : memref<8x18x18xf32, #tpu.memory_space<vmem>>, vector<1x18x18xf32>
    %315 = vector.shape_cast %314 : vector<1x18x18xf32> to vector<18x18xf32>
    %316 = vector.shape_cast %313 : vector<18x18xf32> to vector<1x18x18xf32>
    tpu.vector_store %arg9[%c4_169, %c0_170, %c0_171], %316 {strides = array<i32>} : memref<8x18x18xf32, #tpu.memory_space<vmem>>, vector<1x18x18xf32>,
    %c5 = arith.constant 5 : index
    %317 = memref.load %arg3[%c5] : memref<8xf32, #tpu.memory_space<smem>>
    %c5_172 = arith.constant 5 : index
    %c0_173 = arith.constant 0 : index
    %318 = memref.load %arg2[%c5_172, %c0_173] : memref<8x3xf32, #tpu.memory_space<smem>>
    %319 = vector.broadcast %318 : f32 to vector<18x18xf32>
    %320 = arith.mulf %319, %1 : vector<18x18xf32>
    %321 = vector.broadcast %317 : f32 to vector<18x18xf32>
    %322 = arith.addf %321, %320 : vector<18x18xf32>
    %c5_174 = arith.constant 5 : index
    %c1_175 = arith.constant 1 : index
    %323 = memref.load %arg2[%c5_174, %c1_175] : memref<8x3xf32, #tpu.memory_space<smem>>
    %324 = vector.broadcast %323 : f32 to vector<18x18xf32>
    %325 = arith.mulf %324, %3 : vector<18x18xf32>
    %326 = arith.addf %322, %325 : vector<18x18xf32>
    %c5_176 = arith.constant 5 : index
    %c2_177 = arith.constant 2 : index
    %327 = memref.load %arg2[%c5_176, %c2_177] : memref<8x3xf32, #tpu.memory_space<smem>>
    %328 = vector.broadcast %327 : f32 to vector<18x18xf32>
    %329 = arith.mulf %328, %5 : vector<18x18xf32>
    %330 = arith.addf %326, %329 : vector<18x18xf32>
    %c5_178 = arith.constant 5 : index
    %331 = memref.load %arg5[%c5_178] : memref<8xf32, #tpu.memory_space<smem>>
    %c5_179 = arith.constant 5 : index
    %c0_180 = arith.constant 0 : index
    %332 = memref.load %arg4[%c5_179, %c0_180] : memref<8x3xf32, #tpu.memory_space<smem>>
    %333 = vector.broadcast %332 : f32 to vector<18x18xf32>
    %334 = arith.mulf %333, %7 : vector<18x18xf32>
    %335 = vector.broadcast %331 : f32 to vector<18x18xf32>
    %336 = arith.addf %335, %334 : vector<18x18xf32>
    %c5_181 = arith.constant 5 : index
    %c1_182 = arith.constant 1 : index
    %337 = memref.load %arg4[%c5_181, %c1_182] : memref<8x3xf32, #tpu.memory_space<smem>>
    %338 = vector.broadcast %337 : f32 to vector<18x18xf32>
    %339 = arith.mulf %338, %9 : vector<18x18xf32>
    %340 = arith.addf %336, %339 : vector<18x18xf32>
    %c5_183 = arith.constant 5 : index
    %c2_184 = arith.constant 2 : index
    %341 = memref.load %arg4[%c5_183, %c2_184] : memref<8x3xf32, #tpu.memory_space<smem>>
    %342 = vector.broadcast %341 : f32 to vector<18x18xf32>
    %343 = arith.mulf %342, %11 : vector<18x18xf32>
    %344 = arith.addf %340, %343 : vector<18x18xf32>
    %c5_185 = arith.constant 5 : index
    %345 = memref.load %arg7[%c5_185] : memref<8xf32, #tpu.memory_space<smem>>
    %c5_186 = arith.constant 5 : index
    %c0_187 = arith.constant 0 : index
    %346 = memref.load %arg6[%c5_186, %c0_187] : memref<8x3xf32, #tpu.memory_space<smem>>
    %347 = vector.broadcast %346 : f32 to vector<18x18xf32>
    %348 = arith.mulf %347, %7 : vector<18x18xf32>
    %349 = vector.broadcast %345 : f32 to vector<18x18xf32>
    %350 = arith.addf %349, %348 : vector<18x18xf32>
    %c5_188 = arith.constant 5 : index
    %c1_189 = arith.constant 1 : index
    %351 = memref.load %arg6[%c5_188, %c1_189] : memref<8x3xf32, #tpu.memory_space<smem>>
    %352 = vector.broadcast %351 : f32 to vector<18x18xf32>
    %353 = arith.mulf %352, %9 : vector<18x18xf32>
    %354 = arith.addf %350, %353 : vector<18x18xf32>
    %c5_190 = arith.constant 5 : index
    %c2_191 = arith.constant 2 : index
    %355 = memref.load %arg6[%c5_190, %c2_191] : memref<8x3xf32, #tpu.memory_space<smem>>
    %356 = vector.broadcast %355 : f32 to vector<18x18xf32>
    %357 = arith.mulf %356, %11 : vector<18x18xf32>
    %358 = arith.addf %354, %357 : vector<18x18xf32>
    %cst_192 = arith.constant dense<0.000000e+00> : vector<18x18xf32>
    %359 = tpu.matmul %330, %344, %cst_192 {dimension_numbers = #tpu.dot_dimension_numbers<[1], [1], [0], [0], [0, 0, 1, 0], [], []>} : vector<18x18xf32>, vector<18x18xf32>, vector<18x18xf32> -> vector<18x18xf32>
    %cst_193 = arith.constant dense<0xFF800000> : vector<18xf32>
    %360 = vector.multi_reduction <maximumf>, %359, %cst_193 [1] : vector<18x18xf32> to vector<18xf32>
    %361 = vector.shape_cast %360 : vector<18xf32> to vector<18x1xf32>
    %362 = vector.broadcast %361 : vector<18x1xf32> to vector<18x18xf32>
    %363 = arith.subf %359, %362 : vector<18x18xf32>
    %364 = math.exp %363 : vector<18x18xf32>
    %cst_194 = arith.constant dense<0.000000e+00> : vector<18xf32>
    %365 = vector.multi_reduction <add>, %364, %cst_194 [1] : vector<18x18xf32> to vector<18xf32>
    %366 = vector.shape_cast %365 : vector<18xf32> to vector<18x1xf32>
    %cst_195 = arith.constant 1.000000e+00 : f32
    %367 = vector.broadcast %cst_195 : f32 to vector<18x1xf32>
    %368 = arith.divf %367, %366 : vector<18x1xf32>
    %369 = vector.broadcast %368 : vector<18x1xf32> to vector<18x18xf32>
    %370 = arith.mulf %364, %369 : vector<18x18xf32>
    %c5_196 = arith.constant 5 : index
    %c0_197 = arith.constant 0 : index
    %c0_198 = arith.constant 0 : index
    %371 = vector.load %arg8[%c5_196, %c0_197, %c0_198] : memref<8x18x18xf32, #tpu.memory_space<vmem>>, vector<1x18x18xf32>
    %372 = vector.shape_cast %371 : vector<1x18x18xf32> to vector<18x18xf32>
    %373 = arith.mulf %370, %372 : vector<18x18xf32>
    %cst_199 = arith.constant dense<0.000000e+00> : vector<18x18xf32>
    %374 = tpu.matmul %373, %358, %cst_199 {dimension_numbers = #tpu.dot_dimension_numbers<[1], [0], [0], [1], [0, 0, 1, 1], [], []>} : vector<18x18xf32>, vector<18x18xf32>, vector<18x18xf32> -> vector<18x18xf32>
    %c5_200 = arith.constant 5 : index
    %c0_201 = arith.constant 0 : index
    %c0_202 = arith.constant 0 : index
    %375 = vector.load %arg9[%c5_200, %c0_201, %c0_202] : memref<8x18x18xf32, #tpu.memory_space<vmem>>, vector<1x18x18xf32>
    %376 = vector.shape_cast %375 : vector<1x18x18xf32> to vector<18x18xf32>
    %377 = vector.shape_cast %374 : vector<18x18xf32> to vector<1x18x18xf32>
    tpu.vector_store %arg9[%c5_200, %c0_201, %c0_202], %377 {strides = array<i32>} : memref<8x18x18xf32, #tpu.memory_space<vmem>>, vector<1x18x18xf32>,
    %c6 = arith.constant 6 : index
    %378 = memref.load %arg3[%c6] : memref<8xf32, #tpu.memory_space<smem>>
    %c6_203 = arith.constant 6 : index
    %c0_204 = arith.constant 0 : index
    %379 = memref.load %arg2[%c6_203, %c0_204] : memref<8x3xf32, #tpu.memory_space<smem>>
    %380 = vector.broadcast %379 : f32 to vector<18x18xf32>
    %381 = arith.mulf %380, %1 : vector<18x18xf32>
    %382 = vector.broadcast %378 : f32 to vector<18x18xf32>
    %383 = arith.addf %382, %381 : vector<18x18xf32>
    %c6_205 = arith.constant 6 : index
    %c1_206 = arith.constant 1 : index
    %384 = memref.load %arg2[%c6_205, %c1_206] : memref<8x3xf32, #tpu.memory_space<smem>>
    %385 = vector.broadcast %384 : f32 to vector<18x18xf32>
    %386 = arith.mulf %385, %3 : vector<18x18xf32>
    %387 = arith.addf %383, %386 : vector<18x18xf32>
    %c6_207 = arith.constant 6 : index
    %c2_208 = arith.constant 2 : index
    %388 = memref.load %arg2[%c6_207, %c2_208] : memref<8x3xf32, #tpu.memory_space<smem>>
    %389 = vector.broadcast %388 : f32 to vector<18x18xf32>
    %390 = arith.mulf %389, %5 : vector<18x18xf32>
    %391 = arith.addf %387, %390 : vector<18x18xf32>
    %c6_209 = arith.constant 6 : index
    %392 = memref.load %arg5[%c6_209] : memref<8xf32, #tpu.memory_space<smem>>
    %c6_210 = arith.constant 6 : index
    %c0_211 = arith.constant 0 : index
    %393 = memref.load %arg4[%c6_210, %c0_211] : memref<8x3xf32, #tpu.memory_space<smem>>
    %394 = vector.broadcast %393 : f32 to vector<18x18xf32>
    %395 = arith.mulf %394, %7 : vector<18x18xf32>
    %396 = vector.broadcast %392 : f32 to vector<18x18xf32>
    %397 = arith.addf %396, %395 : vector<18x18xf32>
    %c6_212 = arith.constant 6 : index
    %c1_213 = arith.constant 1 : index
    %398 = memref.load %arg4[%c6_212, %c1_213] : memref<8x3xf32, #tpu.memory_space<smem>>
    %399 = vector.broadcast %398 : f32 to vector<18x18xf32>
    %400 = arith.mulf %399, %9 : vector<18x18xf32>
    %401 = arith.addf %397, %400 : vector<18x18xf32>
    %c6_214 = arith.constant 6 : index
    %c2_215 = arith.constant 2 : index
    %402 = memref.load %arg4[%c6_214, %c2_215] : memref<8x3xf32, #tpu.memory_space<smem>>
    %403 = vector.broadcast %402 : f32 to vector<18x18xf32>
    %404 = arith.mulf %403, %11 : vector<18x18xf32>
    %405 = arith.addf %401, %404 : vector<18x18xf32>
    %c6_216 = arith.constant 6 : index
    %406 = memref.load %arg7[%c6_216] : memref<8xf32, #tpu.memory_space<smem>>
    %c6_217 = arith.constant 6 : index
    %c0_218 = arith.constant 0 : index
    %407 = memref.load %arg6[%c6_217, %c0_218] : memref<8x3xf32, #tpu.memory_space<smem>>
    %408 = vector.broadcast %407 : f32 to vector<18x18xf32>
    %409 = arith.mulf %408, %7 : vector<18x18xf32>
    %410 = vector.broadcast %406 : f32 to vector<18x18xf32>
    %411 = arith.addf %410, %409 : vector<18x18xf32>
    %c6_219 = arith.constant 6 : index
    %c1_220 = arith.constant 1 : index
    %412 = memref.load %arg6[%c6_219, %c1_220] : memref<8x3xf32, #tpu.memory_space<smem>>
    %413 = vector.broadcast %412 : f32 to vector<18x18xf32>
    %414 = arith.mulf %413, %9 : vector<18x18xf32>
    %415 = arith.addf %411, %414 : vector<18x18xf32>
    %c6_221 = arith.constant 6 : index
    %c2_222 = arith.constant 2 : index
    %416 = memref.load %arg6[%c6_221, %c2_222] : memref<8x3xf32, #tpu.memory_space<smem>>
    %417 = vector.broadcast %416 : f32 to vector<18x18xf32>
    %418 = arith.mulf %417, %11 : vector<18x18xf32>
    %419 = arith.addf %415, %418 : vector<18x18xf32>
    %cst_223 = arith.constant dense<0.000000e+00> : vector<18x18xf32>
    %420 = tpu.matmul %391, %405, %cst_223 {dimension_numbers = #tpu.dot_dimension_numbers<[1], [1], [0], [0], [0, 0, 1, 0], [], []>} : vector<18x18xf32>, vector<18x18xf32>, vector<18x18xf32> -> vector<18x18xf32>
    %cst_224 = arith.constant dense<0xFF800000> : vector<18xf32>
    %421 = vector.multi_reduction <maximumf>, %420, %cst_224 [1] : vector<18x18xf32> to vector<18xf32>
    %422 = vector.shape_cast %421 : vector<18xf32> to vector<18x1xf32>
    %423 = vector.broadcast %422 : vector<18x1xf32> to vector<18x18xf32>
    %424 = arith.subf %420, %423 : vector<18x18xf32>
    %425 = math.exp %424 : vector<18x18xf32>
    %cst_225 = arith.constant dense<0.000000e+00> : vector<18xf32>
    %426 = vector.multi_reduction <add>, %425, %cst_225 [1] : vector<18x18xf32> to vector<18xf32>
    %427 = vector.shape_cast %426 : vector<18xf32> to vector<18x1xf32>
    %cst_226 = arith.constant 1.000000e+00 : f32
    %428 = vector.broadcast %cst_226 : f32 to vector<18x1xf32>
    %429 = arith.divf %428, %427 : vector<18x1xf32>
    %430 = vector.broadcast %429 : vector<18x1xf32> to vector<18x18xf32>
    %431 = arith.mulf %425, %430 : vector<18x18xf32>
    %c6_227 = arith.constant 6 : index
    %c0_228 = arith.constant 0 : index
    %c0_229 = arith.constant 0 : index
    %432 = vector.load %arg8[%c6_227, %c0_228, %c0_229] : memref<8x18x18xf32, #tpu.memory_space<vmem>>, vector<1x18x18xf32>
    %433 = vector.shape_cast %432 : vector<1x18x18xf32> to vector<18x18xf32>
    %434 = arith.mulf %431, %433 : vector<18x18xf32>
    %cst_230 = arith.constant dense<0.000000e+00> : vector<18x18xf32>
    %435 = tpu.matmul %434, %419, %cst_230 {dimension_numbers = #tpu.dot_dimension_numbers<[1], [0], [0], [1], [0, 0, 1, 1], [], []>} : vector<18x18xf32>, vector<18x18xf32>, vector<18x18xf32> -> vector<18x18xf32>
    %c6_231 = arith.constant 6 : index
    %c0_232 = arith.constant 0 : index
    %c0_233 = arith.constant 0 : index
    %436 = vector.load %arg9[%c6_231, %c0_232, %c0_233] : memref<8x18x18xf32, #tpu.memory_space<vmem>>, vector<1x18x18xf32>
    %437 = vector.shape_cast %436 : vector<1x18x18xf32> to vector<18x18xf32>
    %438 = vector.shape_cast %435 : vector<18x18xf32> to vector<1x18x18xf32>
    tpu.vector_store %arg9[%c6_231, %c0_232, %c0_233], %438 {strides = array<i32>} : memref<8x18x18xf32, #tpu.memory_space<vmem>>, vector<1x18x18xf32>,
    %c7 = arith.constant 7 : index
    %439 = memref.load %arg3[%c7] : memref<8xf32, #tpu.memory_space<smem>>
    %c7_234 = arith.constant 7 : index
    %c0_235 = arith.constant 0 : index
    %440 = memref.load %arg2[%c7_234, %c0_235] : memref<8x3xf32, #tpu.memory_space<smem>>
    %441 = vector.broadcast %440 : f32 to vector<18x18xf32>
    %442 = arith.mulf %441, %1 : vector<18x18xf32>
    %443 = vector.broadcast %439 : f32 to vector<18x18xf32>
    %444 = arith.addf %443, %442 : vector<18x18xf32>
    %c7_236 = arith.constant 7 : index
    %c1_237 = arith.constant 1 : index
    %445 = memref.load %arg2[%c7_236, %c1_237] : memref<8x3xf32, #tpu.memory_space<smem>>
    %446 = vector.broadcast %445 : f32 to vector<18x18xf32>
    %447 = arith.mulf %446, %3 : vector<18x18xf32>
    %448 = arith.addf %444, %447 : vector<18x18xf32>
    %c7_238 = arith.constant 7 : index
    %c2_239 = arith.constant 2 : index
    %449 = memref.load %arg2[%c7_238, %c2_239] : memref<8x3xf32, #tpu.memory_space<smem>>
    %450 = vector.broadcast %449 : f32 to vector<18x18xf32>
    %451 = arith.mulf %450, %5 : vector<18x18xf32>
    %452 = arith.addf %448, %451 : vector<18x18xf32>
    %c7_240 = arith.constant 7 : index
    %453 = memref.load %arg5[%c7_240] : memref<8xf32, #tpu.memory_space<smem>>
    %c7_241 = arith.constant 7 : index
    %c0_242 = arith.constant 0 : index
    %454 = memref.load %arg4[%c7_241, %c0_242] : memref<8x3xf32, #tpu.memory_space<smem>>
    %455 = vector.broadcast %454 : f32 to vector<18x18xf32>
    %456 = arith.mulf %455, %7 : vector<18x18xf32>
    %457 = vector.broadcast %453 : f32 to vector<18x18xf32>
    %458 = arith.addf %457, %456 : vector<18x18xf32>
    %c7_243 = arith.constant 7 : index
    %c1_244 = arith.constant 1 : index
    %459 = memref.load %arg4[%c7_243, %c1_244] : memref<8x3xf32, #tpu.memory_space<smem>>
    %460 = vector.broadcast %459 : f32 to vector<18x18xf32>
    %461 = arith.mulf %460, %9 : vector<18x18xf32>
    %462 = arith.addf %458, %461 : vector<18x18xf32>
    %c7_245 = arith.constant 7 : index
    %c2_246 = arith.constant 2 : index
    %463 = memref.load %arg4[%c7_245, %c2_246] : memref<8x3xf32, #tpu.memory_space<smem>>
    %464 = vector.broadcast %463 : f32 to vector<18x18xf32>
    %465 = arith.mulf %464, %11 : vector<18x18xf32>
    %466 = arith.addf %462, %465 : vector<18x18xf32>
    %c7_247 = arith.constant 7 : index
    %467 = memref.load %arg7[%c7_247] : memref<8xf32, #tpu.memory_space<smem>>
    %c7_248 = arith.constant 7 : index
    %c0_249 = arith.constant 0 : index
    %468 = memref.load %arg6[%c7_248, %c0_249] : memref<8x3xf32, #tpu.memory_space<smem>>
    %469 = vector.broadcast %468 : f32 to vector<18x18xf32>
    %470 = arith.mulf %469, %7 : vector<18x18xf32>
    %471 = vector.broadcast %467 : f32 to vector<18x18xf32>
    %472 = arith.addf %471, %470 : vector<18x18xf32>
    %c7_250 = arith.constant 7 : index
    %c1_251 = arith.constant 1 : index
    %473 = memref.load %arg6[%c7_250, %c1_251] : memref<8x3xf32, #tpu.memory_space<smem>>
    %474 = vector.broadcast %473 : f32 to vector<18x18xf32>
    %475 = arith.mulf %474, %9 : vector<18x18xf32>
    %476 = arith.addf %472, %475 : vector<18x18xf32>
    %c7_252 = arith.constant 7 : index
    %c2_253 = arith.constant 2 : index
    %477 = memref.load %arg6[%c7_252, %c2_253] : memref<8x3xf32, #tpu.memory_space<smem>>
    %478 = vector.broadcast %477 : f32 to vector<18x18xf32>
    %479 = arith.mulf %478, %11 : vector<18x18xf32>
    %480 = arith.addf %476, %479 : vector<18x18xf32>
    %cst_254 = arith.constant dense<0.000000e+00> : vector<18x18xf32>
    %481 = tpu.matmul %452, %466, %cst_254 {dimension_numbers = #tpu.dot_dimension_numbers<[1], [1], [0], [0], [0, 0, 1, 0], [], []>} : vector<18x18xf32>, vector<18x18xf32>, vector<18x18xf32> -> vector<18x18xf32>
    %cst_255 = arith.constant dense<0xFF800000> : vector<18xf32>
    %482 = vector.multi_reduction <maximumf>, %481, %cst_255 [1] : vector<18x18xf32> to vector<18xf32>
    %483 = vector.shape_cast %482 : vector<18xf32> to vector<18x1xf32>
    %484 = vector.broadcast %483 : vector<18x1xf32> to vector<18x18xf32>
    %485 = arith.subf %481, %484 : vector<18x18xf32>
    %486 = math.exp %485 : vector<18x18xf32>
    %cst_256 = arith.constant dense<0.000000e+00> : vector<18xf32>
    %487 = vector.multi_reduction <add>, %486, %cst_256 [1] : vector<18x18xf32> to vector<18xf32>
    %488 = vector.shape_cast %487 : vector<18xf32> to vector<18x1xf32>
    %cst_257 = arith.constant 1.000000e+00 : f32
    %489 = vector.broadcast %cst_257 : f32 to vector<18x1xf32>
    %490 = arith.divf %489, %488 : vector<18x1xf32>
    %491 = vector.broadcast %490 : vector<18x1xf32> to vector<18x18xf32>
    %492 = arith.mulf %486, %491 : vector<18x18xf32>
    %c7_258 = arith.constant 7 : index
    %c0_259 = arith.constant 0 : index
    %c0_260 = arith.constant 0 : index
    %493 = vector.load %arg8[%c7_258, %c0_259, %c0_260] : memref<8x18x18xf32, #tpu.memory_space<vmem>>, vector<1x18x18xf32>
    %494 = vector.shape_cast %493 : vector<1x18x18xf32> to vector<18x18xf32>
    %495 = arith.mulf %492, %494 : vector<18x18xf32>
    %cst_261 = arith.constant dense<0.000000e+00> : vector<18x18xf32>
    %496 = tpu.matmul %495, %480, %cst_261 {dimension_numbers = #tpu.dot_dimension_numbers<[1], [0], [0], [1], [0, 0, 1, 1], [], []>} : vector<18x18xf32>, vector<18x18xf32>, vector<18x18xf32> -> vector<18x18xf32>
    %c7_262 = arith.constant 7 : index
    %c0_263 = arith.constant 0 : index
    %c0_264 = arith.constant 0 : index
    %497 = vector.load %arg9[%c7_262, %c0_263, %c0_264] : memref<8x18x18xf32, #tpu.memory_space<vmem>>, vector<1x18x18xf32>
    %498 = vector.shape_cast %497 : vector<1x18x18xf32> to vector<18x18xf32>
    %499 = vector.shape_cast %496 : vector<18x18xf32> to vector<1x18x18xf32>
    tpu.vector_store %arg9[%c7_262, %c0_263, %c0_264], %499 {strides = array<i32>} : memref<8x18x18xf32, #tpu.memory_space<vmem>>, vector<1x18x18xf32>,
    return
  }
}

</mosaic_0001>

<llo_original>
// kernel: model_forward.1
$region0: #{model_forward.1}
  #allocation0 [shape = 'u32[]', space=smem, size = 0x4, offset = 0x4, fixed_abs, tag = 'smem constant byte address 0x4 - core index']
  #allocation1 [shape = 'u32[144,128]{1,0:T(1,128)}', space=vmem, size = 0x12000, scoped, tag = 'internal scratch']
  %s0 = inlined_call_operand.vmem [shape: f32[3,18,18], index: 0, kind: input, shape index: {}]
  %s1 = inlined_call_operand.vmem [shape: f32[3,18,18], index: 1, kind: input, shape index: {}]
  %s2 = inlined_call_operand.vmem [shape: f32[8,3], index: 2, kind: input, shape index: {}]
  %s3 = inlined_call_operand.vmem [shape: f32[8], index: 3, kind: input, shape index: {}]
  %s4 = inlined_call_operand.vmem [shape: f32[8,3], index: 4, kind: input, shape index: {}]
  %s5 = inlined_call_operand.vmem [shape: f32[8], index: 5, kind: input, shape index: {}]
  %s6 = inlined_call_operand.vmem [shape: f32[8,3], index: 6, kind: input, shape index: {}]
  %s7 = inlined_call_operand.vmem [shape: f32[8], index: 7, kind: input, shape index: {}]
  %s8 = inlined_call_operand.vmem [shape: f32[8,18,18], index: 8, kind: input, shape index: {}]
  %s9 = inlined_call_operand.vmem [shape: f32[8,18,18], index: 9, kind: output, shape index: {}]
  %s10 = sld [smem:[#allocation0]]
  $region70: #{model_forward.1} parent=0
    _
  %s12 = ssub.s32 1, %s10
  %s13 = scalar_select 0, %s12, %s10
  $region1: #{model_forward.1} parent=0
    #allocation2 [shape = 'u8[4096]{0}', space=smem, size = 0x1000, scoped, tag = 'input window, operand 2, single buffered']
    #allocation3 [shape = 's32[1]{0}', space=sflag, size = 0x4, scoped, tag = 'scoped memory for model_forward.1']
    #allocation4 [shape = 'u8[512]{0}', space=smem, size = 0x200, scoped, tag = 'input window, operand 3, single buffered']
    #allocation5 [shape = 's32[1]{0}', space=sflag, size = 0x4, scoped, tag = 'scoped memory for model_forward.1']
    #allocation6 [shape = 'u8[4096]{0}', space=smem, size = 0x1000, scoped, tag = 'input window, operand 4, single buffered']
    #allocation7 [shape = 'u8[512]{0}', space=smem, size = 0x200, scoped, tag = 'input window, operand 5, single buffered']
    #allocation8 [shape = 's32[1]{0}', space=sflag, size = 0x4, scoped, tag = 'scoped memory for model_forward.1']
    #allocation9 [shape = 'u8[4096]{0}', space=smem, size = 0x1000, scoped, tag = 'input window, operand 6, single buffered']
    #allocation10 [shape = 'u8[512]{0}', space=smem, size = 0x200, scoped, tag = 'input window, operand 7, single buffered']
    #allocation11 [shape = 's32[1]{0}', space=sflag, size = 0x4, scoped, tag = 'scoped memory for model_forward.1']
    %14 = vsyncpa [#allocation3], 0
    %15 = vsyncpa [#allocation5], 0
    %16 = vsyncpa [#allocation8], 0
    %17 = vsyncpa [#allocation11], 0
    // Predicated region
    $region2: #{model_forward.1} parent=1 // pred_check
      _
    $region3: #{model_forward.1} parent=1 // pred_check_branch
      %19 = sbr.rel (0) target = $region5
    $region4: #{model_forward.1} parent=1 // pred_region
      _
    $region5: #{model_forward.1} parent=1 // pred_fallthru
      _
    // Predicated region
    $region6: #{model_forward.1} parent=1 // pred_check
      _
    $region7: #{model_forward.1} parent=1 // pred_check_branch
      %21 = sbr.rel (0) target = $region9
    $region8: #{model_forward.1} parent=1 // pred_region
      _
    $region9: #{model_forward.1} parent=1 // pred_fallthru
      _
    // Predicated region
    $region10: #{model_forward.1} parent=1 // pred_check
      _
    $region11: #{model_forward.1} parent=1 // pred_check_branch
      %23 = sbr.rel (0) target = $region13
    $region12: #{model_forward.1} parent=1 // pred_region
      %s25 = ssub.s32 128, 128
      %26 = vsyncadd [#allocation3], %s25
      %s28 = sshll.u32 %s2, 4
      %s29 = int_to_ptr.vmem [resolvable:$true] %s28
      %31 = dma.vmem_to_smem %s29, 128, [#allocation2], [#allocation3]
    $region13: #{model_forward.1} parent=1 // pred_fallthru
      _
    // Predicated region
    $region14: #{model_forward.1} parent=1 // pred_check
      _
    $region15: #{model_forward.1} parent=1 // pred_check_branch
      %33 = sbr.rel (0) target = $region17
    $region16: #{model_forward.1} parent=1 // pred_region
      %s35 = ssub.s32 16, 16
      %36 = vsyncadd [#allocation5], %s35
      %s38 = sshll.u32 %s3, 4
      %s39 = int_to_ptr.vmem [resolvable:$true] %s38
      %41 = dma.vmem_to_smem %s39, 16, [#allocation4], [#allocation5]
    $region17: #{model_forward.1} parent=1 // pred_fallthru
      _
    // Predicated region
    $region18: #{model_forward.1} parent=1 // pred_check
      _
    $region19: #{model_forward.1} parent=1 // pred_check_branch
      %43 = sbr.rel (0) target = $region21
    $region20: #{model_forward.1} parent=1 // pred_region
      %s45 = ssub.s32 128, 128
      %46 = vsyncadd [#allocation5], %s45
      %s48 = sshll.u32 %s4, 4
      %s49 = int_to_ptr.vmem [resolvable:$true] %s48
      %51 = dma.vmem_to_smem %s49, 128, [#allocation6], [#allocation5]
    $region21: #{model_forward.1} parent=1 // pred_fallthru
      _
    // Predicated region
    $region22: #{model_forward.1} parent=1 // pred_check
      _
    $region23: #{model_forward.1} parent=1 // pred_check_branch
      %53 = sbr.rel (0) target = $region25
    $region24: #{model_forward.1} parent=1 // pred_region
      %s55 = ssub.s32 16, 16
      %56 = vsyncadd [#allocation8], %s55
      %s58 = sshll.u32 %s5, 4
      %s59 = int_to_ptr.vmem [resolvable:$true] %s58
      %61 = dma.vmem_to_smem %s59, 16, [#allocation7], [#allocation8]
    $region25: #{model_forward.1} parent=1 // pred_fallthru
      _
    // Predicated region
    $region26: #{model_forward.1} parent=1 // pred_check
      _
    $region27: #{model_forward.1} parent=1 // pred_check_branch
      %63 = sbr.rel (0) target = $region29
    $region28: #{model_forward.1} parent=1 // pred_region
      %s65 = ssub.s32 128, 128
      %66 = vsyncadd [#allocation8], %s65
      %s68 = sshll.u32 %s6, 4
      %s69 = int_to_ptr.vmem [resolvable:$true] %s68
      %71 = dma.vmem_to_smem %s69, 128, [#allocation9], [#allocation8]
    $region29: #{model_forward.1} parent=1 // pred_fallthru
      _
    // Predicated region
    $region30: #{model_forward.1} parent=1 // pred_check
      _
    $region31: #{model_forward.1} parent=1 // pred_check_branch
      %73 = sbr.rel (0) target = $region33
    $region32: #{model_forward.1} parent=1 // pred_region
      %s75 = ssub.s32 16, 16
      %76 = vsyncadd [#allocation11], %s75
      %s78 = sshll.u32 %s7, 4
      %s79 = int_to_ptr.vmem [resolvable:$true] %s78
      %81 = dma.vmem_to_smem %s79, 16, [#allocation10], [#allocation11]
    $region33: #{model_forward.1} parent=1 // pred_fallthru
      _
    // Predicated region
    $region34: #{model_forward.1} parent=1 // pred_check
      _
    $region35: #{model_forward.1} parent=1 // pred_check_branch
      %83 = sbr.rel (0) target = $region37
    $region36: #{model_forward.1} parent=1 // pred_region
      _
    $region37: #{model_forward.1} parent=1 // pred_fallthru
      _
    // Predicated region
    $region38: #{model_forward.1} parent=1 // pred_check
      _
    $region39: #{model_forward.1} parent=1 // pred_check_branch
      %85 = sbr.rel (0) target = $region41
    $region40: #{model_forward.1} parent=1 // pred_region
      %86 = dma.done [#allocation3], 128
    $region41: #{model_forward.1} parent=1 // pred_fallthru
      _
    // Predicated region
    $region42: #{model_forward.1} parent=1 // pred_check
      _
    $region43: #{model_forward.1} parent=1 // pred_check_branch
      %88 = sbr.rel (0) target = $region45
    $region44: #{model_forward.1} parent=1 // pred_region
      %89 = dma.done [#allocation5], 16
    $region45: #{model_forward.1} parent=1 // pred_fallthru
      _
    // Predicated region
    $region46: #{model_forward.1} parent=1 // pred_check
      _
    $region47: #{model_forward.1} parent=1 // pred_check_branch
      %91 = sbr.rel (0) target = $region49
    $region48: #{model_forward.1} parent=1 // pred_region
      %92 = dma.done [#allocation5], 128
    $region49: #{model_forward.1} parent=1 // pred_fallthru
      _
    // Predicated region
    $region50: #{model_forward.1} parent=1 // pred_check
      _
    $region51: #{model_forward.1} parent=1 // pred_check_branch
      %94 = sbr.rel (0) target = $region53
    $region52: #{model_forward.1} parent=1 // pred_region
      %95 = dma.done [#allocation8], 16
    $region53: #{model_forward.1} parent=1 // pred_fallthru
      _
    // Predicated region
    $region54: #{model_forward.1} parent=1 // pred_check
      _
    $region55: #{model_forward.1} parent=1 // pred_check_branch
      %97 = sbr.rel (0) target = $region57
    $region56: #{model_forward.1} parent=1 // pred_region
      %98 = dma.done [#allocation8], 128
    $region57: #{model_forward.1} parent=1 // pred_fallthru
      _
    // Predicated region
    $region58: #{model_forward.1} parent=1 // pred_check
      _
    $region59: #{model_forward.1} parent=1 // pred_check_branch
      %100 = sbr.rel (0) target = $region61
    $region60: #{model_forward.1} parent=1 // pred_region
      %101 = dma.done [#allocation11], 16
    $region61: #{model_forward.1} parent=1 // pred_fallthru
      _
    %102 = sfence
    %v103 = vld [vmem:[%s0] sm:$0xff]
    %v104 = vld [vmem:[%s0 + $0x8] sm:$0xff]
    %v105 = vld [vmem:[%s0 + $0x10] sm:$0x3]
    %s106 = scalar_lea.vmem %s0, 24
    %v107 = vld [vmem:[%s106] sm:$0xff]
    %v108 = vld [vmem:[%s106 + $0x8] sm:$0xff]
    %v109 = vld [vmem:[%s106 + $0x10] sm:$0x3]
    %s110 = scalar_lea.vmem %s0, 48
    %v111 = vld [vmem:[%s110] sm:$0xff]
    %v112 = vld [vmem:[%s110 + $0x8] sm:$0xff]
    %v113 = vld [vmem:[%s110 + $0x10] sm:$0x3]
    %v114 = vld [vmem:[%s1] sm:$0xff]
    %v115 = vld [vmem:[%s1 + $0x8] sm:$0xff]
    %v116 = vld [vmem:[%s1 + $0x10] sm:$0x3]
    %s117 = scalar_lea.vmem %s1, 24
    %v118 = vld [vmem:[%s117] sm:$0xff]
    %v119 = vld [vmem:[%s117 + $0x8] sm:$0xff]
    %v120 = vld [vmem:[%s117 + $0x10] sm:$0x3]
    %s121 = scalar_lea.vmem %s1, 48
    %v122 = vld [vmem:[%s121] sm:$0xff]
    %v123 = vld [vmem:[%s121 + $0x8] sm:$0xff]
    %v124 = vld [vmem:[%s121 + $0x10] sm:$0x3]
    %s125 = sld [smem:[#allocation4]]
    %s126 = sld [smem:[#allocation2]]
    %v127 = vstv %s126
    %v128 = vmul.f32 %v127, %v103
    %v129 = vmul.f32 %v127, %v104
    %v130 = vmul.f32 %v127, %v105
    %v131 = vstv %s125
    %v132 = vadd.f32 %v131, %v128
    %v133 = vadd.f32 %v131, %v129
    %v134 = vadd.f32 %v131, %v130
    %s135 = sld [smem:[#allocation2 + $0x1]]
    %v136 = vstv %s135
    %v137 = vmul.f32 %v136, %v107
    %v138 = vmul.f32 %v136, %v108
    %v139 = vmul.f32 %v136, %v109
    %v140 = vadd.f32 %v132, %v137
    %v141 = vadd.f32 %v133, %v138
    %v142 = vadd.f32 %v134, %v139
    %s143 = sld [smem:[#allocation2 + $0x2]]
    %v144 = vstv %s143
    %v145 = vmul.f32 %v144, %v111
    %v146 = vmul.f32 %v144, %v112
    %v147 = vmul.f32 %v144, %v113
    %v148 = vadd.f32 %v140, %v145
    %v149 = vadd.f32 %v141, %v146
    %v150 = vadd.f32 %v142, %v147
    %s151 = sld [smem:[#allocation7]]
    %s152 = sld [smem:[#allocation6]]
    %v153 = vstv %s152
    %v154 = vmul.f32 %v153, %v114
    %v155 = vmul.f32 %v153, %v115
    %v156 = vmul.f32 %v153, %v116
    %v157 = vstv %s151
    %v158 = vadd.f32 %v157, %v154
    %v159 = vadd.f32 %v157, %v155
    %v160 = vadd.f32 %v157, %v156
    %s161 = sld [smem:[#allocation6 + $0x1]]
    %v162 = vstv %s161
    %v163 = vmul.f32 %v162, %v118
    %v164 = vmul.f32 %v162, %v119
    %v165 = vmul.f32 %v162, %v120
    %v166 = vadd.f32 %v158, %v163
    %v167 = vadd.f32 %v159, %v164
    %v168 = vadd.f32 %v160, %v165
    %s169 = sld [smem:[#allocation6 + $0x2]]
    %v170 = vstv %s169
    %v171 = vmul.f32 %v170, %v122
    %v172 = vmul.f32 %v170, %v123
    %v173 = vmul.f32 %v170, %v124
    %v174 = vadd.f32 %v166, %v171
    %v175 = vadd.f32 %v167, %v172
    %v176 = vadd.f32 %v168, %v173
    %s177 = sld [smem:[#allocation10]]
    %s178 = sld [smem:[#allocation9]]
    %v179 = vstv %s178
    %v180 = vmul.f32 %v179, %v114
    %v181 = vmul.f32 %v179, %v115
    %v182 = vmul.f32 %v179, %v116
    %v183 = vstv %s177
    %v184 = vadd.f32 %v183, %v180
    %v185 = vadd.f32 %v183, %v181
    %v186 = vadd.f32 %v183, %v182
    %s187 = sld [smem:[#allocation9 + $0x1]]
    %v188 = vstv %s187
    %v189 = vmul.f32 %v188, %v118
    %v190 = vmul.f32 %v188, %v119
    %v191 = vmul.f32 %v188, %v120
    %v192 = vadd.f32 %v184, %v189
    %v193 = vadd.f32 %v185, %v190
    %v194 = vadd.f32 %v186, %v191
    %s195 = sld [smem:[#allocation9 + $0x2]]
    %v196 = vstv %s195
    %v197 = vmul.f32 %v196, %v122
    %v198 = vmul.f32 %v196, %v123
    %v199 = vmul.f32 %v196, %v124
    %v200 = vadd.f32 %v192, %v197
    %v201 = vadd.f32 %v193, %v198
    %v202 = vadd.f32 %v194, %v199
    %vm203 = vcmask 146432
    %v205 = vsel %vm203, %v148, 0
    %v208 = vsel %vm203, %v149, 0
    %v211 = vsel %vm203, %v150, 0
    %v214 = vsel %vm203, %v174, 0
    %v217 = vsel %vm203, %v175, 0
    %v220 = vsel %vm203, %v176, 0
    %222 = vmatprep.subr.mxu0 0.0
    %223 = vmatpush1.xpose.msra.mxu0 %v214
    %224 = vmatprep.subr.mxu0 0.0
    %225 = vmatpush1.xpose.msra.mxu0 %v217
    %226 = vmatprep.subr.mxu0 0.0
    %227 = vmatpush1.xpose.msra.mxu0 %v220
    %228 = vmatprep.subr.mxu0 0.0
    %229 = vmatpush1.xpose.msra.mxu0 0.0
    %230 = vmatprep.subr.mxu0 0.0
    %231 = vmatpush1.xpose.msra.mxu0 0.0
    %232 = vmatprep.subr.mxu0 0.0
    %233 = vmatpush1.xpose.msra.mxu0 0.0
    %234 = vmatprep.subr.mxu0 0.0
    %235 = vmatpush1.xpose.msra.mxu0 0.0
    %236 = vmatprep.subr.mxu0 0.0
    %237 = vmatpush1.xpose.msra.mxu0 0.0
    %238 = vmatprep.subr.mxu0 0.0
    %239 = vmatpush1.xpose.msra.mxu0 0.0
    %240 = vmatprep.subr.mxu0 0.0
    %241 = vmatpush1.xpose.msra.mxu0 0.0
    %242 = vmatprep.subr.mxu0 0.0
    %243 = vmatpush1.xpose.msra.mxu0 0.0
    %244 = vmatprep.subr.mxu0 0.0
    %245 = vmatpush1.xpose.msra.mxu0 0.0
    %246 = vmatprep.subr.mxu0 0.0
    %247 = vmatpush1.xpose.msra.mxu0 0.0
    %248 = vmatprep.subr.mxu0 0.0
    %249 = vmatpush1.xpose.msra.mxu0 0.0
    %250 = vmatprep.subr.mxu0 0.0
    %251 = vmatpush1.xpose.msra.mxu0 0.0
    %252 = vmatprep.subr.mxu0 0.0
    %253 = vmatpush1.xpose.msra.mxu0 0.0
    %254 = vmatprep.subr.mxu0 0.0
    %255 = vmatpush1.xpose.msra.mxu0 0.0
    %256 = vmatprep.subr.mxu0 0.0
    %257 = vmatpush1.xpose.msra.mxu0 0.0
    %258 = vmatprep.subr.mxu0 0.0
    %259 = vmatpush1.xpose.msra.mxu0 0.0
    %260 = vmatprep.subr.mxu0 0.0
    %261 = vmatpush1.xpose.msra.mxu0 0.0
    %262 = vmatprep.subr.mxu0 0.0
    %263 = vmatpush1.xpose.msra.mxu0 0.0
    %264 = vmatprep.subr.mxu0 0.0
    %265 = vmatpush1.xpose.msra.mxu0 0.0
    %266 = vmatprep.subr.mxu0 0.0
    %267 = vmatpush1.xpose.msra.mxu0 0.0
    %268 = vmatprep.subr.mxu0 0.0
    %269 = vmatpush1.xpose.msra.mxu0 0.0
    %270 = vmatprep.subr.mxu0 0.0
    %271 = vmatpush1.xpose.msra.mxu0 0.0
    %272 = vmatprep.subr.mxu0 0.0
    %273 = vmatpush1.xpose.msra.mxu0 0.0
    %274 = vmatprep.subr.mxu0 0.0
    %275 = vmatpush1.xpose.msra.mxu0 0.0
    %276 = vmatprep.subr.mxu0 0.0
    %277 = vmatpush1.xpose.msra.mxu0 0.0
    %278 = vmatprep.subr.mxu0 0.0
    %279 = vmatpush1.xpose.msra.mxu0 0.0
    %280 = vmatprep.subr.mxu0 0.0
    %281 = vmatpush1.xpose.msra.mxu0 0.0
    %282 = vmatprep.subr.mxu0 0.0
    %283 = vmatpush1.xpose.msra.mxu0 0.0
    %284 = vmatprep.subr.mxu0 0.0
    %285 = vmatpush1.xpose.msra.mxu0 0.0
    %286 = vmatprep.mubr.f32.mxu0 0.0
    %287 = vmatmul.mubr.f32.gmra.mrb[0].mxu0 %v205
    %v288 = vpop.f32.mrb[0].mxu0
    %v289 = vadd.f32 0.0, %v288
    %v290 = vpop.f32.mrb[0].mxu0
    %291 = vmatprep.mubr.f32.mxu0 0.0
    %292 = vmatmul.mubr.f32.gmra.mrb[0].mxu0 %v208
    %v293 = vpop.f32.mrb[0].mxu0
    %v294 = vadd.f32 0.0, %v293
    %v295 = vpop.f32.mrb[0].mxu0
    %296 = vmatprep.mubr.f32.mxu0 0.0
    %297 = vmatmul.mubr.f32.gmra.mrb[0].mxu0 %v211
    %v298 = vpop.f32.mrb[0].mxu0
    %v299 = vadd.f32 0.0, %v298
    %v300 = vpop.f32.mrb[0].mxu0
    %301 = vdwg.mxu0
    %v302 = vsel %vm203, %v289, -inf
    %303 = vmax.xlane.f32.xlu0 %v302
    %v304 = vpop.xlane.xlu0 %303
    %v305 = vsel %vm203, %v294, -inf
    %306 = vmax.xlane.f32.xlu0 %v305
    %v307 = vpop.xlane.xlu0 %306
    %vm308 = vcmask 140288
    %v309 = vsel %vm308, %v299, -inf
    %310 = vmax.xlane.f32.xlu0 %v309
    %v311 = vpop.xlane.xlu0 %310
    %v312 = vsub.f32 %v289, %v304
    %v313 = vsub.f32 %v294, %v307
    %v314 = vsub.f32 %v299, %v311
    %v315 = vmul.f32 %v312, 1.442695
    %v316 = vpow.pop %v315
    %v317 = vmul.f32 %v313, 1.442695
    %v318 = vpow.pop %v317
    %v319 = vmul.f32 %v314, 1.442695
    %v320 = vpow.pop %v319
    %v321 = vsel %vm203, %v316, 0.0
    %322 = vadd.xlane.f32.xlu0 %v321
    %v323 = vpop.xlane.xlu0 %322
    %v324 = vsel %vm203, %v318, 0.0
    %325 = vadd.xlane.f32.xlu0 %v324
    %v326 = vpop.xlane.xlu0 %325
    %v327 = vsel %vm308, %v320, 0.0
    %328 = vadd.xlane.f32.xlu0 %v327
    %v329 = vpop.xlane.xlu0 %328
    %v330 = vrcp.pop %v323
    %v331 = vmul.f32 1.0, %v330
    %v332 = vrcp.pop %v326
    %v333 = vmul.f32 1.0, %v332
    %v334 = vrcp.pop %v329
    %v335 = vmul.f32 1.0, %v334
    %v336 = vmul.f32 %v316, %v331
    %v337 = vmul.f32 %v318, %v333
    %v338 = vmul.f32 %v320, %v335
    %v339 = vld [vmem:[%s8] sm:$0xff]
    %v340 = vld [vmem:[%s8 + $0x8] sm:$0xff]
    %v341 = vld [vmem:[%s8 + $0x10] sm:$0x3]
    %v342 = vmul.f32 %v336, %v339
    %v343 = vmul.f32 %v337, %v340
    %v344 = vmul.f32 %v338, %v341
    %v346 = vsel %vm203, %v342, 0
    %v349 = vsel %vm203, %v343, 0
    %v352 = vsel %vm203, %v344, 0
    %vm354 = vcmask 1041408
    %v356 = vsel %vm354, %v202, 0
    %358 = vmatprep.subr.mxu0 0.0
    %359 = vmatpush1.msra.mxu0 %v200
    %360 = vmatprep.subr.mxu0 0.0
    %361 = vmatpush1.msra.mxu0 %v201
    %362 = vmatprep.subr.mxu0 0.0
    %363 = vmatpush1.msra.mxu0 %v356
    %364 = vmatprep.subr.mxu0 0.0
    %365 = vmatpush1.msra.mxu0 0.0
    %366 = vmatprep.subr.mxu0 0.0
    %367 = vmatpush1.msra.mxu0 0.0
    %368 = vmatprep.subr.mxu0 0.0
    %369 = vmatpush1.msra.mxu0 0.0
    %370 = vmatprep.subr.mxu0 0.0
    %371 = vmatpush1.msra.mxu0 0.0
    %372 = vmatprep.subr.mxu0 0.0
    %373 = vmatpush1.msra.mxu0 0.0
    %374 = vmatprep.subr.mxu0 0.0
    %375 = vmatpush1.msra.mxu0 0.0
    %376 = vmatprep.subr.mxu0 0.0
    %377 = vmatpush1.msra.mxu0 0.0
    %378 = vmatprep.subr.mxu0 0.0
    %379 = vmatpush1.msra.mxu0 0.0
    %380 = vmatprep.subr.mxu0 0.0
    %381 = vmatpush1.msra.mxu0 0.0
    %382 = vmatprep.subr.mxu0 0.0
    %383 = vmatpush1.msra.mxu0 0.0
    %384 = vmatprep.subr.mxu0 0.0
    %385 = vmatpush1.msra.mxu0 0.0
    %386 = vmatprep.subr.mxu0 0.0
    %387 = vmatpush1.msra.mxu0 0.0
    %388 = vmatprep.subr.mxu0 0.0
    %389 = vmatpush1.msra.mxu0 0.0
    %390 = vmatprep.subr.mxu0 0.0
    %391 = vmatpush1.msra.mxu0 0.0
    %392 = vmatprep.subr.mxu0 0.0
    %393 = vmatpush1.msra.mxu0 0.0
    %394 = vmatprep.subr.mxu0 0.0
    %395 = vmatpush1.msra.mxu0 0.0
    %396 = vmatprep.subr.mxu0 0.0
    %397 = vmatpush1.msra.mxu0 0.0
    %398 = vmatprep.subr.mxu0 0.0
    %399 = vmatpush1.msra.mxu0 0.0
    %400 = vmatprep.subr.mxu0 0.0
    %401 = vmatpush1.msra.mxu0 0.0
    %402 = vmatprep.subr.mxu0 0.0
    %403 = vmatpush1.msra.mxu0 0.0
    %404 = vmatprep.subr.mxu0 0.0
    %405 = vmatpush1.msra.mxu0 0.0
    %406 = vmatprep.subr.mxu0 0.0
    %407 = vmatpush1.msra.mxu0 0.0
    %408 = vmatprep.subr.mxu0 0.0
    %409 = vmatpush1.msra.mxu0 0.0
    %410 = vmatprep.subr.mxu0 0.0
    %411 = vmatpush1.msra.mxu0 0.0
    %412 = vmatprep.subr.mxu0 0.0
    %413 = vmatpush1.msra.mxu0 0.0
    %414 = vmatprep.subr.mxu0 0.0
    %415 = vmatpush1.msra.mxu0 0.0
    %416 = vmatprep.subr.mxu0 0.0
    %417 = vmatpush1.msra.mxu0 0.0
    %418 = vmatprep.subr.mxu0 0.0
    %419 = vmatpush1.msra.mxu0 0.0
    %420 = vmatprep.subr.mxu0 0.0
    %421 = vmatpush1.msra.mxu0 0.0
    %422 = vmatprep.mubr.f32.mxu0 0.0
    %423 = vmatmul.mubr.f32.gmra.mrb[0].mxu0 %v346
    %v424 = vpop.f32.mrb[0].mxu0
    %v425 = vadd.f32 0.0, %v424
    %v426 = vpop.f32.mrb[0].mxu0
    %427 = vmatprep.mubr.f32.mxu0 0.0
    %428 = vmatmul.mubr.f32.gmra.mrb[0].mxu0 %v349
    %v429 = vpop.f32.mrb[0].mxu0
    %v430 = vadd.f32 0.0, %v429
    %v431 = vpop.f32.mrb[0].mxu0
    %432 = vmatprep.mubr.f32.mxu0 0.0
    %433 = vmatmul.mubr.f32.gmra.mrb[0].mxu0 %v352
    %v434 = vpop.f32.mrb[0].mxu0
    %v435 = vadd.f32 0.0, %v434
    %v436 = vpop.f32.mrb[0].mxu0
    %437 = vdwg.mxu0
    %438 = vst.msk [vmem:[%s9] sm:$0xff] %vm203, %v425
    %439 = vst.msk [vmem:[%s9 + $0x8] sm:$0xff] %vm203, %v430
    %440 = vst.msk [vmem:[%s9 + $0x10] sm:$0x3] %vm308, %v435
    %s441 = sld [smem:[#allocation4 + $0x1]]
    %s442 = sld [smem:[#allocation2 + $0x80]]
    %v443 = vstv %s442
    %v444 = vmul.f32 %v443, %v103
    %v445 = vmul.f32 %v443, %v104
    %v446 = vmul.f32 %v443, %v105
    %v447 = vstv %s441
    %v448 = vadd.f32 %v447, %v444
    %v449 = vadd.f32 %v447, %v445
    %v450 = vadd.f32 %v447, %v446
    %s451 = sld [smem:[#allocation2 + $0x81]]
    %v452 = vstv %s451
    %v453 = vmul.f32 %v452, %v107
    %v454 = vmul.f32 %v452, %v108
    %v455 = vmul.f32 %v452, %v109
    %v456 = vadd.f32 %v448, %v453
    %v457 = vadd.f32 %v449, %v454
    %v458 = vadd.f32 %v450, %v455
    %s459 = sld [smem:[#allocation2 + $0x82]]
    %v460 = vstv %s459
    %v461 = vmul.f32 %v460, %v111
    %v462 = vmul.f32 %v460, %v112
    %v463 = vmul.f32 %v460, %v113
    %v464 = vadd.f32 %v456, %v461
    %v465 = vadd.f32 %v457, %v462
    %v466 = vadd.f32 %v458, %v463
    %s467 = sld [smem:[#allocation7 + $0x1]]
    %s468 = sld [smem:[#allocation6 + $0x80]]
    %v469 = vstv %s468
    %v470 = vmul.f32 %v469, %v114
    %v471 = vmul.f32 %v469, %v115
    %v472 = vmul.f32 %v469, %v116
    %v473 = vstv %s467
    %v474 = vadd.f32 %v473, %v470
    %v475 = vadd.f32 %v473, %v471
    %v476 = vadd.f32 %v473, %v472
    %s477 = sld [smem:[#allocation6 + $0x81]]
    %v478 = vstv %s477
    %v479 = vmul.f32 %v478, %v118
    %v480 = vmul.f32 %v478, %v119
    %v481 = vmul.f32 %v478, %v120
    %v482 = vadd.f32 %v474, %v479
    %v483 = vadd.f32 %v475, %v480
    %v484 = vadd.f32 %v476, %v481
    %s485 = sld [smem:[#allocation6 + $0x82]]
    %v486 = vstv %s485
    %v487 = vmul.f32 %v486, %v122
    %v488 = vmul.f32 %v486, %v123
    %v489 = vmul.f32 %v486, %v124
    %v490 = vadd.f32 %v482, %v487
    %v491 = vadd.f32 %v483, %v488
    %v492 = vadd.f32 %v484, %v489
    %s493 = sld [smem:[#allocation10 + $0x1]]
    %s494 = sld [smem:[#allocation9 + $0x80]]
    %v495 = vstv %s494
    %v496 = vmul.f32 %v495, %v114
    %v497 = vmul.f32 %v495, %v115
    %v498 = vmul.f32 %v495, %v116
    %v499 = vstv %s493
    %v500 = vadd.f32 %v499, %v496
    %v501 = vadd.f32 %v499, %v497
    %v502 = vadd.f32 %v499, %v498
    %s503 = sld [smem:[#allocation9 + $0x81]]
    %v504 = vstv %s503
    %v505 = vmul.f32 %v504, %v118
    %v506 = vmul.f32 %v504, %v119
    %v507 = vmul.f32 %v504, %v120
    %v508 = vadd.f32 %v500, %v505
    %v509 = vadd.f32 %v501, %v506
    %v510 = vadd.f32 %v502, %v507
    %s511 = sld [smem:[#allocation9 + $0x82]]
    %v512 = vstv %s511
    %v513 = vmul.f32 %v512, %v122
    %v514 = vmul.f32 %v512, %v123
    %v515 = vmul.f32 %v512, %v124
    %v516 = vadd.f32 %v508, %v513
    %v517 = vadd.f32 %v509, %v514
    %v518 = vadd.f32 %v510, %v515
    %v520 = vsel %vm203, %v464, 0
    %v523 = vsel %vm203, %v465, 0
    %v526 = vsel %vm203, %v466, 0
    %v529 = vsel %vm203, %v490, 0
    %v532 = vsel %vm203, %v491, 0
    %v535 = vsel %vm203, %v492, 0
    %537 = vmatprep.subr.mxu0 0.0
    %538 = vmatpush1.xpose.msra.mxu0 %v529
    %539 = vmatprep.subr.mxu0 0.0
    %540 = vmatpush1.xpose.msra.mxu0 %v532
    %541 = vmatprep.subr.mxu0 0.0
    %542 = vmatpush1.xpose.msra.mxu0 %v535
    %543 = vmatprep.subr.mxu0 0.0
    %544 = vmatpush1.xpose.msra.mxu0 0.0
    %545 = vmatprep.subr.mxu0 0.0
    %546 = vmatpush1.xpose.msra.mxu0 0.0
    %547 = vmatprep.subr.mxu0 0.0
    %548 = vmatpush1.xpose.msra.mxu0 0.0
    %549 = vmatprep.subr.mxu0 0.0
    %550 = vmatpush1.xpose.msra.mxu0 0.0
    %551 = vmatprep.subr.mxu0 0.0
    %552 = vmatpush1.xpose.msra.mxu0 0.0
    %553 = vmatprep.subr.mxu0 0.0
    %554 = vmatpush1.xpose.msra.mxu0 0.0
    %555 = vmatprep.subr.mxu0 0.0
    %556 = vmatpush1.xpose.msra.mxu0 0.0
    %557 = vmatprep.subr.mxu0 0.0
    %558 = vmatpush1.xpose.msra.mxu0 0.0
    %559 = vmatprep.subr.mxu0 0.0
    %560 = vmatpush1.xpose.msra.mxu0 0.0
    %561 = vmatprep.subr.mxu0 0.0
    %562 = vmatpush1.xpose.msra.mxu0 0.0
    %563 = vmatprep.subr.mxu0 0.0
    %564 = vmatpush1.xpose.msra.mxu0 0.0
    %565 = vmatprep.subr.mxu0 0.0
    %566 = vmatpush1.xpose.msra.mxu0 0.0
    %567 = vmatprep.subr.mxu0 0.0
    %568 = vmatpush1.xpose.msra.mxu0 0.0
    %569 = vmatprep.subr.mxu0 0.0
    %570 = vmatpush1.xpose.msra.mxu0 0.0
    %571 = vmatprep.subr.mxu0 0.0
    %572 = vmatpush1.xpose.msra.mxu0 0.0
    %573 = vmatprep.subr.mxu0 0.0
    %574 = vmatpush1.xpose.msra.mxu0 0.0
    %575 = vmatprep.subr.mxu0 0.0
    %576 = vmatpush1.xpose.msra.mxu0 0.0
    %577 = vmatprep.subr.mxu0 0.0
    %578 = vmatpush1.xpose.msra.mxu0 0.0
    %579 = vmatprep.subr.mxu0 0.0
    %580 = vmatpush1.xpose.msra.mxu0 0.0
    %581 = vmatprep.subr.mxu0 0.0
    %582 = vmatpush1.xpose.msra.mxu0 0.0
    %583 = vmatprep.subr.mxu0 0.0
    %584 = vmatpush1.xpose.msra.mxu0 0.0
    %585 = vmatprep.subr.mxu0 0.0
    %586 = vmatpush1.xpose.msra.mxu0 0.0
    %587 = vmatprep.subr.mxu0 0.0
    %588 = vmatpush1.xpose.msra.mxu0 0.0
    %589 = vmatprep.subr.mxu0 0.0
    %590 = vmatpush1.xpose.msra.mxu0 0.0
    %591 = vmatprep.subr.mxu0 0.0
    %592 = vmatpush1.xpose.msra.mxu0 0.0
    %593 = vmatprep.subr.mxu0 0.0
    %594 = vmatpush1.xpose.msra.mxu0 0.0
    %595 = vmatprep.subr.mxu0 0.0
    %596 = vmatpush1.xpose.msra.mxu0 0.0
    %597 = vmatprep.subr.mxu0 0.0
    %598 = vmatpush1.xpose.msra.mxu0 0.0
    %599 = vmatprep.subr.mxu0 0.0
    %600 = vmatpush1.xpose.msra.mxu0 0.0
    %601 = vmatprep.mubr.f32.mxu0 0.0
    %602 = vmatmul.mubr.f32.gmra.mrb[0].mxu0 %v520
    %v603 = vpop.f32.mrb[0].mxu0
    %v604 = vadd.f32 0.0, %v603
    %v605 = vpop.f32.mrb[0].mxu0
    %606 = vmatprep.mubr.f32.mxu0 0.0
    %607 = vmatmul.mubr.f32.gmra.mrb[0].mxu0 %v523
    %v608 = vpop.f32.mrb[0].mxu0
    %v609 = vadd.f32 0.0, %v608
    %v610 = vpop.f32.mrb[0].mxu0
    %611 = vmatprep.mubr.f32.mxu0 0.0
    %612 = vmatmul.mubr.f32.gmra.mrb[0].mxu0 %v526
    %v613 = vpop.f32.mrb[0].mxu0
    %v614 = vadd.f32 0.0, %v613
    %v615 = vpop.f32.mrb[0].mxu0
    %616 = vdwg.mxu0
    %v617 = vsel %vm203, %v604, -inf
    %618 = vmax.xlane.f32.xlu0 %v617
    %v619 = vpop.xlane.xlu0 %618
    %v620 = vsel %vm203, %v609, -inf
    %621 = vmax.xlane.f32.xlu0 %v620
    %v622 = vpop.xlane.xlu0 %621
    %v623 = vsel %vm308, %v614, -inf
    %624 = vmax.xlane.f32.xlu0 %v623
    %v625 = vpop.xlane.xlu0 %624
    %v626 = vsub.f32 %v604, %v619
    %v627 = vsub.f32 %v609, %v622
    %v628 = vsub.f32 %v614, %v625
    %v629 = vmul.f32 %v626, 1.442695
    %v630 = vpow.pop %v629
    %v631 = vmul.f32 %v627, 1.442695
    %v632 = vpow.pop %v631
    %v633 = vmul.f32 %v628, 1.442695
    %v634 = vpow.pop %v633
    %v635 = vsel %vm203, %v630, 0.0
    %636 = vadd.xlane.f32.xlu0 %v635
    %v637 = vpop.xlane.xlu0 %636
    %v638 = vsel %vm203, %v632, 0.0
    %639 = vadd.xlane.f32.xlu0 %v638
    %v640 = vpop.xlane.xlu0 %639
    %v641 = vsel %vm308, %v634, 0.0
    %642 = vadd.xlane.f32.xlu0 %v641
    %v643 = vpop.xlane.xlu0 %642
    %v644 = vrcp.pop %v637
    %v645 = vmul.f32 1.0, %v644
    %v646 = vrcp.pop %v640
    %v647 = vmul.f32 1.0, %v646
    %v648 = vrcp.pop %v643
    %v649 = vmul.f32 1.0, %v648
    %v650 = vmul.f32 %v630, %v645
    %v651 = vmul.f32 %v632, %v647
    %v652 = vmul.f32 %v634, %v649
    %s653 = scalar_lea.vmem %s8, 24
    %v654 = vld [vmem:[%s653] sm:$0xff]
    %v655 = vld [vmem:[%s653 + $0x8] sm:$0xff]
    %v656 = vld [vmem:[%s653 + $0x10] sm:$0x3]
    %v657 = vmul.f32 %v650, %v654
    %v658 = vmul.f32 %v651, %v655
    %v659 = vmul.f32 %v652, %v656
    %v661 = vsel %vm203, %v657, 0
    %v664 = vsel %vm203, %v658, 0
    %v667 = vsel %vm203, %v659, 0
    %v670 = vsel %vm354, %v518, 0
    %672 = vmatprep.subr.mxu0 0.0
    %673 = vmatpush1.msra.mxu0 %v516
    %674 = vmatprep.subr.mxu0 0.0
    %675 = vmatpush1.msra.mxu0 %v517
    %676 = vmatprep.subr.mxu0 0.0
    %677 = vmatpush1.msra.mxu0 %v670
    %678 = vmatprep.subr.mxu0 0.0
    %679 = vmatpush1.msra.mxu0 0.0
    %680 = vmatprep.subr.mxu0 0.0
    %681 = vmatpush1.msra.mxu0 0.0
    %682 = vmatprep.subr.mxu0 0.0
    %683 = vmatpush1.msra.mxu0 0.0
    %684 = vmatprep.subr.mxu0 0.0
    %685 = vmatpush1.msra.mxu0 0.0
    %686 = vmatprep.subr.mxu0 0.0
    %687 = vmatpush1.msra.mxu0 0.0
    %688 = vmatprep.subr.mxu0 0.0
    %689 = vmatpush1.msra.mxu0 0.0
    %690 = vmatprep.subr.mxu0 0.0
    %691 = vmatpush1.msra.mxu0 0.0
    %692 = vmatprep.subr.mxu0 0.0
    %693 = vmatpush1.msra.mxu0 0.0
    %694 = vmatprep.subr.mxu0 0.0
    %695 = vmatpush1.msra.mxu0 0.0
    %696 = vmatprep.subr.mxu0 0.0
    %697 = vmatpush1.msra.mxu0 0.0
    %698 = vmatprep.subr.mxu0 0.0
    %699 = vmatpush1.msra.mxu0 0.0
    %700 = vmatprep.subr.mxu0 0.0
    %701 = vmatpush1.msra.mxu0 0.0
    %702 = vmatprep.subr.mxu0 0.0
    %703 = vmatpush1.msra.mxu0 0.0
    %704 = vmatprep.subr.mxu0 0.0
    %705 = vmatpush1.msra.mxu0 0.0
    %706 = vmatprep.subr.mxu0 0.0
    %707 = vmatpush1.msra.mxu0 0.0
    %708 = vmatprep.subr.mxu0 0.0
    %709 = vmatpush1.msra.mxu0 0.0
    %710 = vmatprep.subr.mxu0 0.0
    %711 = vmatpush1.msra.mxu0 0.0
    %712 = vmatprep.subr.mxu0 0.0
    %713 = vmatpush1.msra.mxu0 0.0
    %714 = vmatprep.subr.mxu0 0.0
    %715 = vmatpush1.msra.mxu0 0.0
    %716 = vmatprep.subr.mxu0 0.0
    %717 = vmatpush1.msra.mxu0 0.0
    %718 = vmatprep.subr.mxu0 0.0
    %719 = vmatpush1.msra.mxu0 0.0
    %720 = vmatprep.subr.mxu0 0.0
    %721 = vmatpush1.msra.mxu0 0.0
    %722 = vmatprep.subr.mxu0 0.0
    %723 = vmatpush1.msra.mxu0 0.0
    %724 = vmatprep.subr.mxu0 0.0
    %725 = vmatpush1.msra.mxu0 0.0
    %726 = vmatprep.subr.mxu0 0.0
    %727 = vmatpush1.msra.mxu0 0.0
    %728 = vmatprep.subr.mxu0 0.0
    %729 = vmatpush1.msra.mxu0 0.0
    %730 = vmatprep.subr.mxu0 0.0
    %731 = vmatpush1.msra.mxu0 0.0
    %732 = vmatprep.subr.mxu0 0.0
    %733 = vmatpush1.msra.mxu0 0.0
    %734 = vmatprep.subr.mxu0 0.0
    %735 = vmatpush1.msra.mxu0 0.0
    %736 = vmatprep.mubr.f32.mxu0 0.0
    %737 = vmatmul.mubr.f32.gmra.mrb[0].mxu0 %v661
    %v738 = vpop.f32.mrb[0].mxu0
    %v739 = vadd.f32 0.0, %v738
    %v740 = vpop.f32.mrb[0].mxu0
    %741 = vmatprep.mubr.f32.mxu0 0.0
    %742 = vmatmul.mubr.f32.gmra.mrb[0].mxu0 %v664
    %v743 = vpop.f32.mrb[0].mxu0
    %v744 = vadd.f32 0.0, %v743
    %v745 = vpop.f32.mrb[0].mxu0
    %746 = vmatprep.mubr.f32.mxu0 0.0
    %747 = vmatmul.mubr.f32.gmra.mrb[0].mxu0 %v667
    %v748 = vpop.f32.mrb[0].mxu0
    %v749 = vadd.f32 0.0, %v748
    %v750 = vpop.f32.mrb[0].mxu0
    %751 = vdwg.mxu0
    %s752 = scalar_lea.vmem %s9, 24
    %753 = vst.msk [vmem:[%s752] sm:$0xff] %vm203, %v739
    %754 = vst.msk [vmem:[%s752 + $0x8] sm:$0xff] %vm203, %v744
    %755 = vst.msk [vmem:[%s752 + $0x10] sm:$0x3] %vm308, %v749
    %s756 = sld [smem:[#allocation4 + $0x2]]
    %s757 = sld [smem:[#allocation2 + $0x100]]
    %v758 = vstv %s757
    %v759 = vmul.f32 %v758, %v103
    %v760 = vmul.f32 %v758, %v104
    %v761 = vmul.f32 %v758, %v105
    %v762 = vstv %s756
    %v763 = vadd.f32 %v762, %v759
    %v764 = vadd.f32 %v762, %v760
    %v765 = vadd.f32 %v762, %v761
    %s766 = sld [smem:[#allocation2 + $0x101]]
    %v767 = vstv %s766
    %v768 = vmul.f32 %v767, %v107
    %v769 = vmul.f32 %v767, %v108
    %v770 = vmul.f32 %v767, %v109
    %v771 = vadd.f32 %v763, %v768
    %v772 = vadd.f32 %v764, %v769
    %v773 = vadd.f32 %v765, %v770
    %s774 = sld [smem:[#allocation2 + $0x102]]
    %v775 = vstv %s774
    %v776 = vmul.f32 %v775, %v111
    %v777 = vmul.f32 %v775, %v112
    %v778 = vmul.f32 %v775, %v113
    %v779 = vadd.f32 %v771, %v776
    %v780 = vadd.f32 %v772, %v777
    %v781 = vadd.f32 %v773, %v778
    %s782 = sld [smem:[#allocation7 + $0x2]]
    %s783 = sld [smem:[#allocation6 + $0x100]]
    %v784 = vstv %s783
    %v785 = vmul.f32 %v784, %v114
    %v786 = vmul.f32 %v784, %v115
    %v787 = vmul.f32 %v784, %v116
    %v788 = vstv %s782
    %v789 = vadd.f32 %v788, %v785
    %v790 = vadd.f32 %v788, %v786
    %v791 = vadd.f32 %v788, %v787
    %s792 = sld [smem:[#allocation6 + $0x101]]
    %v793 = vstv %s792
    %v794 = vmul.f32 %v793, %v118
    %v795 = vmul.f32 %v793, %v119
    %v796 = vmul.f32 %v793, %v120
    %v797 = vadd.f32 %v789, %v794
    %v798 = vadd.f32 %v790, %v795
    %v799 = vadd.f32 %v791, %v796
    %s800 = sld [smem:[#allocation6 + $0x102]]
    %v801 = vstv %s800
    %v802 = vmul.f32 %v801, %v122
    %v803 = vmul.f32 %v801, %v123
    %v804 = vmul.f32 %v801, %v124
    %v805 = vadd.f32 %v797, %v802
    %v806 = vadd.f32 %v798, %v803
    %v807 = vadd.f32 %v799, %v804
    %s808 = sld [smem:[#allocation10 + $0x2]]
    %s809 = sld [smem:[#allocation9 + $0x100]]
    %v810 = vstv %s809
    %v811 = vmul.f32 %v810, %v114
    %v812 = vmul.f32 %v810, %v115
    %v813 = vmul.f32 %v810, %v116
    %v814 = vstv %s808
    %v815 = vadd.f32 %v814, %v811
    %v816 = vadd.f32 %v814, %v812
    %v817 = vadd.f32 %v814, %v813
    %s818 = sld [smem:[#allocation9 + $0x101]]
    %v819 = vstv %s818
    %v820 = vmul.f32 %v819, %v118
    %v821 = vmul.f32 %v819, %v119
    %v822 = vmul.f32 %v819, %v120
    %v823 = vadd.f32 %v815, %v820
    %v824 = vadd.f32 %v816, %v821
    %v825 = vadd.f32 %v817, %v822
    %s826 = sld [smem:[#allocation9 + $0x102]]
    %v827 = vstv %s826
    %v828 = vmul.f32 %v827, %v122
    %v829 = vmul.f32 %v827, %v123
    %v830 = vmul.f32 %v827, %v124
    %v831 = vadd.f32 %v823, %v828
    %v832 = vadd.f32 %v824, %v829
    %v833 = vadd.f32 %v825, %v830
    %v835 = vsel %vm203, %v779, 0
    %v838 = vsel %vm203, %v780, 0
    %v841 = vsel %vm203, %v781, 0
    %v844 = vsel %vm203, %v805, 0
    %v847 = vsel %vm203, %v806, 0
    %v850 = vsel %vm203, %v807, 0
    %852 = vmatprep.subr.mxu0 0.0
    %853 = vmatpush1.xpose.msra.mxu0 %v844
    %854 = vmatprep.subr.mxu0 0.0
    %855 = vmatpush1.xpose.msra.mxu0 %v847
    %856 = vmatprep.subr.mxu0 0.0
    %857 = vmatpush1.xpose.msra.mxu0 %v850
    %858 = vmatprep.subr.mxu0 0.0
    %859 = vmatpush1.xpose.msra.mxu0 0.0
    %860 = vmatprep.subr.mxu0 0.0
    %861 = vmatpush1.xpose.msra.mxu0 0.0
    %862 = vmatprep.subr.mxu0 0.0
    %863 = vmatpush1.xpose.msra.mxu0 0.0
    %864 = vmatprep.subr.mxu0 0.0
    %865 = vmatpush1.xpose.msra.mxu0 0.0
    %866 = vmatprep.subr.mxu0 0.0
    %867 = vmatpush1.xpose.msra.mxu0 0.0
    %868 = vmatprep.subr.mxu0 0.0
    %869 = vmatpush1.xpose.msra.mxu0 0.0
    %870 = vmatprep.subr.mxu0 0.0
    %871 = vmatpush1.xpose.msra.mxu0 0.0
    %872 = vmatprep.subr.mxu0 0.0
    %873 = vmatpush1.xpose.msra.mxu0 0.0
    %874 = vmatprep.subr.mxu0 0.0
    %875 = vmatpush1.xpose.msra.mxu0 0.0
    %876 = vmatprep.subr.mxu0 0.0
    %877 = vmatpush1.xpose.msra.mxu0 0.0
    %878 = vmatprep.subr.mxu0 0.0
    %879 = vmatpush1.xpose.msra.mxu0 0.0
    %880 = vmatprep.subr.mxu0 0.0
    %881 = vmatpush1.xpose.msra.mxu0 0.0
    %882 = vmatprep.subr.mxu0 0.0
    %883 = vmatpush1.xpose.msra.mxu0 0.0
    %884 = vmatprep.subr.mxu0 0.0
    %885 = vmatpush1.xpose.msra.mxu0 0.0
    %886 = vmatprep.subr.mxu0 0.0
    %887 = vmatpush1.xpose.msra.mxu0 0.0
    %888 = vmatprep.subr.mxu0 0.0
    %889 = vmatpush1.xpose.msra.mxu0 0.0
    %890 = vmatprep.subr.mxu0 0.0
    %891 = vmatpush1.xpose.msra.mxu0 0.0
    %892 = vmatprep.subr.mxu0 0.0
    %893 = vmatpush1.xpose.msra.mxu0 0.0
    %894 = vmatprep.subr.mxu0 0.0
    %895 = vmatpush1.xpose.msra.mxu0 0.0
    %896 = vmatprep.subr.mxu0 0.0
    %897 = vmatpush1.xpose.msra.mxu0 0.0
    %898 = vmatprep.subr.mxu0 0.0
    %899 = vmatpush1.xpose.msra.mxu0 0.0
    %900 = vmatprep.subr.mxu0 0.0
    %901 = vmatpush1.xpose.msra.mxu0 0.0
    %902 = vmatprep.subr.mxu0 0.0
    %903 = vmatpush1.xpose.msra.mxu0 0.0
    %904 = vmatprep.subr.mxu0 0.0
    %905 = vmatpush1.xpose.msra.mxu0 0.0
    %906 = vmatprep.subr.mxu0 0.0
    %907 = vmatpush1.xpose.msra.mxu0 0.0
    %908 = vmatprep.subr.mxu0 0.0
    %909 = vmatpush1.xpose.msra.mxu0 0.0
    %910 = vmatprep.subr.mxu0 0.0
    %911 = vmatpush1.xpose.msra.mxu0 0.0
    %912 = vmatprep.subr.mxu0 0.0
    %913 = vmatpush1.xpose.msra.mxu0 0.0
    %914 = vmatprep.subr.mxu0 0.0
    %915 = vmatpush1.xpose.msra.mxu0 0.0
    %916 = vmatprep.mubr.f32.mxu0 0.0
    %917 = vmatmul.mubr.f32.gmra.mrb[0].mxu0 %v835
    %v918 = vpop.f32.mrb[0].mxu0
    %v919 = vadd.f32 0.0, %v918
    %v920 = vpop.f32.mrb[0].mxu0
    %921 = vmatprep.mubr.f32.mxu0 0.0
    %922 = vmatmul.mubr.f32.gmra.mrb[0].mxu0 %v838
    %v923 = vpop.f32.mrb[0].mxu0
    %v924 = vadd.f32 0.0, %v923
    %v925 = vpop.f32.mrb[0].mxu0
    %926 = vmatprep.mubr.f32.mxu0 0.0
    %927 = vmatmul.mubr.f32.gmra.mrb[0].mxu0 %v841
    %v928 = vpop.f32.mrb[0].mxu0
    %v929 = vadd.f32 0.0, %v928
    %v930 = vpop.f32.mrb[0].mxu0
    %931 = vdwg.mxu0
    %v932 = vsel %vm203, %v919, -inf
    %933 = vmax.xlane.f32.xlu0 %v932
    %v934 = vpop.xlane.xlu0 %933
    %v935 = vsel %vm203, %v924, -inf
    %936 = vmax.xlane.f32.xlu0 %v935
    %v937 = vpop.xlane.xlu0 %936
    %v938 = vsel %vm308, %v929, -inf
    %939 = vmax.xlane.f32.xlu0 %v938
    %v940 = vpop.xlane.xlu0 %939
    %v941 = vsub.f32 %v919, %v934
    %v942 = vsub.f32 %v924, %v937
    %v943 = vsub.f32 %v929, %v940
    %v944 = vmul.f32 %v941, 1.442695
    %v945 = vpow.pop %v944
    %v946 = vmul.f32 %v942, 1.442695
    %v947 = vpow.pop %v946
    %v948 = vmul.f32 %v943, 1.442695
    %v949 = vpow.pop %v948
    %v950 = vsel %vm203, %v945, 0.0
    %951 = vadd.xlane.f32.xlu0 %v950
    %v952 = vpop.xlane.xlu0 %951
    %v953 = vsel %vm203, %v947, 0.0
    %954 = vadd.xlane.f32.xlu0 %v953
    %v955 = vpop.xlane.xlu0 %954
    %v956 = vsel %vm308, %v949, 0.0
    %957 = vadd.xlane.f32.xlu0 %v956
    %v958 = vpop.xlane.xlu0 %957
    %v959 = vrcp.pop %v952
    %v960 = vmul.f32 1.0, %v959
    %v961 = vrcp.pop %v955
    %v962 = vmul.f32 1.0, %v961
    %v963 = vrcp.pop %v958
    %v964 = vmul.f32 1.0, %v963
    %v965 = vmul.f32 %v945, %v960
    %v966 = vmul.f32 %v947, %v962
    %v967 = vmul.f32 %v949, %v964
    %s968 = scalar_lea.vmem %s8, 48
    %v969 = vld [vmem:[%s968] sm:$0xff]
    %v970 = vld [vmem:[%s968 + $0x8] sm:$0xff]
    %v971 = vld [vmem:[%s968 + $0x10] sm:$0x3]
    %v972 = vmul.f32 %v965, %v969
    %v973 = vmul.f32 %v966, %v970
    %v974 = vmul.f32 %v967, %v971
    %v976 = vsel %vm203, %v972, 0
    %v979 = vsel %vm203, %v973, 0
    %v982 = vsel %vm203, %v974, 0
    %v985 = vsel %vm354, %v833, 0
    %987 = vmatprep.subr.mxu0 0.0
    %988 = vmatpush1.msra.mxu0 %v831
    %989 = vmatprep.subr.mxu0 0.0
    %990 = vmatpush1.msra.mxu0 %v832
    %991 = vmatprep.subr.mxu0 0.0
    %992 = vmatpush1.msra.mxu0 %v985
    %993 = vmatprep.subr.mxu0 0.0
    %994 = vmatpush1.msra.mxu0 0.0
    %995 = vmatprep.subr.mxu0 0.0
    %996 = vmatpush1.msra.mxu0 0.0
    %997 = vmatprep.subr.mxu0 0.0
    %998 = vmatpush1.msra.mxu0 0.0
    %999 = vmatprep.subr.mxu0 0.0
    %1000 = vmatpush1.msra.mxu0 0.0
    %1001 = vmatprep.subr.mxu0 0.0
    %1002 = vmatpush1.msra.mxu0 0.0
    %1003 = vmatprep.subr.mxu0 0.0
    %1004 = vmatpush1.msra.mxu0 0.0
    %1005 = vmatprep.subr.mxu0 0.0
    %1006 = vmatpush1.msra.mxu0 0.0
    %1007 = vmatprep.subr.mxu0 0.0
    %1008 = vmatpush1.msra.mxu0 0.0
    %1009 = vmatprep.subr.mxu0 0.0
    %1010 = vmatpush1.msra.mxu0 0.0
    %1011 = vmatprep.subr.mxu0 0.0
    %1012 = vmatpush1.msra.mxu0 0.0
    %1013 = vmatprep.subr.mxu0 0.0
    %1014 = vmatpush1.msra.mxu0 0.0
    %1015 = vmatprep.subr.mxu0 0.0
    %1016 = vmatpush1.msra.mxu0 0.0
    %1017 = vmatprep.subr.mxu0 0.0
    %1018 = vmatpush1.msra.mxu0 0.0
    %1019 = vmatprep.subr.mxu0 0.0
    %1020 = vmatpush1.msra.mxu0 0.0
    %1021 = vmatprep.subr.mxu0 0.0
    %1022 = vmatpush1.msra.mxu0 0.0
    %1023 = vmatprep.subr.mxu0 0.0
    %1024 = vmatpush1.msra.mxu0 0.0
    %1025 = vmatprep.subr.mxu0 0.0
    %1026 = vmatpush1.msra.mxu0 0.0
    %1027 = vmatprep.subr.mxu0 0.0
    %1028 = vmatpush1.msra.mxu0 0.0
    %1029 = vmatprep.subr.mxu0 0.0
    %1030 = vmatpush1.msra.mxu0 0.0
    %1031 = vmatprep.subr.mxu0 0.0
    %1032 = vmatpush1.msra.mxu0 0.0
    %1033 = vmatprep.subr.mxu0 0.0
    %1034 = vmatpush1.msra.mxu0 0.0
    %1035 = vmatprep.subr.mxu0 0.0
    %1036 = vmatpush1.msra.mxu0 0.0
    %1037 = vmatprep.subr.mxu0 0.0
    %1038 = vmatpush1.msra.mxu0 0.0
    %1039 = vmatprep.subr.mxu0 0.0
    %1040 = vmatpush1.msra.mxu0 0.0
    %1041 = vmatprep.subr.mxu0 0.0
    %1042 = vmatpush1.msra.mxu0 0.0
    %1043 = vmatprep.subr.mxu0 0.0
    %1044 = vmatpush1.msra.mxu0 0.0
    %1045 = vmatprep.subr.mxu0 0.0
    %1046 = vmatpush1.msra.mxu0 0.0
    %1047 = vmatprep.subr.mxu0 0.0
    %1048 = vmatpush1.msra.mxu0 0.0
    %1049 = vmatprep.subr.mxu0 0.0
    %1050 = vmatpush1.msra.mxu0 0.0
    %1051 = vmatprep.mubr.f32.mxu0 0.0
    %1052 = vmatmul.mubr.f32.gmra.mrb[0].mxu0 %v976
    %v1053 = vpop.f32.mrb[0].mxu0
    %v1054 = vadd.f32 0.0, %v1053
    %v1055 = vpop.f32.mrb[0].mxu0
    %1056 = vmatprep.mubr.f32.mxu0 0.0
    %1057 = vmatmul.mubr.f32.gmra.mrb[0].mxu0 %v979
    %v1058 = vpop.f32.mrb[0].mxu0
    %v1059 = vadd.f32 0.0, %v1058
    %v1060 = vpop.f32.mrb[0].mxu0
    %1061 = vmatprep.mubr.f32.mxu0 0.0
    %1062 = vmatmul.mubr.f32.gmra.mrb[0].mxu0 %v982
    %v1063 = vpop.f32.mrb[0].mxu0
    %v1064 = vadd.f32 0.0, %v1063
    %v1065 = vpop.f32.mrb[0].mxu0
    %1066 = vdwg.mxu0
    %s1067 = scalar_lea.vmem %s9, 48
    %1068 = vst.msk [vmem:[%s1067] sm:$0xff] %vm203, %v1054
    %1069 = vst.msk [vmem:[%s1067 + $0x8] sm:$0xff] %vm203, %v1059
    %1070 = vst.msk [vmem:[%s1067 + $0x10] sm:$0x3] %vm308, %v1064
    %s1071 = sld [smem:[#allocation4 + $0x3]]
    %s1072 = sld [smem:[#allocation2 + $0x180]]
    %v1073 = vstv %s1072
    %v1074 = vmul.f32 %v1073, %v103
    %v1075 = vmul.f32 %v1073, %v104
    %v1076 = vmul.f32 %v1073, %v105
    %v1077 = vstv %s1071
    %v1078 = vadd.f32 %v1077, %v1074
    %v1079 = vadd.f32 %v1077, %v1075
    %v1080 = vadd.f32 %v1077, %v1076
    %s1081 = sld [smem:[#allocation2 + $0x181]]
    %v1082 = vstv %s1081
    %v1083 = vmul.f32 %v1082, %v107
    %v1084 = vmul.f32 %v1082, %v108
    %v1085 = vmul.f32 %v1082, %v109
    %v1086 = vadd.f32 %v1078, %v1083
    %v1087 = vadd.f32 %v1079, %v1084
    %v1088 = vadd.f32 %v1080, %v1085
    %s1089 = sld [smem:[#allocation2 + $0x182]]
    %v1090 = vstv %s1089
    %v1091 = vmul.f32 %v1090, %v111
    %v1092 = vmul.f32 %v1090, %v112
    %v1093 = vmul.f32 %v1090, %v113
    %v1094 = vadd.f32 %v1086, %v1091
    %v1095 = vadd.f32 %v1087, %v1092
    %v1096 = vadd.f32 %v1088, %v1093
    %s1097 = sld [smem:[#allocation7 + $0x3]]
    %s1098 = sld [smem:[#allocation6 + $0x180]]
    %v1099 = vstv %s1098
    %v1100 = vmul.f32 %v1099, %v114
    %v1101 = vmul.f32 %v1099, %v115
    %v1102 = vmul.f32 %v1099, %v116
    %v1103 = vstv %s1097
    %v1104 = vadd.f32 %v1103, %v1100
    %v1105 = vadd.f32 %v1103, %v1101
    %v1106 = vadd.f32 %v1103, %v1102
    %s1107 = sld [smem:[#allocation6 + $0x181]]
    %v1108 = vstv %s1107
    %v1109 = vmul.f32 %v1108, %v118
    %v1110 = vmul.f32 %v1108, %v119
    %v1111 = vmul.f32 %v1108, %v120
    %v1112 = vadd.f32 %v1104, %v1109
    %v1113 = vadd.f32 %v1105, %v1110
    %v1114 = vadd.f32 %v1106, %v1111
    %s1115 = sld [smem:[#allocation6 + $0x182]]
    %v1116 = vstv %s1115
    %v1117 = vmul.f32 %v1116, %v122
    %v1118 = vmul.f32 %v1116, %v123
    %v1119 = vmul.f32 %v1116, %v124
    %v1120 = vadd.f32 %v1112, %v1117
    %v1121 = vadd.f32 %v1113, %v1118
    %v1122 = vadd.f32 %v1114, %v1119
    %s1123 = sld [smem:[#allocation10 + $0x3]]
    %s1124 = sld [smem:[#allocation9 + $0x180]]
    %v1125 = vstv %s1124
    %v1126 = vmul.f32 %v1125, %v114
    %v1127 = vmul.f32 %v1125, %v115
    %v1128 = vmul.f32 %v1125, %v116
    %v1129 = vstv %s1123
    %v1130 = vadd.f32 %v1129, %v1126
    %v1131 = vadd.f32 %v1129, %v1127
    %v1132 = vadd.f32 %v1129, %v1128
    %s1133 = sld [smem:[#allocation9 + $0x181]]
    %v1134 = vstv %s1133
    %v1135 = vmul.f32 %v1134, %v118
    %v1136 = vmul.f32 %v1134, %v119
    %v1137 = vmul.f32 %v1134, %v120
    %v1138 = vadd.f32 %v1130, %v1135
    %v1139 = vadd.f32 %v1131, %v1136
    %v1140 = vadd.f32 %v1132, %v1137
    %s1141 = sld [smem:[#allocation9 + $0x182]]
    %v1142 = vstv %s1141
    %v1143 = vmul.f32 %v1142, %v122
    %v1144 = vmul.f32 %v1142, %v123
    %v1145 = vmul.f32 %v1142, %v124
    %v1146 = vadd.f32 %v1138, %v1143
    %v1147 = vadd.f32 %v1139, %v1144
    %v1148 = vadd.f32 %v1140, %v1145
    %v1150 = vsel %vm203, %v1094, 0
    %v1153 = vsel %vm203, %v1095, 0
    %v1156 = vsel %vm203, %v1096, 0
    %v1159 = vsel %vm203, %v1120, 0
    %v1162 = vsel %vm203, %v1121, 0
    %v1165 = vsel %vm203, %v1122, 0
    %1167 = vmatprep.subr.mxu0 0.0
    %1168 = vmatpush1.xpose.msra.mxu0 %v1159
    %1169 = vmatprep.subr.mxu0 0.0
    %1170 = vmatpush1.xpose.msra.mxu0 %v1162
    %1171 = vmatprep.subr.mxu0 0.0
    %1172 = vmatpush1.xpose.msra.mxu0 %v1165
    %1173 = vmatprep.subr.mxu0 0.0
    %1174 = vmatpush1.xpose.msra.mxu0 0.0
    %1175 = vmatprep.subr.mxu0 0.0
    %1176 = vmatpush1.xpose.msra.mxu0 0.0
    %1177 = vmatprep.subr.mxu0 0.0
    %1178 = vmatpush1.xpose.msra.mxu0 0.0
    %1179 = vmatprep.subr.mxu0 0.0
    %1180 = vmatpush1.xpose.msra.mxu0 0.0
    %1181 = vmatprep.subr.mxu0 0.0
    %1182 = vmatpush1.xpose.msra.mxu0 0.0
    %1183 = vmatprep.subr.mxu0 0.0
    %1184 = vmatpush1.xpose.msra.mxu0 0.0
    %1185 = vmatprep.subr.mxu0 0.0
    %1186 = vmatpush1.xpose.msra.mxu0 0.0
    %1187 = vmatprep.subr.mxu0 0.0
    %1188 = vmatpush1.xpose.msra.mxu0 0.0
    %1189 = vmatprep.subr.mxu0 0.0
    %1190 = vmatpush1.xpose.msra.mxu0 0.0
    %1191 = vmatprep.subr.mxu0 0.0
    %1192 = vmatpush1.xpose.msra.mxu0 0.0
    %1193 = vmatprep.subr.mxu0 0.0
    %1194 = vmatpush1.xpose.msra.mxu0 0.0
    %1195 = vmatprep.subr.mxu0 0.0
    %1196 = vmatpush1.xpose.msra.mxu0 0.0
    %1197 = vmatprep.subr.mxu0 0.0
    %1198 = vmatpush1.xpose.msra.mxu0 0.0
    %1199 = vmatprep.subr.mxu0 0.0
    %1200 = vmatpush1.xpose.msra.mxu0 0.0
    %1201 = vmatprep.subr.mxu0 0.0
    %1202 = vmatpush1.xpose.msra.mxu0 0.0
    %1203 = vmatprep.subr.mxu0 0.0
    %1204 = vmatpush1.xpose.msra.mxu0 0.0
    %1205 = vmatprep.subr.mxu0 0.0
    %1206 = vmatpush1.xpose.msra.mxu0 0.0
    %1207 = vmatprep.subr.mxu0 0.0
    %1208 = vmatpush1.xpose.msra.mxu0 0.0
    %1209 = vmatprep.subr.mxu0 0.0
    %1210 = vmatpush1.xpose.msra.mxu0 0.0
    %1211 = vmatprep.subr.mxu0 0.0
    %1212 = vmatpush1.xpose.msra.mxu0 0.0
    %1213 = vmatprep.subr.mxu0 0.0
    %1214 = vmatpush1.xpose.msra.mxu0 0.0
    %1215 = vmatprep.subr.mxu0 0.0
    %1216 = vmatpush1.xpose.msra.mxu0 0.0
    %1217 = vmatprep.subr.mxu0 0.0
    %1218 = vmatpush1.xpose.msra.mxu0 0.0
    %1219 = vmatprep.subr.mxu0 0.0
    %1220 = vmatpush1.xpose.msra.mxu0 0.0
    %1221 = vmatprep.subr.mxu0 0.0
    %1222 = vmatpush1.xpose.msra.mxu0 0.0
    %1223 = vmatprep.subr.mxu0 0.0
    %1224 = vmatpush1.xpose.msra.mxu0 0.0
    %1225 = vmatprep.subr.mxu0 0.0
    %1226 = vmatpush1.xpose.msra.mxu0 0.0
    %1227 = vmatprep.subr.mxu0 0.0
    %1228 = vmatpush1.xpose.msra.mxu0 0.0
    %1229 = vmatprep.subr.mxu0 0.0
    %1230 = vmatpush1.xpose.msra.mxu0 0.0
    %1231 = vmatprep.mubr.f32.mxu0 0.0
    %1232 = vmatmul.mubr.f32.gmra.mrb[0].mxu0 %v1150
    %v1233 = vpop.f32.mrb[0].mxu0
    %v1234 = vadd.f32 0.0, %v1233
    %v1235 = vpop.f32.mrb[0].mxu0
    %1236 = vmatprep.mubr.f32.mxu0 0.0
    %1237 = vmatmul.mubr.f32.gmra.mrb[0].mxu0 %v1153
    %v1238 = vpop.f32.mrb[0].mxu0
    %v1239 = vadd.f32 0.0, %v1238
    %v1240 = vpop.f32.mrb[0].mxu0
    %1241 = vmatprep.mubr.f32.mxu0 0.0
    %1242 = vmatmul.mubr.f32.gmra.mrb[0].mxu0 %v1156
    %v1243 = vpop.f32.mrb[0].mxu0
    %v1244 = vadd.f32 0.0, %v1243
    %v1245 = vpop.f32.mrb[0].mxu0
    %1246 = vdwg.mxu0
    %v1247 = vsel %vm203, %v1234, -inf
    %1248 = vmax.xlane.f32.xlu0 %v1247
    %v1249 = vpop.xlane.xlu0 %1248
    %v1250 = vsel %vm203, %v1239, -inf
    %1251 = vmax.xlane.f32.xlu0 %v1250
    %v1252 = vpop.xlane.xlu0 %1251
    %v1253 = vsel %vm308, %v1244, -inf
    %1254 = vmax.xlane.f32.xlu0 %v1253
    %v1255 = vpop.xlane.xlu0 %1254
    %v1256 = vsub.f32 %v1234, %v1249
    %v1257 = vsub.f32 %v1239, %v1252
    %v1258 = vsub.f32 %v1244, %v1255
    %v1259 = vmul.f32 %v1256, 1.442695
    %v1260 = vpow.pop %v1259
    %v1261 = vmul.f32 %v1257, 1.442695
    %v1262 = vpow.pop %v1261
    %v1263 = vmul.f32 %v1258, 1.442695
    %v1264 = vpow.pop %v1263
    %v1265 = vsel %vm203, %v1260, 0.0
    %1266 = vadd.xlane.f32.xlu0 %v1265
    %v1267 = vpop.xlane.xlu0 %1266
    %v1268 = vsel %vm203, %v1262, 0.0
    %1269 = vadd.xlane.f32.xlu0 %v1268
    %v1270 = vpop.xlane.xlu0 %1269
    %v1271 = vsel %vm308, %v1264, 0.0
    %1272 = vadd.xlane.f32.xlu0 %v1271
    %v1273 = vpop.xlane.xlu0 %1272
    %v1274 = vrcp.pop %v1267
    %v1275 = vmul.f32 1.0, %v1274
    %v1276 = vrcp.pop %v1270
    %v1277 = vmul.f32 1.0, %v1276
    %v1278 = vrcp.pop %v1273
    %v1279 = vmul.f32 1.0, %v1278
    %v1280 = vmul.f32 %v1260, %v1275
    %v1281 = vmul.f32 %v1262, %v1277
    %v1282 = vmul.f32 %v1264, %v1279
    %s1283 = scalar_lea.vmem %s8, 72
    %v1284 = vld [vmem:[%s1283] sm:$0xff]
    %v1285 = vld [vmem:[%s1283 + $0x8] sm:$0xff]
    %v1286 = vld [vmem:[%s1283 + $0x10] sm:$0x3]
    %v1287 = vmul.f32 %v1280, %v1284
    %v1288 = vmul.f32 %v1281, %v1285
    %v1289 = vmul.f32 %v1282, %v1286
    %v1291 = vsel %vm203, %v1287, 0
    %v1294 = vsel %vm203, %v1288, 0
    %v1297 = vsel %vm203, %v1289, 0
    %v1300 = vsel %vm354, %v1148, 0
    %1302 = vmatprep.subr.mxu0 0.0
    %1303 = vmatpush1.msra.mxu0 %v1146
    %1304 = vmatprep.subr.mxu0 0.0
    %1305 = vmatpush1.msra.mxu0 %v1147
    %1306 = vmatprep.subr.mxu0 0.0
    %1307 = vmatpush1.msra.mxu0 %v1300
    %1308 = vmatprep.subr.mxu0 0.0
    %1309 = vmatpush1.msra.mxu0 0.0
    %1310 = vmatprep.subr.mxu0 0.0
    %1311 = vmatpush1.msra.mxu0 0.0
    %1312 = vmatprep.subr.mxu0 0.0
    %1313 = vmatpush1.msra.mxu0 0.0
    %1314 = vmatprep.subr.mxu0 0.0
    %1315 = vmatpush1.msra.mxu0 0.0
    %1316 = vmatprep.subr.mxu0 0.0
    %1317 = vmatpush1.msra.mxu0 0.0
    %1318 = vmatprep.subr.mxu0 0.0
    %1319 = vmatpush1.msra.mxu0 0.0
    %1320 = vmatprep.subr.mxu0 0.0
    %1321 = vmatpush1.msra.mxu0 0.0
    %1322 = vmatprep.subr.mxu0 0.0
    %1323 = vmatpush1.msra.mxu0 0.0
    %1324 = vmatprep.subr.mxu0 0.0
    %1325 = vmatpush1.msra.mxu0 0.0
    %1326 = vmatprep.subr.mxu0 0.0
    %1327 = vmatpush1.msra.mxu0 0.0
    %1328 = vmatprep.subr.mxu0 0.0
    %1329 = vmatpush1.msra.mxu0 0.0
    %1330 = vmatprep.subr.mxu0 0.0
    %1331 = vmatpush1.msra.mxu0 0.0
    %1332 = vmatprep.subr.mxu0 0.0
    %1333 = vmatpush1.msra.mxu0 0.0
    %1334 = vmatprep.subr.mxu0 0.0
    %1335 = vmatpush1.msra.mxu0 0.0
    %1336 = vmatprep.subr.mxu0 0.0
    %1337 = vmatpush1.msra.mxu0 0.0
    %1338 = vmatprep.subr.mxu0 0.0
    %1339 = vmatpush1.msra.mxu0 0.0
    %1340 = vmatprep.subr.mxu0 0.0
    %1341 = vmatpush1.msra.mxu0 0.0
    %1342 = vmatprep.subr.mxu0 0.0
    %1343 = vmatpush1.msra.mxu0 0.0
    %1344 = vmatprep.subr.mxu0 0.0
    %1345 = vmatpush1.msra.mxu0 0.0
    %1346 = vmatprep.subr.mxu0 0.0
    %1347 = vmatpush1.msra.mxu0 0.0
    %1348 = vmatprep.subr.mxu0 0.0
    %1349 = vmatpush1.msra.mxu0 0.0
    %1350 = vmatprep.subr.mxu0 0.0
    %1351 = vmatpush1.msra.mxu0 0.0
    %1352 = vmatprep.subr.mxu0 0.0
    %1353 = vmatpush1.msra.mxu0 0.0
    %1354 = vmatprep.subr.mxu0 0.0
    %1355 = vmatpush1.msra.mxu0 0.0
    %1356 = vmatprep.subr.mxu0 0.0
    %1357 = vmatpush1.msra.mxu0 0.0
    %1358 = vmatprep.subr.mxu0 0.0
    %1359 = vmatpush1.msra.mxu0 0.0
    %1360 = vmatprep.subr.mxu0 0.0
    %1361 = vmatpush1.msra.mxu0 0.0
    %1362 = vmatprep.subr.mxu0 0.0
    %1363 = vmatpush1.msra.mxu0 0.0
    %1364 = vmatprep.subr.mxu0 0.0
    %1365 = vmatpush1.msra.mxu0 0.0
    %1366 = vmatprep.mubr.f32.mxu0 0.0
    %1367 = vmatmul.mubr.f32.gmra.mrb[0].mxu0 %v1291
    %v1368 = vpop.f32.mrb[0].mxu0
    %v1369 = vadd.f32 0.0, %v1368
    %v1370 = vpop.f32.mrb[0].mxu0
    %1371 = vmatprep.mubr.f32.mxu0 0.0
    %1372 = vmatmul.mubr.f32.gmra.mrb[0].mxu0 %v1294
    %v1373 = vpop.f32.mrb[0].mxu0
    %v1374 = vadd.f32 0.0, %v1373
    %v1375 = vpop.f32.mrb[0].mxu0
    %1376 = vmatprep.mubr.f32.mxu0 0.0
    %1377 = vmatmul.mubr.f32.gmra.mrb[0].mxu0 %v1297
    %v1378 = vpop.f32.mrb[0].mxu0
    %v1379 = vadd.f32 0.0, %v1378
    %v1380 = vpop.f32.mrb[0].mxu0
    %1381 = vdwg.mxu0
    %s1382 = scalar_lea.vmem %s9, 72
    %1383 = vst.msk [vmem:[%s1382] sm:$0xff] %vm203, %v1369
    %1384 = vst.msk [vmem:[%s1382 + $0x8] sm:$0xff] %vm203, %v1374
    %1385 = vst.msk [vmem:[%s1382 + $0x10] sm:$0x3] %vm308, %v1379
    %s1386 = sld [smem:[#allocation4 + $0x4]]
    %s1387 = sld [smem:[#allocation2 + $0x200]]
    %v1388 = vstv %s1387
    %v1389 = vmul.f32 %v1388, %v103
    %v1390 = vmul.f32 %v1388, %v104
    %v1391 = vmul.f32 %v1388, %v105
    %v1392 = vstv %s1386
    %v1393 = vadd.f32 %v1392, %v1389
    %v1394 = vadd.f32 %v1392, %v1390
    %v1395 = vadd.f32 %v1392, %v1391
    %s1396 = sld [smem:[#allocation2 + $0x201]]
    %v1397 = vstv %s1396
    %v1398 = vmul.f32 %v1397, %v107
    %v1399 = vmul.f32 %v1397, %v108
    %v1400 = vmul.f32 %v1397, %v109
    %v1401 = vadd.f32 %v1393, %v1398
    %v1402 = vadd.f32 %v1394, %v1399
    %v1403 = vadd.f32 %v1395, %v1400
    %s1404 = sld [smem:[#allocation2 + $0x202]]
    %v1405 = vstv %s1404
    %v1406 = vmul.f32 %v1405, %v111
    %v1407 = vmul.f32 %v1405, %v112
    %v1408 = vmul.f32 %v1405, %v113
    %v1409 = vadd.f32 %v1401, %v1406
    %v1410 = vadd.f32 %v1402, %v1407
    %v1411 = vadd.f32 %v1403, %v1408
    %s1412 = sld [smem:[#allocation7 + $0x4]]
    %s1413 = sld [smem:[#allocation6 + $0x200]]
    %v1414 = vstv %s1413
    %v1415 = vmul.f32 %v1414, %v114
    %v1416 = vmul.f32 %v1414, %v115
    %v1417 = vmul.f32 %v1414, %v116
    %v1418 = vstv %s1412
    %v1419 = vadd.f32 %v1418, %v1415
    %v1420 = vadd.f32 %v1418, %v1416
    %v1421 = vadd.f32 %v1418, %v1417
    %s1422 = sld [smem:[#allocation6 + $0x201]]
    %v1423 = vstv %s1422
    %v1424 = vmul.f32 %v1423, %v118
    %v1425 = vmul.f32 %v1423, %v119
    %v1426 = vmul.f32 %v1423, %v120
    %v1427 = vadd.f32 %v1419, %v1424
    %v1428 = vadd.f32 %v1420, %v1425
    %v1429 = vadd.f32 %v1421, %v1426
    %s1430 = sld [smem:[#allocation6 + $0x202]]
    %v1431 = vstv %s1430
    %v1432 = vmul.f32 %v1431, %v122
    %v1433 = vmul.f32 %v1431, %v123
    %v1434 = vmul.f32 %v1431, %v124
    %v1435 = vadd.f32 %v1427, %v1432
    %v1436 = vadd.f32 %v1428, %v1433
    %v1437 = vadd.f32 %v1429, %v1434
    %s1438 = sld [smem:[#allocation10 + $0x4]]
    %s1439 = sld [smem:[#allocation9 + $0x200]]
    %v1440 = vstv %s1439
    %v1441 = vmul.f32 %v1440, %v114
    %v1442 = vmul.f32 %v1440, %v115
    %v1443 = vmul.f32 %v1440, %v116
    %v1444 = vstv %s1438
    %v1445 = vadd.f32 %v1444, %v1441
    %v1446 = vadd.f32 %v1444, %v1442
    %v1447 = vadd.f32 %v1444, %v1443
    %s1448 = sld [smem:[#allocation9 + $0x201]]
    %v1449 = vstv %s1448
    %v1450 = vmul.f32 %v1449, %v118
    %v1451 = vmul.f32 %v1449, %v119
    %v1452 = vmul.f32 %v1449, %v120
    %v1453 = vadd.f32 %v1445, %v1450
    %v1454 = vadd.f32 %v1446, %v1451
    %v1455 = vadd.f32 %v1447, %v1452
    %s1456 = sld [smem:[#allocation9 + $0x202]]
    %v1457 = vstv %s1456
    %v1458 = vmul.f32 %v1457, %v122
    %v1459 = vmul.f32 %v1457, %v123
    %v1460 = vmul.f32 %v1457, %v124
    %v1461 = vadd.f32 %v1453, %v1458
    %v1462 = vadd.f32 %v1454, %v1459
    %v1463 = vadd.f32 %v1455, %v1460
    %v1465 = vsel %vm203, %v1409, 0
    %v1468 = vsel %vm203, %v1410, 0
    %v1471 = vsel %vm203, %v1411, 0
    %v1474 = vsel %vm203, %v1435, 0
    %v1477 = vsel %vm203, %v1436, 0
    %v1480 = vsel %vm203, %v1437, 0
    %1482 = vmatprep.subr.mxu0 0.0
    %1483 = vmatpush1.xpose.msra.mxu0 %v1474
    %1484 = vmatprep.subr.mxu0 0.0
    %1485 = vmatpush1.xpose.msra.mxu0 %v1477
    %1486 = vmatprep.subr.mxu0 0.0
    %1487 = vmatpush1.xpose.msra.mxu0 %v1480
    %1488 = vmatprep.subr.mxu0 0.0
    %1489 = vmatpush1.xpose.msra.mxu0 0.0
    %1490 = vmatprep.subr.mxu0 0.0
    %1491 = vmatpush1.xpose.msra.mxu0 0.0
    %1492 = vmatprep.subr.mxu0 0.0
    %1493 = vmatpush1.xpose.msra.mxu0 0.0
    %1494 = vmatprep.subr.mxu0 0.0
    %1495 = vmatpush1.xpose.msra.mxu0 0.0
    %1496 = vmatprep.subr.mxu0 0.0
    %1497 = vmatpush1.xpose.msra.mxu0 0.0
    %1498 = vmatprep.subr.mxu0 0.0
    %1499 = vmatpush1.xpose.msra.mxu0 0.0
    %1500 = vmatprep.subr.mxu0 0.0
    %1501 = vmatpush1.xpose.msra.mxu0 0.0
    %1502 = vmatprep.subr.mxu0 0.0
    %1503 = vmatpush1.xpose.msra.mxu0 0.0
    %1504 = vmatprep.subr.mxu0 0.0
    %1505 = vmatpush1.xpose.msra.mxu0 0.0
    %1506 = vmatprep.subr.mxu0 0.0
    %1507 = vmatpush1.xpose.msra.mxu0 0.0
    %1508 = vmatprep.subr.mxu0 0.0
    %1509 = vmatpush1.xpose.msra.mxu0 0.0
    %1510 = vmatprep.subr.mxu0 0.0
    %1511 = vmatpush1.xpose.msra.mxu0 0.0
    %1512 = vmatprep.subr.mxu0 0.0
    %1513 = vmatpush1.xpose.msra.mxu0 0.0
    %1514 = vmatprep.subr.mxu0 0.0
    %1515 = vmatpush1.xpose.msra.mxu0 0.0
    %1516 = vmatprep.subr.mxu0 0.0
    %1517 = vmatpush1.xpose.msra.mxu0 0.0
    %1518 = vmatprep.subr.mxu0 0.0
    %1519 = vmatpush1.xpose.msra.mxu0 0.0
    %1520 = vmatprep.subr.mxu0 0.0
    %1521 = vmatpush1.xpose.msra.mxu0 0.0
    %1522 = vmatprep.subr.mxu0 0.0
    %1523 = vmatpush1.xpose.msra.mxu0 0.0
    %1524 = vmatprep.subr.mxu0 0.0
    %1525 = vmatpush1.xpose.msra.mxu0 0.0
    %1526 = vmatprep.subr.mxu0 0.0
    %1527 = vmatpush1.xpose.msra.mxu0 0.0
    %1528 = vmatprep.subr.mxu0 0.0
    %1529 = vmatpush1.xpose.msra.mxu0 0.0
    %1530 = vmatprep.subr.mxu0 0.0
    %1531 = vmatpush1.xpose.msra.mxu0 0.0
    %1532 = vmatprep.subr.mxu0 0.0
    %1533 = vmatpush1.xpose.msra.mxu0 0.0
    %1534 = vmatprep.subr.mxu0 0.0
    %1535 = vmatpush1.xpose.msra.mxu0 0.0
    %1536 = vmatprep.subr.mxu0 0.0
    %1537 = vmatpush1.xpose.msra.mxu0 0.0
    %1538 = vmatprep.subr.mxu0 0.0
    %1539 = vmatpush1.xpose.msra.mxu0 0.0
    %1540 = vmatprep.subr.mxu0 0.0
    %1541 = vmatpush1.xpose.msra.mxu0 0.0
    %1542 = vmatprep.subr.mxu0 0.0
    %1543 = vmatpush1.xpose.msra.mxu0 0.0
    %1544 = vmatprep.subr.mxu0 0.0
    %1545 = vmatpush1.xpose.msra.mxu0 0.0
    %1546 = vmatprep.mubr.f32.mxu0 0.0
    %1547 = vmatmul.mubr.f32.gmra.mrb[0].mxu0 %v1465
    %v1548 = vpop.f32.mrb[0].mxu0
    %v1549 = vadd.f32 0.0, %v1548
    %v1550 = vpop.f32.mrb[0].mxu0
    %1551 = vmatprep.mubr.f32.mxu0 0.0
    %1552 = vmatmul.mubr.f32.gmra.mrb[0].mxu0 %v1468
    %v1553 = vpop.f32.mrb[0].mxu0
    %v1554 = vadd.f32 0.0, %v1553
    %v1555 = vpop.f32.mrb[0].mxu0
    %1556 = vmatprep.mubr.f32.mxu0 0.0
    %1557 = vmatmul.mubr.f32.gmra.mrb[0].mxu0 %v1471
    %v1558 = vpop.f32.mrb[0].mxu0
    %v1559 = vadd.f32 0.0, %v1558
    %v1560 = vpop.f32.mrb[0].mxu0
    %1561 = vdwg.mxu0
    %v1562 = vsel %vm203, %v1549, -inf
    %1563 = vmax.xlane.f32.xlu0 %v1562
    %v1564 = vpop.xlane.xlu0 %1563
    %v1565 = vsel %vm203, %v1554, -inf
    %1566 = vmax.xlane.f32.xlu0 %v1565
    %v1567 = vpop.xlane.xlu0 %1566
    %v1568 = vsel %vm308, %v1559, -inf
    %1569 = vmax.xlane.f32.xlu0 %v1568
    %v1570 = vpop.xlane.xlu0 %1569
    %v1571 = vsub.f32 %v1549, %v1564
    %v1572 = vsub.f32 %v1554, %v1567
    %v1573 = vsub.f32 %v1559, %v1570
    %v1574 = vmul.f32 %v1571, 1.442695
    %v1575 = vpow.pop %v1574
    %v1576 = vmul.f32 %v1572, 1.442695
    %v1577 = vpow.pop %v1576
    %v1578 = vmul.f32 %v1573, 1.442695
    %v1579 = vpow.pop %v1578
    %v1580 = vsel %vm203, %v1575, 0.0
    %1581 = vadd.xlane.f32.xlu0 %v1580
    %v1582 = vpop.xlane.xlu0 %1581
    %v1583 = vsel %vm203, %v1577, 0.0
    %1584 = vadd.xlane.f32.xlu0 %v1583
    %v1585 = vpop.xlane.xlu0 %1584
    %v1586 = vsel %vm308, %v1579, 0.0
    %1587 = vadd.xlane.f32.xlu0 %v1586
    %v1588 = vpop.xlane.xlu0 %1587
    %v1589 = vrcp.pop %v1582
    %v1590 = vmul.f32 1.0, %v1589
    %v1591 = vrcp.pop %v1585
    %v1592 = vmul.f32 1.0, %v1591
    %v1593 = vrcp.pop %v1588
    %v1594 = vmul.f32 1.0, %v1593
    %v1595 = vmul.f32 %v1575, %v1590
    %v1596 = vmul.f32 %v1577, %v1592
    %v1597 = vmul.f32 %v1579, %v1594
    %s1598 = scalar_lea.vmem %s8, 96
    %v1599 = vld [vmem:[%s1598] sm:$0xff]
    %v1600 = vld [vmem:[%s1598 + $0x8] sm:$0xff]
    %v1601 = vld [vmem:[%s1598 + $0x10] sm:$0x3]
    %v1602 = vmul.f32 %v1595, %v1599
    %v1603 = vmul.f32 %v1596, %v1600
    %v1604 = vmul.f32 %v1597, %v1601
    %v1606 = vsel %vm203, %v1602, 0
    %v1609 = vsel %vm203, %v1603, 0
    %v1612 = vsel %vm203, %v1604, 0
    %v1615 = vsel %vm354, %v1463, 0
    %1617 = vmatprep.subr.mxu0 0.0
    %1618 = vmatpush1.msra.mxu0 %v1461
    %1619 = vmatprep.subr.mxu0 0.0
    %1620 = vmatpush1.msra.mxu0 %v1462
    %1621 = vmatprep.subr.mxu0 0.0
    %1622 = vmatpush1.msra.mxu0 %v1615
    %1623 = vmatprep.subr.mxu0 0.0
    %1624 = vmatpush1.msra.mxu0 0.0
    %1625 = vmatprep.subr.mxu0 0.0
    %1626 = vmatpush1.msra.mxu0 0.0
    %1627 = vmatprep.subr.mxu0 0.0
    %1628 = vmatpush1.msra.mxu0 0.0
    %1629 = vmatprep.subr.mxu0 0.0
    %1630 = vmatpush1.msra.mxu0 0.0
    %1631 = vmatprep.subr.mxu0 0.0
    %1632 = vmatpush1.msra.mxu0 0.0
    %1633 = vmatprep.subr.mxu0 0.0
    %1634 = vmatpush1.msra.mxu0 0.0
    %1635 = vmatprep.subr.mxu0 0.0
    %1636 = vmatpush1.msra.mxu0 0.0
    %1637 = vmatprep.subr.mxu0 0.0
    %1638 = vmatpush1.msra.mxu0 0.0
    %1639 = vmatprep.subr.mxu0 0.0
    %1640 = vmatpush1.msra.mxu0 0.0
    %1641 = vmatprep.subr.mxu0 0.0
    %1642 = vmatpush1.msra.mxu0 0.0
    %1643 = vmatprep.subr.mxu0 0.0
    %1644 = vmatpush1.msra.mxu0 0.0
    %1645 = vmatprep.subr.mxu0 0.0
    %1646 = vmatpush1.msra.mxu0 0.0
    %1647 = vmatprep.subr.mxu0 0.0
    %1648 = vmatpush1.msra.mxu0 0.0
    %1649 = vmatprep.subr.mxu0 0.0
    %1650 = vmatpush1.msra.mxu0 0.0
    %1651 = vmatprep.subr.mxu0 0.0
    %1652 = vmatpush1.msra.mxu0 0.0
    %1653 = vmatprep.subr.mxu0 0.0
    %1654 = vmatpush1.msra.mxu0 0.0
    %1655 = vmatprep.subr.mxu0 0.0
    %1656 = vmatpush1.msra.mxu0 0.0
    %1657 = vmatprep.subr.mxu0 0.0
    %1658 = vmatpush1.msra.mxu0 0.0
    %1659 = vmatprep.subr.mxu0 0.0
    %1660 = vmatpush1.msra.mxu0 0.0
    %1661 = vmatprep.subr.mxu0 0.0
    %1662 = vmatpush1.msra.mxu0 0.0
    %1663 = vmatprep.subr.mxu0 0.0
    %1664 = vmatpush1.msra.mxu0 0.0
    %1665 = vmatprep.subr.mxu0 0.0
    %1666 = vmatpush1.msra.mxu0 0.0
    %1667 = vmatprep.subr.mxu0 0.0
    %1668 = vmatpush1.msra.mxu0 0.0
    %1669 = vmatprep.subr.mxu0 0.0
    %1670 = vmatpush1.msra.mxu0 0.0
    %1671 = vmatprep.subr.mxu0 0.0
    %1672 = vmatpush1.msra.mxu0 0.0
    %1673 = vmatprep.subr.mxu0 0.0
    %1674 = vmatpush1.msra.mxu0 0.0
    %1675 = vmatprep.subr.mxu0 0.0
    %1676 = vmatpush1.msra.mxu0 0.0
    %1677 = vmatprep.subr.mxu0 0.0
    %1678 = vmatpush1.msra.mxu0 0.0
    %1679 = vmatprep.subr.mxu0 0.0
    %1680 = vmatpush1.msra.mxu0 0.0
    %1681 = vmatprep.mubr.f32.mxu0 0.0
    %1682 = vmatmul.mubr.f32.gmra.mrb[0].mxu0 %v1606
    %v1683 = vpop.f32.mrb[0].mxu0
    %v1684 = vadd.f32 0.0, %v1683
    %v1685 = vpop.f32.mrb[0].mxu0
    %1686 = vmatprep.mubr.f32.mxu0 0.0
    %1687 = vmatmul.mubr.f32.gmra.mrb[0].mxu0 %v1609
    %v1688 = vpop.f32.mrb[0].mxu0
    %v1689 = vadd.f32 0.0, %v1688
    %v1690 = vpop.f32.mrb[0].mxu0
    %1691 = vmatprep.mubr.f32.mxu0 0.0
    %1692 = vmatmul.mubr.f32.gmra.mrb[0].mxu0 %v1612
    %v1693 = vpop.f32.mrb[0].mxu0
    %v1694 = vadd.f32 0.0, %v1693
    %v1695 = vpop.f32.mrb[0].mxu0
    %1696 = vdwg.mxu0
    %s1697 = scalar_lea.vmem %s9, 96
    %1698 = vst.msk [vmem:[%s1697] sm:$0xff] %vm203, %v1684
    %1699 = vst.msk [vmem:[%s1697 + $0x8] sm:$0xff] %vm203, %v1689
    %1700 = vst.msk [vmem:[%s1697 + $0x10] sm:$0x3] %vm308, %v1694
    %s1701 = sld [smem:[#allocation4 + $0x5]]
    %s1702 = sld [smem:[#allocation2 + $0x280]]
    %v1703 = vstv %s1702
    %v1704 = vmul.f32 %v1703, %v103
    %v1705 = vmul.f32 %v1703, %v104
    %v1706 = vmul.f32 %v1703, %v105
    %v1707 = vstv %s1701
    %v1708 = vadd.f32 %v1707, %v1704
    %v1709 = vadd.f32 %v1707, %v1705
    %v1710 = vadd.f32 %v1707, %v1706
    %s1711 = sld [smem:[#allocation2 + $0x281]]
    %v1712 = vstv %s1711
    %v1713 = vmul.f32 %v1712, %v107
    %v1714 = vmul.f32 %v1712, %v108
    %v1715 = vmul.f32 %v1712, %v109
    %v1716 = vadd.f32 %v1708, %v1713
    %v1717 = vadd.f32 %v1709, %v1714
    %v1718 = vadd.f32 %v1710, %v1715
    %s1719 = sld [smem:[#allocation2 + $0x282]]
    %v1720 = vstv %s1719
    %v1721 = vmul.f32 %v1720, %v111
    %v1722 = vmul.f32 %v1720, %v112
    %v1723 = vmul.f32 %v1720, %v113
    %v1724 = vadd.f32 %v1716, %v1721
    %v1725 = vadd.f32 %v1717, %v1722
    %v1726 = vadd.f32 %v1718, %v1723
    %s1727 = sld [smem:[#allocation7 + $0x5]]
    %s1728 = sld [smem:[#allocation6 + $0x280]]
    %v1729 = vstv %s1728
    %v1730 = vmul.f32 %v1729, %v114
    %v1731 = vmul.f32 %v1729, %v115
    %v1732 = vmul.f32 %v1729, %v116
    %v1733 = vstv %s1727
    %v1734 = vadd.f32 %v1733, %v1730
    %v1735 = vadd.f32 %v1733, %v1731
    %v1736 = vadd.f32 %v1733, %v1732
    %s1737 = sld [smem:[#allocation6 + $0x281]]
    %v1738 = vstv %s1737
    %v1739 = vmul.f32 %v1738, %v118
    %v1740 = vmul.f32 %v1738, %v119
    %v1741 = vmul.f32 %v1738, %v120
    %v1742 = vadd.f32 %v1734, %v1739
    %v1743 = vadd.f32 %v1735, %v1740
    %v1744 = vadd.f32 %v1736, %v1741
    %s1745 = sld [smem:[#allocation6 + $0x282]]
    %v1746 = vstv %s1745
    %v1747 = vmul.f32 %v1746, %v122
    %v1748 = vmul.f32 %v1746, %v123
    %v1749 = vmul.f32 %v1746, %v124
    %v1750 = vadd.f32 %v1742, %v1747
    %v1751 = vadd.f32 %v1743, %v1748
    %v1752 = vadd.f32 %v1744, %v1749
    %s1753 = sld [smem:[#allocation10 + $0x5]]
    %s1754 = sld [smem:[#allocation9 + $0x280]]
    %v1755 = vstv %s1754
    %v1756 = vmul.f32 %v1755, %v114
    %v1757 = vmul.f32 %v1755, %v115
    %v1758 = vmul.f32 %v1755, %v116
    %v1759 = vstv %s1753
    %v1760 = vadd.f32 %v1759, %v1756
    %v1761 = vadd.f32 %v1759, %v1757
    %v1762 = vadd.f32 %v1759, %v1758
    %s1763 = sld [smem:[#allocation9 + $0x281]]
    %v1764 = vstv %s1763
    %v1765 = vmul.f32 %v1764, %v118
    %v1766 = vmul.f32 %v1764, %v119
    %v1767 = vmul.f32 %v1764, %v120
    %v1768 = vadd.f32 %v1760, %v1765
    %v1769 = vadd.f32 %v1761, %v1766
    %v1770 = vadd.f32 %v1762, %v1767
    %s1771 = sld [smem:[#allocation9 + $0x282]]
    %v1772 = vstv %s1771
    %v1773 = vmul.f32 %v1772, %v122
    %v1774 = vmul.f32 %v1772, %v123
    %v1775 = vmul.f32 %v1772, %v124
    %v1776 = vadd.f32 %v1768, %v1773
    %v1777 = vadd.f32 %v1769, %v1774
    %v1778 = vadd.f32 %v1770, %v1775
    %v1780 = vsel %vm203, %v1724, 0
    %v1783 = vsel %vm203, %v1725, 0
    %v1786 = vsel %vm203, %v1726, 0
    %v1789 = vsel %vm203, %v1750, 0
    %v1792 = vsel %vm203, %v1751, 0
    %v1795 = vsel %vm203, %v1752, 0
    %1797 = vmatprep.subr.mxu0 0.0
    %1798 = vmatpush1.xpose.msra.mxu0 %v1789
    %1799 = vmatprep.subr.mxu0 0.0
    %1800 = vmatpush1.xpose.msra.mxu0 %v1792
    %1801 = vmatprep.subr.mxu0 0.0
    %1802 = vmatpush1.xpose.msra.mxu0 %v1795
    %1803 = vmatprep.subr.mxu0 0.0
    %1804 = vmatpush1.xpose.msra.mxu0 0.0
    %1805 = vmatprep.subr.mxu0 0.0
    %1806 = vmatpush1.xpose.msra.mxu0 0.0
    %1807 = vmatprep.subr.mxu0 0.0
    %1808 = vmatpush1.xpose.msra.mxu0 0.0
    %1809 = vmatprep.subr.mxu0 0.0
    %1810 = vmatpush1.xpose.msra.mxu0 0.0
    %1811 = vmatprep.subr.mxu0 0.0
    %1812 = vmatpush1.xpose.msra.mxu0 0.0
    %1813 = vmatprep.subr.mxu0 0.0
    %1814 = vmatpush1.xpose.msra.mxu0 0.0
    %1815 = vmatprep.subr.mxu0 0.0
    %1816 = vmatpush1.xpose.msra.mxu0 0.0
    %1817 = vmatprep.subr.mxu0 0.0
    %1818 = vmatpush1.xpose.msra.mxu0 0.0
    %1819 = vmatprep.subr.mxu0 0.0
    %1820 = vmatpush1.xpose.msra.mxu0 0.0
    %1821 = vmatprep.subr.mxu0 0.0
    %1822 = vmatpush1.xpose.msra.mxu0 0.0
    %1823 = vmatprep.subr.mxu0 0.0
    %1824 = vmatpush1.xpose.msra.mxu0 0.0
    %1825 = vmatprep.subr.mxu0 0.0
    %1826 = vmatpush1.xpose.msra.mxu0 0.0
    %1827 = vmatprep.subr.mxu0 0.0
    %1828 = vmatpush1.xpose.msra.mxu0 0.0
    %1829 = vmatprep.subr.mxu0 0.0
    %1830 = vmatpush1.xpose.msra.mxu0 0.0
    %1831 = vmatprep.subr.mxu0 0.0
    %1832 = vmatpush1.xpose.msra.mxu0 0.0
    %1833 = vmatprep.subr.mxu0 0.0
    %1834 = vmatpush1.xpose.msra.mxu0 0.0
    %1835 = vmatprep.subr.mxu0 0.0
    %1836 = vmatpush1.xpose.msra.mxu0 0.0
    %1837 = vmatprep.subr.mxu0 0.0
    %1838 = vmatpush1.xpose.msra.mxu0 0.0
    %1839 = vmatprep.subr.mxu0 0.0
    %1840 = vmatpush1.xpose.msra.mxu0 0.0
    %1841 = vmatprep.subr.mxu0 0.0
    %1842 = vmatpush1.xpose.msra.mxu0 0.0
    %1843 = vmatprep.subr.mxu0 0.0
    %1844 = vmatpush1.xpose.msra.mxu0 0.0
    %1845 = vmatprep.subr.mxu0 0.0
    %1846 = vmatpush1.xpose.msra.mxu0 0.0
    %1847 = vmatprep.subr.mxu0 0.0
    %1848 = vmatpush1.xpose.msra.mxu0 0.0
    %1849 = vmatprep.subr.mxu0 0.0
    %1850 = vmatpush1.xpose.msra.mxu0 0.0
    %1851 = vmatprep.subr.mxu0 0.0
    %1852 = vmatpush1.xpose.msra.mxu0 0.0
    %1853 = vmatprep.subr.mxu0 0.0
    %1854 = vmatpush1.xpose.msra.mxu0 0.0
    %1855 = vmatprep.subr.mxu0 0.0
    %1856 = vmatpush1.xpose.msra.mxu0 0.0
    %1857 = vmatprep.subr.mxu0 0.0
    %1858 = vmatpush1.xpose.msra.mxu0 0.0
    %1859 = vmatprep.subr.mxu0 0.0
    %1860 = vmatpush1.xpose.msra.mxu0 0.0
    %1861 = vmatprep.mubr.f32.mxu0 0.0
    %1862 = vmatmul.mubr.f32.gmra.mrb[0].mxu0 %v1780
    %v1863 = vpop.f32.mrb[0].mxu0
    %v1864 = vadd.f32 0.0, %v1863
    %v1865 = vpop.f32.mrb[0].mxu0
    %1866 = vmatprep.mubr.f32.mxu0 0.0
    %1867 = vmatmul.mubr.f32.gmra.mrb[0].mxu0 %v1783
    %v1868 = vpop.f32.mrb[0].mxu0
    %v1869 = vadd.f32 0.0, %v1868
    %v1870 = vpop.f32.mrb[0].mxu0
    %1871 = vmatprep.mubr.f32.mxu0 0.0
    %1872 = vmatmul.mubr.f32.gmra.mrb[0].mxu0 %v1786
    %v1873 = vpop.f32.mrb[0].mxu0
    %v1874 = vadd.f32 0.0, %v1873
    %v1875 = vpop.f32.mrb[0].mxu0
    %1876 = vdwg.mxu0
    %v1877 = vsel %vm203, %v1864, -inf
    %1878 = vmax.xlane.f32.xlu0 %v1877
    %v1879 = vpop.xlane.xlu0 %1878
    %v1880 = vsel %vm203, %v1869, -inf
    %1881 = vmax.xlane.f32.xlu0 %v1880
    %v1882 = vpop.xlane.xlu0 %1881
    %v1883 = vsel %vm308, %v1874, -inf
    %1884 = vmax.xlane.f32.xlu0 %v1883
    %v1885 = vpop.xlane.xlu0 %1884
    %v1886 = vsub.f32 %v1864, %v1879
    %v1887 = vsub.f32 %v1869, %v1882
    %v1888 = vsub.f32 %v1874, %v1885
    %v1889 = vmul.f32 %v1886, 1.442695
    %v1890 = vpow.pop %v1889
    %v1891 = vmul.f32 %v1887, 1.442695
    %v1892 = vpow.pop %v1891
    %v1893 = vmul.f32 %v1888, 1.442695
    %v1894 = vpow.pop %v1893
    %v1895 = vsel %vm203, %v1890, 0.0
    %1896 = vadd.xlane.f32.xlu0 %v1895
    %v1897 = vpop.xlane.xlu0 %1896
    %v1898 = vsel %vm203, %v1892, 0.0
    %1899 = vadd.xlane.f32.xlu0 %v1898
    %v1900 = vpop.xlane.xlu0 %1899
    %v1901 = vsel %vm308, %v1894, 0.0
    %1902 = vadd.xlane.f32.xlu0 %v1901
    %v1903 = vpop.xlane.xlu0 %1902
    %v1904 = vrcp.pop %v1897
    %v1905 = vmul.f32 1.0, %v1904
    %v1906 = vrcp.pop %v1900
    %v1907 = vmul.f32 1.0, %v1906
    %v1908 = vrcp.pop %v1903
    %v1909 = vmul.f32 1.0, %v1908
    %v1910 = vmul.f32 %v1890, %v1905
    %v1911 = vmul.f32 %v1892, %v1907
    %v1912 = vmul.f32 %v1894, %v1909
    %s1913 = scalar_lea.vmem %s8, 120
    %v1914 = vld [vmem:[%s1913] sm:$0xff]
    %v1915 = vld [vmem:[%s1913 + $0x8] sm:$0xff]
    %v1916 = vld [vmem:[%s1913 + $0x10] sm:$0x3]
    %v1917 = vmul.f32 %v1910, %v1914
    %v1918 = vmul.f32 %v1911, %v1915
    %v1919 = vmul.f32 %v1912, %v1916
    %v1921 = vsel %vm203, %v1917, 0
    %v1924 = vsel %vm203, %v1918, 0
    %v1927 = vsel %vm203, %v1919, 0
    %v1930 = vsel %vm354, %v1778, 0
    %1932 = vmatprep.subr.mxu0 0.0
    %1933 = vmatpush1.msra.mxu0 %v1776
    %1934 = vmatprep.subr.mxu0 0.0
    %1935 = vmatpush1.msra.mxu0 %v1777
    %1936 = vmatprep.subr.mxu0 0.0
    %1937 = vmatpush1.msra.mxu0 %v1930
    %1938 = vmatprep.subr.mxu0 0.0
    %1939 = vmatpush1.msra.mxu0 0.0
    %1940 = vmatprep.subr.mxu0 0.0
    %1941 = vmatpush1.msra.mxu0 0.0
    %1942 = vmatprep.subr.mxu0 0.0
    %1943 = vmatpush1.msra.mxu0 0.0
    %1944 = vmatprep.subr.mxu0 0.0
    %1945 = vmatpush1.msra.mxu0 0.0
    %1946 = vmatprep.subr.mxu0 0.0
    %1947 = vmatpush1.msra.mxu0 0.0
    %1948 = vmatprep.subr.mxu0 0.0
    %1949 = vmatpush1.msra.mxu0 0.0
    %1950 = vmatprep.subr.mxu0 0.0
    %1951 = vmatpush1.msra.mxu0 0.0
    %1952 = vmatprep.subr.mxu0 0.0
    %1953 = vmatpush1.msra.mxu0 0.0
    %1954 = vmatprep.subr.mxu0 0.0
    %1955 = vmatpush1.msra.mxu0 0.0
    %1956 = vmatprep.subr.mxu0 0.0
    %1957 = vmatpush1.msra.mxu0 0.0
    %1958 = vmatprep.subr.mxu0 0.0
    %1959 = vmatpush1.msra.mxu0 0.0
    %1960 = vmatprep.subr.mxu0 0.0
    %1961 = vmatpush1.msra.mxu0 0.0
    %1962 = vmatprep.subr.mxu0 0.0
    %1963 = vmatpush1.msra.mxu0 0.0
    %1964 = vmatprep.subr.mxu0 0.0
    %1965 = vmatpush1.msra.mxu0 0.0
    %1966 = vmatprep.subr.mxu0 0.0
    %1967 = vmatpush1.msra.mxu0 0.0
    %1968 = vmatprep.subr.mxu0 0.0
    %1969 = vmatpush1.msra.mxu0 0.0
    %1970 = vmatprep.subr.mxu0 0.0
    %1971 = vmatpush1.msra.mxu0 0.0
    %1972 = vmatprep.subr.mxu0 0.0
    %1973 = vmatpush1.msra.mxu0 0.0
    %1974 = vmatprep.subr.mxu0 0.0
    %1975 = vmatpush1.msra.mxu0 0.0
    %1976 = vmatprep.subr.mxu0 0.0
    %1977 = vmatpush1.msra.mxu0 0.0
    %1978 = vmatprep.subr.mxu0 0.0
    %1979 = vmatpush1.msra.mxu0 0.0
    %1980 = vmatprep.subr.mxu0 0.0
    %1981 = vmatpush1.msra.mxu0 0.0
    %1982 = vmatprep.subr.mxu0 0.0
    %1983 = vmatpush1.msra.mxu0 0.0
    %1984 = vmatprep.subr.mxu0 0.0
    %1985 = vmatpush1.msra.mxu0 0.0
    %1986 = vmatprep.subr.mxu0 0.0
    %1987 = vmatpush1.msra.mxu0 0.0
    %1988 = vmatprep.subr.mxu0 0.0
    %1989 = vmatpush1.msra.mxu0 0.0
    %1990 = vmatprep.subr.mxu0 0.0
    %1991 = vmatpush1.msra.mxu0 0.0
    %1992 = vmatprep.subr.mxu0 0.0
    %1993 = vmatpush1.msra.mxu0 0.0
    %1994 = vmatprep.subr.mxu0 0.0
    %1995 = vmatpush1.msra.mxu0 0.0
    %1996 = vmatprep.mubr.f32.mxu0 0.0
    %1997 = vmatmul.mubr.f32.gmra.mrb[0].mxu0 %v1921
    %v1998 = vpop.f32.mrb[0].mxu0
    %v1999 = vadd.f32 0.0, %v1998
    %v2000 = vpop.f32.mrb[0].mxu0
    %2001 = vmatprep.mubr.f32.mxu0 0.0
    %2002 = vmatmul.mubr.f32.gmra.mrb[0].mxu0 %v1924
    %v2003 = vpop.f32.mrb[0].mxu0
    %v2004 = vadd.f32 0.0, %v2003
    %v2005 = vpop.f32.mrb[0].mxu0
    %2006 = vmatprep.mubr.f32.mxu0 0.0
    %2007 = vmatmul.mubr.f32.gmra.mrb[0].mxu0 %v1927
    %v2008 = vpop.f32.mrb[0].mxu0
    %v2009 = vadd.f32 0.0, %v2008
    %v2010 = vpop.f32.mrb[0].mxu0
    %2011 = vdwg.mxu0
    %s2012 = scalar_lea.vmem %s9, 120
    %2013 = vst.msk [vmem:[%s2012] sm:$0xff] %vm203, %v1999
    %2014 = vst.msk [vmem:[%s2012 + $0x8] sm:$0xff] %vm203, %v2004
    %2015 = vst.msk [vmem:[%s2012 + $0x10] sm:$0x3] %vm308, %v2009
    %s2016 = sld [smem:[#allocation4 + $0x6]]
    %s2017 = sld [smem:[#allocation2 + $0x300]]
    %v2018 = vstv %s2017
    %v2019 = vmul.f32 %v2018, %v103
    %v2020 = vmul.f32 %v2018, %v104
    %v2021 = vmul.f32 %v2018, %v105
    %v2022 = vstv %s2016
    %v2023 = vadd.f32 %v2022, %v2019
    %v2024 = vadd.f32 %v2022, %v2020
    %v2025 = vadd.f32 %v2022, %v2021
    %s2026 = sld [smem:[#allocation2 + $0x301]]
    %v2027 = vstv %s2026
    %v2028 = vmul.f32 %v2027, %v107
    %v2029 = vmul.f32 %v2027, %v108
    %v2030 = vmul.f32 %v2027, %v109
    %v2031 = vadd.f32 %v2023, %v2028
    %v2032 = vadd.f32 %v2024, %v2029
    %v2033 = vadd.f32 %v2025, %v2030
    %s2034 = sld [smem:[#allocation2 + $0x302]]
    %v2035 = vstv %s2034
    %v2036 = vmul.f32 %v2035, %v111
    %v2037 = vmul.f32 %v2035, %v112
    %v2038 = vmul.f32 %v2035, %v113
    %v2039 = vadd.f32 %v2031, %v2036
    %v2040 = vadd.f32 %v2032, %v2037
    %v2041 = vadd.f32 %v2033, %v2038
    %s2042 = sld [smem:[#allocation7 + $0x6]]
    %s2043 = sld [smem:[#allocation6 + $0x300]]
    %v2044 = vstv %s2043
    %v2045 = vmul.f32 %v2044, %v114
    %v2046 = vmul.f32 %v2044, %v115
    %v2047 = vmul.f32 %v2044, %v116
    %v2048 = vstv %s2042
    %v2049 = vadd.f32 %v2048, %v2045
    %v2050 = vadd.f32 %v2048, %v2046
    %v2051 = vadd.f32 %v2048, %v2047
    %s2052 = sld [smem:[#allocation6 + $0x301]]
    %v2053 = vstv %s2052
    %v2054 = vmul.f32 %v2053, %v118
    %v2055 = vmul.f32 %v2053, %v119
    %v2056 = vmul.f32 %v2053, %v120
    %v2057 = vadd.f32 %v2049, %v2054
    %v2058 = vadd.f32 %v2050, %v2055
    %v2059 = vadd.f32 %v2051, %v2056
    %s2060 = sld [smem:[#allocation6 + $0x302]]
    %v2061 = vstv %s2060
    %v2062 = vmul.f32 %v2061, %v122
    %v2063 = vmul.f32 %v2061, %v123
    %v2064 = vmul.f32 %v2061, %v124
    %v2065 = vadd.f32 %v2057, %v2062
    %v2066 = vadd.f32 %v2058, %v2063
    %v2067 = vadd.f32 %v2059, %v2064
    %s2068 = sld [smem:[#allocation10 + $0x6]]
    %s2069 = sld [smem:[#allocation9 + $0x300]]
    %v2070 = vstv %s2069
    %v2071 = vmul.f32 %v2070, %v114
    %v2072 = vmul.f32 %v2070, %v115
    %v2073 = vmul.f32 %v2070, %v116
    %v2074 = vstv %s2068
    %v2075 = vadd.f32 %v2074, %v2071
    %v2076 = vadd.f32 %v2074, %v2072
    %v2077 = vadd.f32 %v2074, %v2073
    %s2078 = sld [smem:[#allocation9 + $0x301]]
    %v2079 = vstv %s2078
    %v2080 = vmul.f32 %v2079, %v118
    %v2081 = vmul.f32 %v2079, %v119
    %v2082 = vmul.f32 %v2079, %v120
    %v2083 = vadd.f32 %v2075, %v2080
    %v2084 = vadd.f32 %v2076, %v2081
    %v2085 = vadd.f32 %v2077, %v2082
    %s2086 = sld [smem:[#allocation9 + $0x302]]
    %v2087 = vstv %s2086
    %v2088 = vmul.f32 %v2087, %v122
    %v2089 = vmul.f32 %v2087, %v123
    %v2090 = vmul.f32 %v2087, %v124
    %v2091 = vadd.f32 %v2083, %v2088
    %v2092 = vadd.f32 %v2084, %v2089
    %v2093 = vadd.f32 %v2085, %v2090
    %v2095 = vsel %vm203, %v2039, 0
    %v2098 = vsel %vm203, %v2040, 0
    %v2101 = vsel %vm203, %v2041, 0
    %v2104 = vsel %vm203, %v2065, 0
    %v2107 = vsel %vm203, %v2066, 0
    %v2110 = vsel %vm203, %v2067, 0
    %2112 = vmatprep.subr.mxu0 0.0
    %2113 = vmatpush1.xpose.msra.mxu0 %v2104
    %2114 = vmatprep.subr.mxu0 0.0
    %2115 = vmatpush1.xpose.msra.mxu0 %v2107
    %2116 = vmatprep.subr.mxu0 0.0
    %2117 = vmatpush1.xpose.msra.mxu0 %v2110
    %2118 = vmatprep.subr.mxu0 0.0
    %2119 = vmatpush1.xpose.msra.mxu0 0.0
    %2120 = vmatprep.subr.mxu0 0.0
    %2121 = vmatpush1.xpose.msra.mxu0 0.0
    %2122 = vmatprep.subr.mxu0 0.0
    %2123 = vmatpush1.xpose.msra.mxu0 0.0
    %2124 = vmatprep.subr.mxu0 0.0
    %2125 = vmatpush1.xpose.msra.mxu0 0.0
    %2126 = vmatprep.subr.mxu0 0.0
    %2127 = vmatpush1.xpose.msra.mxu0 0.0
    %2128 = vmatprep.subr.mxu0 0.0
    %2129 = vmatpush1.xpose.msra.mxu0 0.0
    %2130 = vmatprep.subr.mxu0 0.0
    %2131 = vmatpush1.xpose.msra.mxu0 0.0
    %2132 = vmatprep.subr.mxu0 0.0
    %2133 = vmatpush1.xpose.msra.mxu0 0.0
    %2134 = vmatprep.subr.mxu0 0.0
    %2135 = vmatpush1.xpose.msra.mxu0 0.0
    %2136 = vmatprep.subr.mxu0 0.0
    %2137 = vmatpush1.xpose.msra.mxu0 0.0
    %2138 = vmatprep.subr.mxu0 0.0
    %2139 = vmatpush1.xpose.msra.mxu0 0.0
    %2140 = vmatprep.subr.mxu0 0.0
    %2141 = vmatpush1.xpose.msra.mxu0 0.0
    %2142 = vmatprep.subr.mxu0 0.0
    %2143 = vmatpush1.xpose.msra.mxu0 0.0
    %2144 = vmatprep.subr.mxu0 0.0
    %2145 = vmatpush1.xpose.msra.mxu0 0.0
    %2146 = vmatprep.subr.mxu0 0.0
    %2147 = vmatpush1.xpose.msra.mxu0 0.0
    %2148 = vmatprep.subr.mxu0 0.0
    %2149 = vmatpush1.xpose.msra.mxu0 0.0
    %2150 = vmatprep.subr.mxu0 0.0
    %2151 = vmatpush1.xpose.msra.mxu0 0.0
    %2152 = vmatprep.subr.mxu0 0.0
    %2153 = vmatpush1.xpose.msra.mxu0 0.0
    %2154 = vmatprep.subr.mxu0 0.0
    %2155 = vmatpush1.xpose.msra.mxu0 0.0
    %2156 = vmatprep.subr.mxu0 0.0
    %2157 = vmatpush1.xpose.msra.mxu0 0.0
    %2158 = vmatprep.subr.mxu0 0.0
    %2159 = vmatpush1.xpose.msra.mxu0 0.0
    %2160 = vmatprep.subr.mxu0 0.0
    %2161 = vmatpush1.xpose.msra.mxu0 0.0
    %2162 = vmatprep.subr.mxu0 0.0
    %2163 = vmatpush1.xpose.msra.mxu0 0.0
    %2164 = vmatprep.subr.mxu0 0.0
    %2165 = vmatpush1.xpose.msra.mxu0 0.0
    %2166 = vmatprep.subr.mxu0 0.0
    %2167 = vmatpush1.xpose.msra.mxu0 0.0
    %2168 = vmatprep.subr.mxu0 0.0
    %2169 = vmatpush1.xpose.msra.mxu0 0.0
    %2170 = vmatprep.subr.mxu0 0.0
    %2171 = vmatpush1.xpose.msra.mxu0 0.0
    %2172 = vmatprep.subr.mxu0 0.0
    %2173 = vmatpush1.xpose.msra.mxu0 0.0
    %2174 = vmatprep.subr.mxu0 0.0
    %2175 = vmatpush1.xpose.msra.mxu0 0.0
    %2176 = vmatprep.mubr.f32.mxu0 0.0
    %2177 = vmatmul.mubr.f32.gmra.mrb[0].mxu0 %v2095
    %v2178 = vpop.f32.mrb[0].mxu0
    %v2179 = vadd.f32 0.0, %v2178
    %v2180 = vpop.f32.mrb[0].mxu0
    %2181 = vmatprep.mubr.f32.mxu0 0.0
    %2182 = vmatmul.mubr.f32.gmra.mrb[0].mxu0 %v2098
    %v2183 = vpop.f32.mrb[0].mxu0
    %v2184 = vadd.f32 0.0, %v2183
    %v2185 = vpop.f32.mrb[0].mxu0
    %2186 = vmatprep.mubr.f32.mxu0 0.0
    %2187 = vmatmul.mubr.f32.gmra.mrb[0].mxu0 %v2101
    %v2188 = vpop.f32.mrb[0].mxu0
    %v2189 = vadd.f32 0.0, %v2188
    %v2190 = vpop.f32.mrb[0].mxu0
    %2191 = vdwg.mxu0
    %v2192 = vsel %vm203, %v2179, -inf
    %2193 = vmax.xlane.f32.xlu0 %v2192
    %v2194 = vpop.xlane.xlu0 %2193
    %v2195 = vsel %vm203, %v2184, -inf
    %2196 = vmax.xlane.f32.xlu0 %v2195
    %v2197 = vpop.xlane.xlu0 %2196
    %v2198 = vsel %vm308, %v2189, -inf
    %2199 = vmax.xlane.f32.xlu0 %v2198
    %v2200 = vpop.xlane.xlu0 %2199
    %v2201 = vsub.f32 %v2179, %v2194
    %v2202 = vsub.f32 %v2184, %v2197
    %v2203 = vsub.f32 %v2189, %v2200
    %v2204 = vmul.f32 %v2201, 1.442695
    %v2205 = vpow.pop %v2204
    %v2206 = vmul.f32 %v2202, 1.442695
    %v2207 = vpow.pop %v2206
    %v2208 = vmul.f32 %v2203, 1.442695
    %v2209 = vpow.pop %v2208
    %v2210 = vsel %vm203, %v2205, 0.0
    %2211 = vadd.xlane.f32.xlu0 %v2210
    %v2212 = vpop.xlane.xlu0 %2211
    %v2213 = vsel %vm203, %v2207, 0.0
    %2214 = vadd.xlane.f32.xlu0 %v2213
    %v2215 = vpop.xlane.xlu0 %2214
    %v2216 = vsel %vm308, %v2209, 0.0
    %2217 = vadd.xlane.f32.xlu0 %v2216
    %v2218 = vpop.xlane.xlu0 %2217
    %v2219 = vrcp.pop %v2212
    %v2220 = vmul.f32 1.0, %v2219
    %v2221 = vrcp.pop %v2215
    %v2222 = vmul.f32 1.0, %v2221
    %v2223 = vrcp.pop %v2218
    %v2224 = vmul.f32 1.0, %v2223
    %v2225 = vmul.f32 %v2205, %v2220
    %v2226 = vmul.f32 %v2207, %v2222
    %v2227 = vmul.f32 %v2209, %v2224
    %s2228 = scalar_lea.vmem %s8, 144
    %v2229 = vld [vmem:[%s2228] sm:$0xff]
    %v2230 = vld [vmem:[%s2228 + $0x8] sm:$0xff]
    %v2231 = vld [vmem:[%s2228 + $0x10] sm:$0x3]
    %v2232 = vmul.f32 %v2225, %v2229
    %v2233 = vmul.f32 %v2226, %v2230
    %v2234 = vmul.f32 %v2227, %v2231
    %v2236 = vsel %vm203, %v2232, 0
    %v2239 = vsel %vm203, %v2233, 0
    %v2242 = vsel %vm203, %v2234, 0
    %v2245 = vsel %vm354, %v2093, 0
    %2247 = vmatprep.subr.mxu0 0.0
    %2248 = vmatpush1.msra.mxu0 %v2091
    %2249 = vmatprep.subr.mxu0 0.0
    %2250 = vmatpush1.msra.mxu0 %v2092
    %2251 = vmatprep.subr.mxu0 0.0
    %2252 = vmatpush1.msra.mxu0 %v2245
    %2253 = vmatprep.subr.mxu0 0.0
    %2254 = vmatpush1.msra.mxu0 0.0
    %2255 = vmatprep.subr.mxu0 0.0
    %2256 = vmatpush1.msra.mxu0 0.0
    %2257 = vmatprep.subr.mxu0 0.0
    %2258 = vmatpush1.msra.mxu0 0.0
    %2259 = vmatprep.subr.mxu0 0.0
    %2260 = vmatpush1.msra.mxu0 0.0
    %2261 = vmatprep.subr.mxu0 0.0
    %2262 = vmatpush1.msra.mxu0 0.0
    %2263 = vmatprep.subr.mxu0 0.0
    %2264 = vmatpush1.msra.mxu0 0.0
    %2265 = vmatprep.subr.mxu0 0.0
    %2266 = vmatpush1.msra.mxu0 0.0
    %2267 = vmatprep.subr.mxu0 0.0
    %2268 = vmatpush1.msra.mxu0 0.0
    %2269 = vmatprep.subr.mxu0 0.0
    %2270 = vmatpush1.msra.mxu0 0.0
    %2271 = vmatprep.subr.mxu0 0.0
    %2272 = vmatpush1.msra.mxu0 0.0
    %2273 = vmatprep.subr.mxu0 0.0
    %2274 = vmatpush1.msra.mxu0 0.0
    %2275 = vmatprep.subr.mxu0 0.0
    %2276 = vmatpush1.msra.mxu0 0.0
    %2277 = vmatprep.subr.mxu0 0.0
    %2278 = vmatpush1.msra.mxu0 0.0
    %2279 = vmatprep.subr.mxu0 0.0
    %2280 = vmatpush1.msra.mxu0 0.0
    %2281 = vmatprep.subr.mxu0 0.0
    %2282 = vmatpush1.msra.mxu0 0.0
    %2283 = vmatprep.subr.mxu0 0.0
    %2284 = vmatpush1.msra.mxu0 0.0
    %2285 = vmatprep.subr.mxu0 0.0
    %2286 = vmatpush1.msra.mxu0 0.0
    %2287 = vmatprep.subr.mxu0 0.0
    %2288 = vmatpush1.msra.mxu0 0.0
    %2289 = vmatprep.subr.mxu0 0.0
    %2290 = vmatpush1.msra.mxu0 0.0
    %2291 = vmatprep.subr.mxu0 0.0
    %2292 = vmatpush1.msra.mxu0 0.0
    %2293 = vmatprep.subr.mxu0 0.0
    %2294 = vmatpush1.msra.mxu0 0.0
    %2295 = vmatprep.subr.mxu0 0.0
    %2296 = vmatpush1.msra.mxu0 0.0
    %2297 = vmatprep.subr.mxu0 0.0
    %2298 = vmatpush1.msra.mxu0 0.0
    %2299 = vmatprep.subr.mxu0 0.0
    %2300 = vmatpush1.msra.mxu0 0.0
    %2301 = vmatprep.subr.mxu0 0.0
    %2302 = vmatpush1.msra.mxu0 0.0
    %2303 = vmatprep.subr.mxu0 0.0
    %2304 = vmatpush1.msra.mxu0 0.0
    %2305 = vmatprep.subr.mxu0 0.0
    %2306 = vmatpush1.msra.mxu0 0.0
    %2307 = vmatprep.subr.mxu0 0.0
    %2308 = vmatpush1.msra.mxu0 0.0
    %2309 = vmatprep.subr.mxu0 0.0
    %2310 = vmatpush1.msra.mxu0 0.0
    %2311 = vmatprep.mubr.f32.mxu0 0.0
    %2312 = vmatmul.mubr.f32.gmra.mrb[0].mxu0 %v2236
    %v2313 = vpop.f32.mrb[0].mxu0
    %v2314 = vadd.f32 0.0, %v2313
    %v2315 = vpop.f32.mrb[0].mxu0
    %2316 = vmatprep.mubr.f32.mxu0 0.0
    %2317 = vmatmul.mubr.f32.gmra.mrb[0].mxu0 %v2239
    %v2318 = vpop.f32.mrb[0].mxu0
    %v2319 = vadd.f32 0.0, %v2318
    %v2320 = vpop.f32.mrb[0].mxu0
    %2321 = vmatprep.mubr.f32.mxu0 0.0
    %2322 = vmatmul.mubr.f32.gmra.mrb[0].mxu0 %v2242
    %v2323 = vpop.f32.mrb[0].mxu0
    %v2324 = vadd.f32 0.0, %v2323
    %v2325 = vpop.f32.mrb[0].mxu0
    %2326 = vdwg.mxu0
    %s2327 = scalar_lea.vmem %s9, 144
    %2328 = vst.msk [vmem:[%s2327] sm:$0xff] %vm203, %v2314
    %2329 = vst.msk [vmem:[%s2327 + $0x8] sm:$0xff] %vm203, %v2319
    %2330 = vst.msk [vmem:[%s2327 + $0x10] sm:$0x3] %vm308, %v2324
    %s2331 = sld [smem:[#allocation4 + $0x7]]
    %s2332 = sld [smem:[#allocation2 + $0x380]]
    %v2333 = vstv %s2332
    %v2334 = vmul.f32 %v2333, %v103
    %v2335 = vmul.f32 %v2333, %v104
    %v2336 = vmul.f32 %v2333, %v105
    %v2337 = vstv %s2331
    %v2338 = vadd.f32 %v2337, %v2334
    %v2339 = vadd.f32 %v2337, %v2335
    %v2340 = vadd.f32 %v2337, %v2336
    %s2341 = sld [smem:[#allocation2 + $0x381]]
    %v2342 = vstv %s2341
    %v2343 = vmul.f32 %v2342, %v107
    %v2344 = vmul.f32 %v2342, %v108
    %v2345 = vmul.f32 %v2342, %v109
    %v2346 = vadd.f32 %v2338, %v2343
    %v2347 = vadd.f32 %v2339, %v2344
    %v2348 = vadd.f32 %v2340, %v2345
    %s2349 = sld [smem:[#allocation2 + $0x382]]
    %v2350 = vstv %s2349
    %v2351 = vmul.f32 %v2350, %v111
    %v2352 = vmul.f32 %v2350, %v112
    %v2353 = vmul.f32 %v2350, %v113
    %v2354 = vadd.f32 %v2346, %v2351
    %v2355 = vadd.f32 %v2347, %v2352
    %v2356 = vadd.f32 %v2348, %v2353
    %s2357 = sld [smem:[#allocation7 + $0x7]]
    %s2358 = sld [smem:[#allocation6 + $0x380]]
    %v2359 = vstv %s2358
    %v2360 = vmul.f32 %v2359, %v114
    %v2361 = vmul.f32 %v2359, %v115
    %v2362 = vmul.f32 %v2359, %v116
    %v2363 = vstv %s2357
    %v2364 = vadd.f32 %v2363, %v2360
    %v2365 = vadd.f32 %v2363, %v2361
    %v2366 = vadd.f32 %v2363, %v2362
    %s2367 = sld [smem:[#allocation6 + $0x381]]
    %v2368 = vstv %s2367
    %v2369 = vmul.f32 %v2368, %v118
    %v2370 = vmul.f32 %v2368, %v119
    %v2371 = vmul.f32 %v2368, %v120
    %v2372 = vadd.f32 %v2364, %v2369
    %v2373 = vadd.f32 %v2365, %v2370
    %v2374 = vadd.f32 %v2366, %v2371
    %s2375 = sld [smem:[#allocation6 + $0x382]]
    %v2376 = vstv %s2375
    %v2377 = vmul.f32 %v2376, %v122
    %v2378 = vmul.f32 %v2376, %v123
    %v2379 = vmul.f32 %v2376, %v124
    %v2380 = vadd.f32 %v2372, %v2377
    %v2381 = vadd.f32 %v2373, %v2378
    %v2382 = vadd.f32 %v2374, %v2379
    %s2383 = sld [smem:[#allocation10 + $0x7]]
    %s2384 = sld [smem:[#allocation9 + $0x380]]
    %v2385 = vstv %s2384
    %v2386 = vmul.f32 %v2385, %v114
    %v2387 = vmul.f32 %v2385, %v115
    %v2388 = vmul.f32 %v2385, %v116
    %v2389 = vstv %s2383
    %v2390 = vadd.f32 %v2389, %v2386
    %v2391 = vadd.f32 %v2389, %v2387
    %v2392 = vadd.f32 %v2389, %v2388
    %s2393 = sld [smem:[#allocation9 + $0x381]]
    %v2394 = vstv %s2393
    %v2395 = vmul.f32 %v2394, %v118
    %v2396 = vmul.f32 %v2394, %v119
    %v2397 = vmul.f32 %v2394, %v120
    %v2398 = vadd.f32 %v2390, %v2395
    %v2399 = vadd.f32 %v2391, %v2396
    %v2400 = vadd.f32 %v2392, %v2397
    %s2401 = sld [smem:[#allocation9 + $0x382]]
    %v2402 = vstv %s2401
    %v2403 = vmul.f32 %v2402, %v122
    %v2404 = vmul.f32 %v2402, %v123
    %v2405 = vmul.f32 %v2402, %v124
    %v2406 = vadd.f32 %v2398, %v2403
    %v2407 = vadd.f32 %v2399, %v2404
    %v2408 = vadd.f32 %v2400, %v2405
    %v2410 = vsel %vm203, %v2354, 0
    %v2413 = vsel %vm203, %v2355, 0
    %v2416 = vsel %vm203, %v2356, 0
    %v2419 = vsel %vm203, %v2380, 0
    %v2422 = vsel %vm203, %v2381, 0
    %v2425 = vsel %vm203, %v2382, 0
    %2427 = vmatprep.subr.mxu0 0.0
    %2428 = vmatpush1.xpose.msra.mxu0 %v2419
    %2429 = vmatprep.subr.mxu0 0.0
    %2430 = vmatpush1.xpose.msra.mxu0 %v2422
    %2431 = vmatprep.subr.mxu0 0.0
    %2432 = vmatpush1.xpose.msra.mxu0 %v2425
    %2433 = vmatprep.subr.mxu0 0.0
    %2434 = vmatpush1.xpose.msra.mxu0 0.0
    %2435 = vmatprep.subr.mxu0 0.0
    %2436 = vmatpush1.xpose.msra.mxu0 0.0
    %2437 = vmatprep.subr.mxu0 0.0
    %2438 = vmatpush1.xpose.msra.mxu0 0.0
    %2439 = vmatprep.subr.mxu0 0.0
    %2440 = vmatpush1.xpose.msra.mxu0 0.0
    %2441 = vmatprep.subr.mxu0 0.0
    %2442 = vmatpush1.xpose.msra.mxu0 0.0
    %2443 = vmatprep.subr.mxu0 0.0
    %2444 = vmatpush1.xpose.msra.mxu0 0.0
    %2445 = vmatprep.subr.mxu0 0.0
    %2446 = vmatpush1.xpose.msra.mxu0 0.0
    %2447 = vmatprep.subr.mxu0 0.0
    %2448 = vmatpush1.xpose.msra.mxu0 0.0
    %2449 = vmatprep.subr.mxu0 0.0
    %2450 = vmatpush1.xpose.msra.mxu0 0.0
    %2451 = vmatprep.subr.mxu0 0.0
    %2452 = vmatpush1.xpose.msra.mxu0 0.0
    %2453 = vmatprep.subr.mxu0 0.0
    %2454 = vmatpush1.xpose.msra.mxu0 0.0
    %2455 = vmatprep.subr.mxu0 0.0
    %2456 = vmatpush1.xpose.msra.mxu0 0.0
    %2457 = vmatprep.subr.mxu0 0.0
    %2458 = vmatpush1.xpose.msra.mxu0 0.0
    %2459 = vmatprep.subr.mxu0 0.0
    %2460 = vmatpush1.xpose.msra.mxu0 0.0
    %2461 = vmatprep.subr.mxu0 0.0
    %2462 = vmatpush1.xpose.msra.mxu0 0.0
    %2463 = vmatprep.subr.mxu0 0.0
    %2464 = vmatpush1.xpose.msra.mxu0 0.0
    %2465 = vmatprep.subr.mxu0 0.0
    %2466 = vmatpush1.xpose.msra.mxu0 0.0
    %2467 = vmatprep.subr.mxu0 0.0
    %2468 = vmatpush1.xpose.msra.mxu0 0.0
    %2469 = vmatprep.subr.mxu0 0.0
    %2470 = vmatpush1.xpose.msra.mxu0 0.0
    %2471 = vmatprep.subr.mxu0 0.0
    %2472 = vmatpush1.xpose.msra.mxu0 0.0
    %2473 = vmatprep.subr.mxu0 0.0
    %2474 = vmatpush1.xpose.msra.mxu0 0.0
    %2475 = vmatprep.subr.mxu0 0.0
    %2476 = vmatpush1.xpose.msra.mxu0 0.0
    %2477 = vmatprep.subr.mxu0 0.0
    %2478 = vmatpush1.xpose.msra.mxu0 0.0
    %2479 = vmatprep.subr.mxu0 0.0
    %2480 = vmatpush1.xpose.msra.mxu0 0.0
    %2481 = vmatprep.subr.mxu0 0.0
    %2482 = vmatpush1.xpose.msra.mxu0 0.0
    %2483 = vmatprep.subr.mxu0 0.0
    %2484 = vmatpush1.xpose.msra.mxu0 0.0
    %2485 = vmatprep.subr.mxu0 0.0
    %2486 = vmatpush1.xpose.msra.mxu0 0.0
    %2487 = vmatprep.subr.mxu0 0.0
    %2488 = vmatpush1.xpose.msra.mxu0 0.0
    %2489 = vmatprep.subr.mxu0 0.0
    %2490 = vmatpush1.xpose.msra.mxu0 0.0
    %2491 = vmatprep.mubr.f32.mxu0 0.0
    %2492 = vmatmul.mubr.f32.gmra.mrb[0].mxu0 %v2410
    %v2493 = vpop.f32.mrb[0].mxu0
    %v2494 = vadd.f32 0.0, %v2493
    %v2495 = vpop.f32.mrb[0].mxu0
    %2496 = vmatprep.mubr.f32.mxu0 0.0
    %2497 = vmatmul.mubr.f32.gmra.mrb[0].mxu0 %v2413
    %v2498 = vpop.f32.mrb[0].mxu0
    %v2499 = vadd.f32 0.0, %v2498
    %v2500 = vpop.f32.mrb[0].mxu0
    %2501 = vmatprep.mubr.f32.mxu0 0.0
    %2502 = vmatmul.mubr.f32.gmra.mrb[0].mxu0 %v2416
    %v2503 = vpop.f32.mrb[0].mxu0
    %v2504 = vadd.f32 0.0, %v2503
    %v2505 = vpop.f32.mrb[0].mxu0
    %2506 = vdwg.mxu0
    %v2507 = vsel %vm203, %v2494, -inf
    %2508 = vmax.xlane.f32.xlu0 %v2507
    %v2509 = vpop.xlane.xlu0 %2508
    %v2510 = vsel %vm203, %v2499, -inf
    %2511 = vmax.xlane.f32.xlu0 %v2510
    %v2512 = vpop.xlane.xlu0 %2511
    %v2513 = vsel %vm308, %v2504, -inf
    %2514 = vmax.xlane.f32.xlu0 %v2513
    %v2515 = vpop.xlane.xlu0 %2514
    %v2516 = vsub.f32 %v2494, %v2509
    %v2517 = vsub.f32 %v2499, %v2512
    %v2518 = vsub.f32 %v2504, %v2515
    %v2519 = vmul.f32 %v2516, 1.442695
    %v2520 = vpow.pop %v2519
    %v2521 = vmul.f32 %v2517, 1.442695
    %v2522 = vpow.pop %v2521
    %v2523 = vmul.f32 %v2518, 1.442695
    %v2524 = vpow.pop %v2523
    %v2525 = vsel %vm203, %v2520, 0.0
    %2526 = vadd.xlane.f32.xlu0 %v2525
    %v2527 = vpop.xlane.xlu0 %2526
    %v2528 = vsel %vm203, %v2522, 0.0
    %2529 = vadd.xlane.f32.xlu0 %v2528
    %v2530 = vpop.xlane.xlu0 %2529
    %v2531 = vsel %vm308, %v2524, 0.0
    %2532 = vadd.xlane.f32.xlu0 %v2531
    %v2533 = vpop.xlane.xlu0 %2532
    %v2534 = vrcp.pop %v2527
    %v2535 = vmul.f32 1.0, %v2534
    %v2536 = vrcp.pop %v2530
    %v2537 = vmul.f32 1.0, %v2536
    %v2538 = vrcp.pop %v2533
    %v2539 = vmul.f32 1.0, %v2538
    %v2540 = vmul.f32 %v2520, %v2535
    %v2541 = vmul.f32 %v2522, %v2537
    %v2542 = vmul.f32 %v2524, %v2539
    %s2543 = scalar_lea.vmem %s8, 168
    %v2544 = vld [vmem:[%s2543] sm:$0xff]
    %v2545 = vld [vmem:[%s2543 + $0x8] sm:$0xff]
    %v2546 = vld [vmem:[%s2543 + $0x10] sm:$0x3]
    %v2547 = vmul.f32 %v2540, %v2544
    %v2548 = vmul.f32 %v2541, %v2545
    %v2549 = vmul.f32 %v2542, %v2546
    %v2551 = vsel %vm203, %v2547, 0
    %v2554 = vsel %vm203, %v2548, 0
    %v2557 = vsel %vm203, %v2549, 0
    %v2560 = vsel %vm354, %v2408, 0
    %2562 = vmatprep.subr.mxu0 0.0
    %2563 = vmatpush1.msra.mxu0 %v2406
    %2564 = vmatprep.subr.mxu0 0.0
    %2565 = vmatpush1.msra.mxu0 %v2407
    %2566 = vmatprep.subr.mxu0 0.0
    %2567 = vmatpush1.msra.mxu0 %v2560
    %2568 = vmatprep.subr.mxu0 0.0
    %2569 = vmatpush1.msra.mxu0 0.0
    %2570 = vmatprep.subr.mxu0 0.0
    %2571 = vmatpush1.msra.mxu0 0.0
    %2572 = vmatprep.subr.mxu0 0.0
    %2573 = vmatpush1.msra.mxu0 0.0
    %2574 = vmatprep.subr.mxu0 0.0
    %2575 = vmatpush1.msra.mxu0 0.0
    %2576 = vmatprep.subr.mxu0 0.0
    %2577 = vmatpush1.msra.mxu0 0.0
    %2578 = vmatprep.subr.mxu0 0.0
    %2579 = vmatpush1.msra.mxu0 0.0
    %2580 = vmatprep.subr.mxu0 0.0
    %2581 = vmatpush1.msra.mxu0 0.0
    %2582 = vmatprep.subr.mxu0 0.0
    %2583 = vmatpush1.msra.mxu0 0.0
    %2584 = vmatprep.subr.mxu0 0.0
    %2585 = vmatpush1.msra.mxu0 0.0
    %2586 = vmatprep.subr.mxu0 0.0
    %2587 = vmatpush1.msra.mxu0 0.0
    %2588 = vmatprep.subr.mxu0 0.0
    %2589 = vmatpush1.msra.mxu0 0.0
    %2590 = vmatprep.subr.mxu0 0.0
    %2591 = vmatpush1.msra.mxu0 0.0
    %2592 = vmatprep.subr.mxu0 0.0
    %2593 = vmatpush1.msra.mxu0 0.0
    %2594 = vmatprep.subr.mxu0 0.0
    %2595 = vmatpush1.msra.mxu0 0.0
    %2596 = vmatprep.subr.mxu0 0.0
    %2597 = vmatpush1.msra.mxu0 0.0
    %2598 = vmatprep.subr.mxu0 0.0
    %2599 = vmatpush1.msra.mxu0 0.0
    %2600 = vmatprep.subr.mxu0 0.0
    %2601 = vmatpush1.msra.mxu0 0.0
    %2602 = vmatprep.subr.mxu0 0.0
    %2603 = vmatpush1.msra.mxu0 0.0
    %2604 = vmatprep.subr.mxu0 0.0
    %2605 = vmatpush1.msra.mxu0 0.0
    %2606 = vmatprep.subr.mxu0 0.0
    %2607 = vmatpush1.msra.mxu0 0.0
    %2608 = vmatprep.subr.mxu0 0.0
    %2609 = vmatpush1.msra.mxu0 0.0
    %2610 = vmatprep.subr.mxu0 0.0
    %2611 = vmatpush1.msra.mxu0 0.0
    %2612 = vmatprep.subr.mxu0 0.0
    %2613 = vmatpush1.msra.mxu0 0.0
    %2614 = vmatprep.subr.mxu0 0.0
    %2615 = vmatpush1.msra.mxu0 0.0
    %2616 = vmatprep.subr.mxu0 0.0
    %2617 = vmatpush1.msra.mxu0 0.0
    %2618 = vmatprep.subr.mxu0 0.0
    %2619 = vmatpush1.msra.mxu0 0.0
    %2620 = vmatprep.subr.mxu0 0.0
    %2621 = vmatpush1.msra.mxu0 0.0
    %2622 = vmatprep.subr.mxu0 0.0
    %2623 = vmatpush1.msra.mxu0 0.0
    %2624 = vmatprep.subr.mxu0 0.0
    %2625 = vmatpush1.msra.mxu0 0.0
    %2626 = vmatprep.mubr.f32.mxu0 0.0
    %2627 = vmatmul.mubr.f32.gmra.mrb[0].mxu0 %v2551
    %v2628 = vpop.f32.mrb[0].mxu0
    %v2629 = vadd.f32 0.0, %v2628
    %v2630 = vpop.f32.mrb[0].mxu0
    %2631 = vmatprep.mubr.f32.mxu0 0.0
    %2632 = vmatmul.mubr.f32.gmra.mrb[0].mxu0 %v2554
    %v2633 = vpop.f32.mrb[0].mxu0
    %v2634 = vadd.f32 0.0, %v2633
    %v2635 = vpop.f32.mrb[0].mxu0
    %2636 = vmatprep.mubr.f32.mxu0 0.0
    %2637 = vmatmul.mubr.f32.gmra.mrb[0].mxu0 %v2557
    %v2638 = vpop.f32.mrb[0].mxu0
    %v2639 = vadd.f32 0.0, %v2638
    %v2640 = vpop.f32.mrb[0].mxu0
    %2641 = vdwg.mxu0
    %s2642 = scalar_lea.vmem %s9, 168
    %2643 = vst.msk [vmem:[%s2642] sm:$0xff] %vm203, %v2629
    %2644 = vst.msk [vmem:[%s2642 + $0x8] sm:$0xff] %vm203, %v2634
    %2645 = vst.msk [vmem:[%s2642 + $0x10] sm:$0x3] %vm308, %v2639
    // Predicated region
    $region62: #{model_forward.1} parent=1 // pred_check
      _
    $region63: #{model_forward.1} parent=1 // pred_check_branch
      %2647 = sbr.rel (0) target = $region65
    $region64: #{model_forward.1} parent=1 // pred_region
      _
    $region65: #{model_forward.1} parent=1 // pred_fallthru
      _
    // Predicated region
    $region66: #{model_forward.1} parent=1 // pred_check
      _
    $region67: #{model_forward.1} parent=1 // pred_check_branch
      %2649 = sbr.rel (0) target = $region69
    $region68: #{model_forward.1} parent=1 // pred_region
      _
    $region69: #{model_forward.1} parent=1 // pred_fallthru
      _
    %2650 = vsyncpa [#allocation3], 1
    %2651 = vsyncpa [#allocation5], 1
    %2652 = vsyncpa [#allocation8], 1
    %2653 = vsyncpa [#allocation11], 1

</llo_original>
